<compile_context>
chip_gen: v6e
topology: v6e:2x2x1
jax: 0.10.0
libtpu: 0.0.40
codegen_flags: <defaults>
</compile_context>

<pallas_src>
import jax
import jax.numpy as jnp
from jax.experimental import pallas as pl
from jax.experimental.pallas import tpu as pltpu


# ----------------------------------------------------------------------------
# Parameter packing: one (rows, 128) f32 slab + static layout directory
# ----------------------------------------------------------------------------

_SLAB_LANES = 128


def _round_up(x, m):
    return -(-x // m) * m


def pack_params(params):
    """Pack all weights/biases into a single (R, 128) f32 slab, rows of each
    entry padded to a multiple of 8 so in-kernel slices stay sublane-aligned.
    Returns (slab, layout) where layout[name] = (row_start, n_rows, n_cols)."""
    entries = []

    def add(name, arr):
        arr = jnp.asarray(arr, jnp.float32)
        if arr.ndim == 1:
            arr = arr.reshape(1, -1)
        entries.append((name, arr))

    for stage in ("gcn0", "gcn1"):
        for li, (w, b) in enumerate(params[stage]):
            add(f"{stage}_w{li}", w)
            add(f"{stage}_b{li}", b)
    for li, (w, b) in enumerate(params["pred"]):
        add(f"pred_w{li}", w)
        add(f"pred_b{li}", b)

    layout = {}
    blocks = []
    row = 0
    for name, arr in entries:
        nr, nc = arr.shape
        nr_pad = _round_up(nr, 8)
        layout[name] = (row, nr, nc)
        block = jnp.zeros((nr_pad, _SLAB_LANES), jnp.float32)
        block = block.at[:nr, :nc].set(arr)
        blocks.append(block)
        row += nr_pad
    slab = jnp.concatenate(blocks, axis=0)
    return slab, layout


# ----------------------------------------------------------------------------
# Fused kernel
# ----------------------------------------------------------------------------

def make_kernel(layout, num_layers):
    """Builds the fused forward kernel; `layout` offsets are closed over as
    static Python ints so all slab slices are static."""

    def kernel(nn_ref, adj_ref, x_ref, s_ref, slab_ref, out_ref):
        B, N, _ = adj_ref.shape
        C = s_ref.shape[2]

        # -------- point-of-use weight / bias loads (static ref slices) ------
        def w_of(name):
            r0, nr, nc = layout[name]
            return slab_ref[r0:r0 + nr, 0:nc]            # (din, dout)

        def b_of(name):
            r0, _, nc = layout[name]
            return slab_ref[r0:r0 + 1, 0:nc]             # (1, dout)

        # -------- elementwise helpers ---------------------------------------
        def l2norm_bias_act(y, bias, relu):
            # bias add + F.normalize(p=2, dim=-1, eps=1e-12) (+ ReLU)
            y = y + bias
            ss = jnp.sum(y * y, axis=-1, keepdims=True)
            y = y * jax.lax.rsqrt(jnp.maximum(ss, 1e-24))   # EUP rsqrt
            if relu:
                y = jnp.maximum(y, 0.0)
            return y

        def adj_apply_stacked(h):
            # block-diagonal adjacency applied to the batch-stacked tensor via
            # per-batch dots + sublane-aligned concat (16-row blocks).
            return jnp.concatenate(
                [jnp.dot(adj_ref[b], h[b * N:(b + 1) * N, :],
                         preferred_element_type=jnp.float32)
                 for b in range(B)], axis=0)

        def bn_stacked(h):
            # fresh nn.BatchNorm1d(N): per-node stats over (batch, feature)
            d = h.shape[1]
            s1 = None
            s2 = None
            for b in range(B):
                blk = h[b * N:(b + 1) * N, :]
                a = jnp.sum(blk, axis=1, keepdims=True)
                q = jnp.sum(blk * blk, axis=1, keepdims=True)
                s1 = a if s1 is None else s1 + a
                s2 = q if s2 is None else s2 + q
            cnt = float(B * d)
            mean = s1 / cnt
            var = jnp.maximum(s2 / cnt - mean * mean, 0.0)
            inv = jax.lax.rsqrt(var + 1e-5)
            mean = jnp.concatenate([mean] * B, axis=0)
            inv = jnp.concatenate([inv] * B, axis=0)
            return (h - mean) * inv

        def bn_list(h_list):
            # fresh nn.BatchNorm1d(C) on per-batch (C, d) activations
            d = h_list[0].shape[1]
            s1 = None
            s2 = None
            for hb in h_list:
                a = jnp.sum(hb, axis=1, keepdims=True)
                q = jnp.sum(hb * hb, axis=1, keepdims=True)
                s1 = a if s1 is None else s1 + a
                s2 = q if s2 is None else s2 + q
            cnt = float(len(h_list) * d)
            mean = s1 / cnt
            var = jnp.maximum(s2 / cnt - mean * mean, 0.0)
            inv = jax.lax.rsqrt(var + 1e-5)
            return [(hb - mean) * inv for hb in h_list]

        # -------- in-kernel node mask from SMEM scalars ----------------------
        iota_n = jax.lax.broadcasted_iota(jnp.int32, (N, 1), 0)
        mask = jnp.concatenate(
            [(iota_n < nn_ref[b]).astype(jnp.float32) for b in range(B)],
            axis=0)                                       # (B*N, 1)

        # one-hot rows used to assemble (B, d) readouts without a scatter loop
        batch_iota = jax.lax.broadcasted_iota(jnp.int32, (B, 1), 0)
        onehot = [(batch_iota == b).astype(jnp.float32) for b in range(B)]

        def rowstack(rows):                               # B x (1,d) -> (B,d)
            acc = onehot[0] * rows[0]
            for b in range(1, B):
                acc = acc + onehot[b] * rows[b]
            return acc

        readouts = []                                     # list of (B, d)
        xpool = [[] for _ in range(B)]                    # per-batch (C, d)
        tnode = (((0,), (0,)), ((), ()))                  # contract node axis

        def stage0_post(h_block):
            # streamed: mask -> max readout -> S^T pooling, then drop
            m = h_block * mask
            rows = []
            for b in range(B):
                blk = m[b * N:(b + 1) * N, :]
                rows.append(jnp.max(blk, axis=0, keepdims=True))
                xpool[b].append(
                    jax.lax.dot_general(s_ref[b], blk, tnode,
                                        preferred_element_type=jnp.float32))
            readouts.append(rowstack(rows))

        # ==================== stage 0: GCN on the input graph ===============
        h = jnp.concatenate([x_ref[b] for b in range(B)], axis=0)  # (B*N, Fin)
        for li in range(num_layers):
            w = w_of(f"gcn0_w{li}")
            bia = b_of(f"gcn0_b{li}")
            din, dout = w.shape
            last = (li == num_layers - 1)
            if din <= dout:
                # (adj @ h) @ W : NxN product stays at the narrower width
                y = jnp.dot(adj_apply_stacked(h), w,
                            preferred_element_type=jnp.float32)
            else:
                y = adj_apply_stacked(
                    jnp.dot(h, w, preferred_element_type=jnp.float32))
            y = l2norm_bias_act(y, bia, relu=not last)
            if not last:
                y = bn_stacked(y)
            stage0_post(y)
            h = y

        # ==================== soft pooling: S^T A S ==========================
        adj_pool = []
        for b in range(B):
            sa = jax.lax.dot_general(s_ref[b], adj_ref[b], tnode,
                                     preferred_element_type=jnp.float32)  # (C,N)
            adj_pool.append(jnp.dot(sa, s_ref[b],
                                    preferred_element_type=jnp.float32))  # (C,C)

        # ==================== stage 1: GCN on the pooled graph ===============
        # Layer 0: din = pred_input_dim > dout, so (x@W) runs first; the
        # stage-0 layer concat is folded into row blocks of W (never built).
        w = w_of("gcn1_w0")
        bia = b_of("gcn1_b0")
        hcur = []
        for b in range(B):
            hw = None
            col = 0
            for li in range(num_layers):
                part = xpool[b][li]
                dl = part.shape[1]
                t = jnp.dot(part, w[col:col + dl, :],
                            preferred_element_type=jnp.float32)
                hw = t if hw is None else hw + t
                col += dl
            y = jnp.dot(adj_pool[b], hw, preferred_element_type=jnp.float32)
            hcur.append(l2norm_bias_act(y, bia, relu=True))
        hcur = bn_list(hcur)
        readouts.append(rowstack([jnp.max(hb, axis=0, keepdims=True)
                                  for hb in hcur]))

        for li in range(1, num_layers):
            w = w_of(f"gcn1_w{li}")
            bia = b_of(f"gcn1_b{li}")
            din, dout = w.shape
            last = (li == num_layers - 1)
            nxt = []
            for b in range(B):
                hb = hcur[b]
                if din <= dout:
                    y = jnp.dot(jnp.dot(adj_pool[b], hb,
                                        preferred_element_type=jnp.float32),
                                w, preferred_element_type=jnp.float32)
                else:
                    y = jnp.dot(adj_pool[b],
                                jnp.dot(hb, w, preferred_element_type=jnp.float32),
                                preferred_element_type=jnp.float32)
                nxt.append(l2norm_bias_act(y, bia, relu=not last))
            if not last:
                nxt = bn_list(nxt)
            readouts.append(rowstack([jnp.max(hb, axis=0, keepdims=True)
                                      for hb in nxt]))
            hcur = nxt

        # ==================== prediction MLP (batched over B) ================
        wp0_r0, _, dp = layout["pred_w0"]
        acc = None
        col = 0
        for part in readouts:                    # readout concat folded into
            dl = part.shape[1]                   # row blocks of W_pred0
            wblk = slab_ref[wp0_r0 + col:wp0_r0 + col + dl, 0:dp]
            t = jnp.dot(part, wblk, preferred_element_type=jnp.float32)
            acc = t if acc is None else acc + t
            col += dl
        hpred = jnp.maximum(acc + b_of("pred_b0"), 0.0)
        ypred = jnp.dot(hpred, w_of("pred_w1"),
                        preferred_element_type=jnp.float32) + b_of("pred_b1")
        out_ref[...] = ypred                     # single full-block store

    return kernel


# ----------------------------------------------------------------------------
# Wrapper
# ----------------------------------------------------------------------------

def det_softpool_forward(x, adj, batch_num_nodes, det_assign_matrix,
                         slab, layout, num_layers):
    B = adj.shape[0]
    label_dim = layout["pred_w1"][2]
    kernel = make_kernel(layout, num_layers)
    return pl.pallas_call(
        kernel,
        out_shape=jax.ShapeDtypeStruct((B, label_dim), jnp.float32),
        in_specs=[
            pl.BlockSpec(memory_space=pltpu.MemorySpace.SMEM),   # batch_num_nodes
            pl.BlockSpec(memory_space=pltpu.MemorySpace.VMEM),   # adj
            pl.BlockSpec(memory_space=pltpu.MemorySpace.VMEM),   # x
            pl.BlockSpec(memory_space=pltpu.MemorySpace.VMEM),   # assignment S
            pl.BlockSpec(memory_space=pltpu.MemorySpace.VMEM),   # weight slab
        ],
        out_specs=pl.BlockSpec(memory_space=pltpu.MemorySpace.VMEM),
    )(batch_num_nodes, adj, x, det_assign_matrix, slab)


# ----------------------------------------------------------------------------
# Parameter construction (mirrors the PyTorch init)
# ----------------------------------------------------------------------------

def _xavier_relu(key, shape):
    fan_sum = shape[0] + shape[1]
    bound = jnp.sqrt(2.0) * jnp.sqrt(6.0 / fan_sum)   # gain('relu') = sqrt(2)
    return jax.random.uniform(key, shape, jnp.float32, -bound, bound)


def _linear_init(key, shape):
    kw, kb = jax.random.split(key)
    bound = 1.0 / jnp.sqrt(shape[0])
    w = jax.random.uniform(kw, shape, jnp.float32, -bound, bound)
    b = jax.random.uniform(kb, (shape[1],), jnp.float32, -bound, bound)
    return w, b


def build_params(key, input_dim, hidden_dim, embedding_dim, label_dim,
                 num_layers, pred_hidden_dim):
    pred_input_dim = hidden_dim * (num_layers - 1) + embedding_dim
    keys = jax.random.split(key, 4 * num_layers + 4)
    ki = iter(keys)

    def gcn_set(in_dim):
        layers = []
        d_in = in_dim
        for li in range(num_layers):
            d_out = embedding_dim if li == num_layers - 1 else hidden_dim
            layers.append((_xavier_relu(next(ki), (d_in, d_out)),
                           jnp.zeros((d_out,), jnp.float32)))
            d_in = d_out
        return layers

    return {
        "gcn0": gcn_set(input_dim),
        "gcn1": gcn_set(pred_input_dim),
        "pred": [
            _linear_init(next(ki), (pred_input_dim * 2, pred_hidden_dim)),
            _linear_init(next(ki), (pred_hidden_dim, label_dim)),
        ],
    }


if __name__ == "__main__":
    # Small, module-consistent shapes.
    B, N, C = 2, 16, 4            # batch, max_num_nodes, clusters (det assign)
    input_dim, hidden_dim, embedding_dim = 8, 16, 16
    label_dim, num_layers, pred_hidden_dim = 4, 3, 50

    key = jax.random.PRNGKey(0)
    kx, kadj, kassign, kparams = jax.random.split(key, 4)

    x = jax.random.normal(kx, (B, N, input_dim), jnp.float32)
    adj_raw = jax.random.uniform(kadj, (B, N, N), jnp.float32)
    adj = ((adj_raw + jnp.swapaxes(adj_raw, 1, 2)) * 0.5 > 0.5).astype(jnp.float32)
    det_assign_matrix = jax.random.uniform(kassign, (B, N, C), jnp.float32)
    batch_num_nodes = jnp.array([16, 12], dtype=jnp.int32)

    params = build_params(kparams, input_dim, hidden_dim, embedding_dim,
                          label_dim, num_layers, pred_hidden_dim)
    slab, layout = pack_params(params)        # packed once, reused every call

    ypred = det_softpool_forward(x, adj, batch_num_nodes, det_assign_matrix,
                                 slab, layout, num_layers)
    ypred = jax.block_until_ready(ypred)
    assert ypred.shape == (B, label_dim), ypred.shape
    assert jnp.all(jnp.isfinite(ypred))
    print("KERNEL_OK")
</pallas_src>

<mosaic_0001>
module attributes {stable_mosaic.version = 11 : i64} {
  func.func @kernel(%arg0: memref<2xi32, #tpu.memory_space<smem>>, %arg1: memref<2x16x16xf32, #tpu.memory_space<vmem>>, %arg2: memref<2x16x8xf32, #tpu.memory_space<vmem>>, %arg3: memref<2x16x4xf32, #tpu.memory_space<vmem>>, %arg4: memref<336x128xf32, #tpu.memory_space<vmem>>, %arg5: memref<2x4xf32, #tpu.memory_space<vmem>>) attributes {dimension_semantics = [], scalar_prefetch = 0 : i64, scratch_operands = 0 : i64, tpu.core_type = #tpu.core_type<tc>} {
    %0 = tpu.iota {dimensions = array<i32: 0>} : vector<16x1xi32>
    %c0 = arith.constant 0 : index
    %1 = memref.load %arg0[%c0] : memref<2xi32, #tpu.memory_space<smem>>
    %2 = vector.broadcast %1 : i32 to vector<16x1xi32>
    %3 = arith.cmpi slt, %0, %2 : vector<16x1xi32>
    %4 = arith.extui %3 : vector<16x1xi1> to vector<16x1xi32>
    %5 = arith.sitofp %4 : vector<16x1xi32> to vector<16x1xf32>
    %c1 = arith.constant 1 : index
    %6 = memref.load %arg0[%c1] : memref<2xi32, #tpu.memory_space<smem>>
    %7 = vector.broadcast %6 : i32 to vector<16x1xi32>
    %8 = arith.cmpi slt, %0, %7 : vector<16x1xi32>
    %9 = arith.extui %8 : vector<16x1xi1> to vector<16x1xi32>
    %10 = arith.sitofp %9 : vector<16x1xi32> to vector<16x1xf32>
    %11 = tpu.concatenate %5, %10 in 0 : vector<16x1xf32>, vector<16x1xf32> -> vector<32x1xf32>
    %12 = tpu.iota {dimensions = array<i32: 0>} : vector<2x1xi32>
    %c0_i32 = arith.constant 0 : i32
    %13 = vector.broadcast %c0_i32 : i32 to vector<2x1xi32>
    %14 = arith.cmpi eq, %12, %13 : vector<2x1xi32>
    %15 = arith.extui %14 : vector<2x1xi1> to vector<2x1xi32>
    %16 = arith.sitofp %15 : vector<2x1xi32> to vector<2x1xf32>
    %c1_i32 = arith.constant 1 : i32
    %17 = vector.broadcast %c1_i32 : i32 to vector<2x1xi32>
    %18 = arith.cmpi eq, %12, %17 : vector<2x1xi32>
    %19 = arith.extui %18 : vector<2x1xi1> to vector<2x1xi32>
    %20 = arith.sitofp %19 : vector<2x1xi32> to vector<2x1xf32>
    %c0_0 = arith.constant 0 : index
    %c0_1 = arith.constant 0 : index
    %c0_2 = arith.constant 0 : index
    %21 = vector.load %arg2[%c0_0, %c0_1, %c0_2] : memref<2x16x8xf32, #tpu.memory_space<vmem>>, vector<1x16x8xf32>
    %22 = vector.shape_cast %21 : vector<1x16x8xf32> to vector<16x8xf32>
    %c1_3 = arith.constant 1 : index
    %c0_4 = arith.constant 0 : index
    %c0_5 = arith.constant 0 : index
    %23 = vector.load %arg2[%c1_3, %c0_4, %c0_5] : memref<2x16x8xf32, #tpu.memory_space<vmem>>, vector<1x16x8xf32>
    %24 = vector.shape_cast %23 : vector<1x16x8xf32> to vector<16x8xf32>
    %25 = tpu.concatenate %22, %24 in 0 : vector<16x8xf32>, vector<16x8xf32> -> vector<32x8xf32>
    %c0_6 = arith.constant 0 : index
    %c0_7 = arith.constant 0 : index
    %26 = vector.load %arg4[%c0_6, %c0_7] : memref<336x128xf32, #tpu.memory_space<vmem>>, vector<8x16xf32>
    %c8 = arith.constant 8 : index
    %c0_8 = arith.constant 0 : index
    %27 = vector.load %arg4[%c8, %c0_8] : memref<336x128xf32, #tpu.memory_space<vmem>>, vector<1x16xf32>
    %c0_9 = arith.constant 0 : index
    %c0_10 = arith.constant 0 : index
    %c0_11 = arith.constant 0 : index
    %28 = vector.load %arg1[%c0_9, %c0_10, %c0_11] : memref<2x16x16xf32, #tpu.memory_space<vmem>>, vector<1x16x16xf32>
    %29 = vector.shape_cast %28 : vector<1x16x16xf32> to vector<16x16xf32>
    %30 = vector.extract_strided_slice %25 {offsets = [0, 0], sizes = [16, 8], strides = [1, 1]} : vector<32x8xf32> to vector<16x8xf32>
    %cst = arith.constant dense<0.000000e+00> : vector<16x8xf32>
    %31 = tpu.matmul %29, %30, %cst {dimension_numbers = #tpu.dot_dimension_numbers<[1], [0], [0], [1], [0, 0, 1, 1], [], []>} : vector<16x16xf32>, vector<16x8xf32>, vector<16x8xf32> -> vector<16x8xf32>
    %c1_12 = arith.constant 1 : index
    %c0_13 = arith.constant 0 : index
    %c0_14 = arith.constant 0 : index
    %32 = vector.load %arg1[%c1_12, %c0_13, %c0_14] : memref<2x16x16xf32, #tpu.memory_space<vmem>>, vector<1x16x16xf32>
    %33 = vector.shape_cast %32 : vector<1x16x16xf32> to vector<16x16xf32>
    %34 = vector.extract_strided_slice %25 {offsets = [16, 0], sizes = [16, 8], strides = [1, 1]} : vector<32x8xf32> to vector<16x8xf32>
    %cst_15 = arith.constant dense<0.000000e+00> : vector<16x8xf32>
    %35 = tpu.matmul %33, %34, %cst_15 {dimension_numbers = #tpu.dot_dimension_numbers<[1], [0], [0], [1], [0, 0, 1, 1], [], []>} : vector<16x16xf32>, vector<16x8xf32>, vector<16x8xf32> -> vector<16x8xf32>
    %36 = tpu.concatenate %31, %35 in 0 : vector<16x8xf32>, vector<16x8xf32> -> vector<32x8xf32>
    %cst_16 = arith.constant dense<0.000000e+00> : vector<32x16xf32>
    %37 = tpu.matmul %36, %26, %cst_16 {dimension_numbers = #tpu.dot_dimension_numbers<[1], [0], [0], [1], [0, 0, 1, 1], [], []>} : vector<32x8xf32>, vector<8x16xf32>, vector<32x16xf32> -> vector<32x16xf32>
    %38 = vector.broadcast %27 : vector<1x16xf32> to vector<32x16xf32>
    %39 = arith.addf %37, %38 : vector<32x16xf32>
    %40 = arith.mulf %39, %39 : vector<32x16xf32>
    %cst_17 = arith.constant dense<0.000000e+00> : vector<32xf32>
    %41 = vector.multi_reduction <add>, %40, %cst_17 [1] : vector<32x16xf32> to vector<32xf32>
    %42 = vector.shape_cast %41 : vector<32xf32> to vector<32x1xf32>
    %cst_18 = arith.constant 1.000000e-24 : f32
    %43 = vector.broadcast %cst_18 : f32 to vector<32x1xf32>
    %44 = arith.maximumf %42, %43 : vector<32x1xf32>
    %45 = math.rsqrt %44 : vector<32x1xf32>
    %46 = vector.broadcast %45 : vector<32x1xf32> to vector<32x16xf32>
    %47 = arith.mulf %39, %46 : vector<32x16xf32>
    %cst_19 = arith.constant 0.000000e+00 : f32
    %48 = vector.broadcast %cst_19 : f32 to vector<32x16xf32>
    %49 = arith.maximumf %47, %48 : vector<32x16xf32>
    %50 = vector.extract_strided_slice %49 {offsets = [0, 0], sizes = [16, 16], strides = [1, 1]} : vector<32x16xf32> to vector<16x16xf32>
    %cst_20 = arith.constant dense<0.000000e+00> : vector<16xf32>
    %51 = vector.multi_reduction <add>, %50, %cst_20 [1] : vector<16x16xf32> to vector<16xf32>
    %52 = vector.shape_cast %51 : vector<16xf32> to vector<16x1xf32>
    %53 = arith.mulf %50, %50 : vector<16x16xf32>
    %cst_21 = arith.constant dense<0.000000e+00> : vector<16xf32>
    %54 = vector.multi_reduction <add>, %53, %cst_21 [1] : vector<16x16xf32> to vector<16xf32>
    %55 = vector.shape_cast %54 : vector<16xf32> to vector<16x1xf32>
    %56 = vector.extract_strided_slice %49 {offsets = [16, 0], sizes = [16, 16], strides = [1, 1]} : vector<32x16xf32> to vector<16x16xf32>
    %cst_22 = arith.constant dense<0.000000e+00> : vector<16xf32>
    %57 = vector.multi_reduction <add>, %56, %cst_22 [1] : vector<16x16xf32> to vector<16xf32>
    %58 = vector.shape_cast %57 : vector<16xf32> to vector<16x1xf32>
    %59 = arith.mulf %56, %56 : vector<16x16xf32>
    %cst_23 = arith.constant dense<0.000000e+00> : vector<16xf32>
    %60 = vector.multi_reduction <add>, %59, %cst_23 [1] : vector<16x16xf32> to vector<16xf32>
    %61 = vector.shape_cast %60 : vector<16xf32> to vector<16x1xf32>
    %62 = arith.addf %52, %58 : vector<16x1xf32>
    %63 = arith.addf %55, %61 : vector<16x1xf32>
    %cst_24 = arith.constant 3.200000e+01 : f32
    %64 = vector.broadcast %cst_24 : f32 to vector<16x1xf32>
    %65 = arith.divf %62, %64 : vector<16x1xf32>
    %cst_25 = arith.constant 3.200000e+01 : f32
    %66 = vector.broadcast %cst_25 : f32 to vector<16x1xf32>
    %67 = arith.divf %63, %66 : vector<16x1xf32>
    %68 = arith.mulf %65, %65 : vector<16x1xf32>
    %69 = arith.subf %67, %68 : vector<16x1xf32>
    %cst_26 = arith.constant 0.000000e+00 : f32
    %70 = vector.broadcast %cst_26 : f32 to vector<16x1xf32>
    %71 = arith.maximumf %69, %70 : vector<16x1xf32>
    %cst_27 = arith.constant 9.99999974E-6 : f32
    %72 = vector.broadcast %cst_27 : f32 to vector<16x1xf32>
    %73 = arith.addf %71, %72 : vector<16x1xf32>
    %74 = math.rsqrt %73 : vector<16x1xf32>
    %75 = tpu.concatenate %65, %65 in 0 : vector<16x1xf32>, vector<16x1xf32> -> vector<32x1xf32>
    %76 = tpu.concatenate %74, %74 in 0 : vector<16x1xf32>, vector<16x1xf32> -> vector<32x1xf32>
    %77 = vector.broadcast %75 : vector<32x1xf32> to vector<32x16xf32>
    %78 = arith.subf %49, %77 : vector<32x16xf32>
    %79 = vector.broadcast %76 : vector<32x1xf32> to vector<32x16xf32>
    %80 = arith.mulf %78, %79 : vector<32x16xf32>
    %81 = vector.broadcast %11 : vector<32x1xf32> to vector<32x16xf32>
    %82 = arith.mulf %80, %81 : vector<32x16xf32>
    %83 = vector.extract_strided_slice %82 {offsets = [0, 0], sizes = [16, 16], strides = [1, 1]} : vector<32x16xf32> to vector<16x16xf32>
    %cst_28 = arith.constant dense<0xFF800000> : vector<16xf32>
    %84 = vector.multi_reduction <maximumf>, %83, %cst_28 [0] : vector<16x16xf32> to vector<16xf32>
    %85 = vector.shape_cast %84 : vector<16xf32> to vector<1x16xf32>
    %c0_29 = arith.constant 0 : index
    %c0_30 = arith.constant 0 : index
    %c0_31 = arith.constant 0 : index
    %86 = vector.load %arg3[%c0_29, %c0_30, %c0_31] : memref<2x16x4xf32, #tpu.memory_space<vmem>>, vector<1x16x4xf32>
    %87 = vector.shape_cast %86 : vector<1x16x4xf32> to vector<16x4xf32>
    %cst_32 = arith.constant dense<0.000000e+00> : vector<4x16xf32>
    %88 = tpu.matmul %87, %83, %cst_32 {dimension_numbers = #tpu.dot_dimension_numbers<[0], [0], [1], [1], [0, 1, 1, 1], [], []>} : vector<16x4xf32>, vector<16x16xf32>, vector<4x16xf32> -> vector<4x16xf32>
    %89 = vector.extract_strided_slice %82 {offsets = [16, 0], sizes = [16, 16], strides = [1, 1]} : vector<32x16xf32> to vector<16x16xf32>
    %cst_33 = arith.constant dense<0xFF800000> : vector<16xf32>
    %90 = vector.multi_reduction <maximumf>, %89, %cst_33 [0] : vector<16x16xf32> to vector<16xf32>
    %91 = vector.shape_cast %90 : vector<16xf32> to vector<1x16xf32>
    %c1_34 = arith.constant 1 : index
    %c0_35 = arith.constant 0 : index
    %c0_36 = arith.constant 0 : index
    %92 = vector.load %arg3[%c1_34, %c0_35, %c0_36] : memref<2x16x4xf32, #tpu.memory_space<vmem>>, vector<1x16x4xf32>
    %93 = vector.shape_cast %92 : vector<1x16x4xf32> to vector<16x4xf32>
    %cst_37 = arith.constant dense<0.000000e+00> : vector<4x16xf32>
    %94 = tpu.matmul %93, %89, %cst_37 {dimension_numbers = #tpu.dot_dimension_numbers<[0], [0], [1], [1], [0, 1, 1, 1], [], []>} : vector<16x4xf32>, vector<16x16xf32>, vector<4x16xf32> -> vector<4x16xf32>
    %95 = vector.broadcast %16 : vector<2x1xf32> to vector<2x16xf32>
    %96 = vector.broadcast %85 : vector<1x16xf32> to vector<2x16xf32>
    %97 = arith.mulf %95, %96 : vector<2x16xf32>
    %98 = vector.broadcast %20 : vector<2x1xf32> to vector<2x16xf32>
    %99 = vector.broadcast %91 : vector<1x16xf32> to vector<2x16xf32>
    %100 = arith.mulf %98, %99 : vector<2x16xf32>
    %101 = arith.addf %97, %100 : vector<2x16xf32>
    %c16 = arith.constant 16 : index
    %c0_38 = arith.constant 0 : index
    %102 = vector.load %arg4[%c16, %c0_38] : memref<336x128xf32, #tpu.memory_space<vmem>>, vector<16x16xf32>
    %c32 = arith.constant 32 : index
    %c0_39 = arith.constant 0 : index
    %103 = vector.load %arg4[%c32, %c0_39] : memref<336x128xf32, #tpu.memory_space<vmem>>, vector<1x16xf32>
    %c0_40 = arith.constant 0 : index
    %c0_41 = arith.constant 0 : index
    %c0_42 = arith.constant 0 : index
    %104 = vector.load %arg1[%c0_40, %c0_41, %c0_42] : memref<2x16x16xf32, #tpu.memory_space<vmem>>, vector<1x16x16xf32>
    %105 = vector.shape_cast %104 : vector<1x16x16xf32> to vector<16x16xf32>
    %106 = vector.extract_strided_slice %80 {offsets = [0, 0], sizes = [16, 16], strides = [1, 1]} : vector<32x16xf32> to vector<16x16xf32>
    %cst_43 = arith.constant dense<0.000000e+00> : vector<16x16xf32>
    %107 = tpu.matmul %105, %106, %cst_43 {dimension_numbers = #tpu.dot_dimension_numbers<[1], [0], [0], [1], [0, 0, 1, 1], [], []>} : vector<16x16xf32>, vector<16x16xf32>, vector<16x16xf32> -> vector<16x16xf32>
    %c1_44 = arith.constant 1 : index
    %c0_45 = arith.constant 0 : index
    %c0_46 = arith.constant 0 : index
    %108 = vector.load %arg1[%c1_44, %c0_45, %c0_46] : memref<2x16x16xf32, #tpu.memory_space<vmem>>, vector<1x16x16xf32>
    %109 = vector.shape_cast %108 : vector<1x16x16xf32> to vector<16x16xf32>
    %110 = vector.extract_strided_slice %80 {offsets = [16, 0], sizes = [16, 16], strides = [1, 1]} : vector<32x16xf32> to vector<16x16xf32>
    %cst_47 = arith.constant dense<0.000000e+00> : vector<16x16xf32>
    %111 = tpu.matmul %109, %110, %cst_47 {dimension_numbers = #tpu.dot_dimension_numbers<[1], [0], [0], [1], [0, 0, 1, 1], [], []>} : vector<16x16xf32>, vector<16x16xf32>, vector<16x16xf32> -> vector<16x16xf32>
    %112 = tpu.concatenate %107, %111 in 0 : vector<16x16xf32>, vector<16x16xf32> -> vector<32x16xf32>
    %cst_48 = arith.constant dense<0.000000e+00> : vector<32x16xf32>
    %113 = tpu.matmul %112, %102, %cst_48 {dimension_numbers = #tpu.dot_dimension_numbers<[1], [0], [0], [1], [0, 0, 1, 1], [], []>} : vector<32x16xf32>, vector<16x16xf32>, vector<32x16xf32> -> vector<32x16xf32>
    %114 = vector.broadcast %103 : vector<1x16xf32> to vector<32x16xf32>
    %115 = arith.addf %113, %114 : vector<32x16xf32>
    %116 = arith.mulf %115, %115 : vector<32x16xf32>
    %cst_49 = arith.constant dense<0.000000e+00> : vector<32xf32>
    %117 = vector.multi_reduction <add>, %116, %cst_49 [1] : vector<32x16xf32> to vector<32xf32>
    %118 = vector.shape_cast %117 : vector<32xf32> to vector<32x1xf32>
    %cst_50 = arith.constant 1.000000e-24 : f32
    %119 = vector.broadcast %cst_50 : f32 to vector<32x1xf32>
    %120 = arith.maximumf %118, %119 : vector<32x1xf32>
    %121 = math.rsqrt %120 : vector<32x1xf32>
    %122 = vector.broadcast %121 : vector<32x1xf32> to vector<32x16xf32>
    %123 = arith.mulf %115, %122 : vector<32x16xf32>
    %cst_51 = arith.constant 0.000000e+00 : f32
    %124 = vector.broadcast %cst_51 : f32 to vector<32x16xf32>
    %125 = arith.maximumf %123, %124 : vector<32x16xf32>
    %126 = vector.extract_strided_slice %125 {offsets = [0, 0], sizes = [16, 16], strides = [1, 1]} : vector<32x16xf32> to vector<16x16xf32>
    %cst_52 = arith.constant dense<0.000000e+00> : vector<16xf32>
    %127 = vector.multi_reduction <add>, %126, %cst_52 [1] : vector<16x16xf32> to vector<16xf32>
    %128 = vector.shape_cast %127 : vector<16xf32> to vector<16x1xf32>
    %129 = arith.mulf %126, %126 : vector<16x16xf32>
    %cst_53 = arith.constant dense<0.000000e+00> : vector<16xf32>
    %130 = vector.multi_reduction <add>, %129, %cst_53 [1] : vector<16x16xf32> to vector<16xf32>
    %131 = vector.shape_cast %130 : vector<16xf32> to vector<16x1xf32>
    %132 = vector.extract_strided_slice %125 {offsets = [16, 0], sizes = [16, 16], strides = [1, 1]} : vector<32x16xf32> to vector<16x16xf32>
    %cst_54 = arith.constant dense<0.000000e+00> : vector<16xf32>
    %133 = vector.multi_reduction <add>, %132, %cst_54 [1] : vector<16x16xf32> to vector<16xf32>
    %134 = vector.shape_cast %133 : vector<16xf32> to vector<16x1xf32>
    %135 = arith.mulf %132, %132 : vector<16x16xf32>
    %cst_55 = arith.constant dense<0.000000e+00> : vector<16xf32>
    %136 = vector.multi_reduction <add>, %135, %cst_55 [1] : vector<16x16xf32> to vector<16xf32>
    %137 = vector.shape_cast %136 : vector<16xf32> to vector<16x1xf32>
    %138 = arith.addf %128, %134 : vector<16x1xf32>
    %139 = arith.addf %131, %137 : vector<16x1xf32>
    %cst_56 = arith.constant 3.200000e+01 : f32
    %140 = vector.broadcast %cst_56 : f32 to vector<16x1xf32>
    %141 = arith.divf %138, %140 : vector<16x1xf32>
    %cst_57 = arith.constant 3.200000e+01 : f32
    %142 = vector.broadcast %cst_57 : f32 to vector<16x1xf32>
    %143 = arith.divf %139, %142 : vector<16x1xf32>
    %144 = arith.mulf %141, %141 : vector<16x1xf32>
    %145 = arith.subf %143, %144 : vector<16x1xf32>
    %cst_58 = arith.constant 0.000000e+00 : f32
    %146 = vector.broadcast %cst_58 : f32 to vector<16x1xf32>
    %147 = arith.maximumf %145, %146 : vector<16x1xf32>
    %cst_59 = arith.constant 9.99999974E-6 : f32
    %148 = vector.broadcast %cst_59 : f32 to vector<16x1xf32>
    %149 = arith.addf %147, %148 : vector<16x1xf32>
    %150 = math.rsqrt %149 : vector<16x1xf32>
    %151 = tpu.concatenate %141, %141 in 0 : vector<16x1xf32>, vector<16x1xf32> -> vector<32x1xf32>
    %152 = tpu.concatenate %150, %150 in 0 : vector<16x1xf32>, vector<16x1xf32> -> vector<32x1xf32>
    %153 = vector.broadcast %151 : vector<32x1xf32> to vector<32x16xf32>
    %154 = arith.subf %125, %153 : vector<32x16xf32>
    %155 = vector.broadcast %152 : vector<32x1xf32> to vector<32x16xf32>
    %156 = arith.mulf %154, %155 : vector<32x16xf32>
    %157 = vector.broadcast %11 : vector<32x1xf32> to vector<32x16xf32>
    %158 = arith.mulf %156, %157 : vector<32x16xf32>
    %159 = vector.extract_strided_slice %158 {offsets = [0, 0], sizes = [16, 16], strides = [1, 1]} : vector<32x16xf32> to vector<16x16xf32>
    %cst_60 = arith.constant dense<0xFF800000> : vector<16xf32>
    %160 = vector.multi_reduction <maximumf>, %159, %cst_60 [0] : vector<16x16xf32> to vector<16xf32>
    %161 = vector.shape_cast %160 : vector<16xf32> to vector<1x16xf32>
    %c0_61 = arith.constant 0 : index
    %c0_62 = arith.constant 0 : index
    %c0_63 = arith.constant 0 : index
    %162 = vector.load %arg3[%c0_61, %c0_62, %c0_63] : memref<2x16x4xf32, #tpu.memory_space<vmem>>, vector<1x16x4xf32>
    %163 = vector.shape_cast %162 : vector<1x16x4xf32> to vector<16x4xf32>
    %cst_64 = arith.constant dense<0.000000e+00> : vector<4x16xf32>
    %164 = tpu.matmul %163, %159, %cst_64 {dimension_numbers = #tpu.dot_dimension_numbers<[0], [0], [1], [1], [0, 1, 1, 1], [], []>} : vector<16x4xf32>, vector<16x16xf32>, vector<4x16xf32> -> vector<4x16xf32>
    %165 = vector.extract_strided_slice %158 {offsets = [16, 0], sizes = [16, 16], strides = [1, 1]} : vector<32x16xf32> to vector<16x16xf32>
    %cst_65 = arith.constant dense<0xFF800000> : vector<16xf32>
    %166 = vector.multi_reduction <maximumf>, %165, %cst_65 [0] : vector<16x16xf32> to vector<16xf32>
    %167 = vector.shape_cast %166 : vector<16xf32> to vector<1x16xf32>
    %c1_66 = arith.constant 1 : index
    %c0_67 = arith.constant 0 : index
    %c0_68 = arith.constant 0 : index
    %168 = vector.load %arg3[%c1_66, %c0_67, %c0_68] : memref<2x16x4xf32, #tpu.memory_space<vmem>>, vector<1x16x4xf32>
    %169 = vector.shape_cast %168 : vector<1x16x4xf32> to vector<16x4xf32>
    %cst_69 = arith.constant dense<0.000000e+00> : vector<4x16xf32>
    %170 = tpu.matmul %169, %165, %cst_69 {dimension_numbers = #tpu.dot_dimension_numbers<[0], [0], [1], [1], [0, 1, 1, 1], [], []>} : vector<16x4xf32>, vector<16x16xf32>, vector<4x16xf32> -> vector<4x16xf32>
    %171 = vector.broadcast %16 : vector<2x1xf32> to vector<2x16xf32>
    %172 = vector.broadcast %161 : vector<1x16xf32> to vector<2x16xf32>
    %173 = arith.mulf %171, %172 : vector<2x16xf32>
    %174 = vector.broadcast %20 : vector<2x1xf32> to vector<2x16xf32>
    %175 = vector.broadcast %167 : vector<1x16xf32> to vector<2x16xf32>
    %176 = arith.mulf %174, %175 : vector<2x16xf32>
    %177 = arith.addf %173, %176 : vector<2x16xf32>
    %c40 = arith.constant 40 : index
    %c0_70 = arith.constant 0 : index
    %178 = vector.load %arg4[%c40, %c0_70] : memref<336x128xf32, #tpu.memory_space<vmem>>, vector<16x16xf32>
    %c56 = arith.constant 56 : index
    %c0_71 = arith.constant 0 : index
    %179 = vector.load %arg4[%c56, %c0_71] : memref<336x128xf32, #tpu.memory_space<vmem>>, vector<1x16xf32>
    %c0_72 = arith.constant 0 : index
    %c0_73 = arith.constant 0 : index
    %c0_74 = arith.constant 0 : index
    %180 = vector.load %arg1[%c0_72, %c0_73, %c0_74] : memref<2x16x16xf32, #tpu.memory_space<vmem>>, vector<1x16x16xf32>
    %181 = vector.shape_cast %180 : vector<1x16x16xf32> to vector<16x16xf32>
    %182 = vector.extract_strided_slice %156 {offsets = [0, 0], sizes = [16, 16], strides = [1, 1]} : vector<32x16xf32> to vector<16x16xf32>
    %cst_75 = arith.constant dense<0.000000e+00> : vector<16x16xf32>
    %183 = tpu.matmul %181, %182, %cst_75 {dimension_numbers = #tpu.dot_dimension_numbers<[1], [0], [0], [1], [0, 0, 1, 1], [], []>} : vector<16x16xf32>, vector<16x16xf32>, vector<16x16xf32> -> vector<16x16xf32>
    %c1_76 = arith.constant 1 : index
    %c0_77 = arith.constant 0 : index
    %c0_78 = arith.constant 0 : index
    %184 = vector.load %arg1[%c1_76, %c0_77, %c0_78] : memref<2x16x16xf32, #tpu.memory_space<vmem>>, vector<1x16x16xf32>
    %185 = vector.shape_cast %184 : vector<1x16x16xf32> to vector<16x16xf32>
    %186 = vector.extract_strided_slice %156 {offsets = [16, 0], sizes = [16, 16], strides = [1, 1]} : vector<32x16xf32> to vector<16x16xf32>
    %cst_79 = arith.constant dense<0.000000e+00> : vector<16x16xf32>
    %187 = tpu.matmul %185, %186, %cst_79 {dimension_numbers = #tpu.dot_dimension_numbers<[1], [0], [0], [1], [0, 0, 1, 1], [], []>} : vector<16x16xf32>, vector<16x16xf32>, vector<16x16xf32> -> vector<16x16xf32>
    %188 = tpu.concatenate %183, %187 in 0 : vector<16x16xf32>, vector<16x16xf32> -> vector<32x16xf32>
    %cst_80 = arith.constant dense<0.000000e+00> : vector<32x16xf32>
    %189 = tpu.matmul %188, %178, %cst_80 {dimension_numbers = #tpu.dot_dimension_numbers<[1], [0], [0], [1], [0, 0, 1, 1], [], []>} : vector<32x16xf32>, vector<16x16xf32>, vector<32x16xf32> -> vector<32x16xf32>
    %190 = vector.broadcast %179 : vector<1x16xf32> to vector<32x16xf32>
    %191 = arith.addf %189, %190 : vector<32x16xf32>
    %192 = arith.mulf %191, %191 : vector<32x16xf32>
    %cst_81 = arith.constant dense<0.000000e+00> : vector<32xf32>
    %193 = vector.multi_reduction <add>, %192, %cst_81 [1] : vector<32x16xf32> to vector<32xf32>
    %194 = vector.shape_cast %193 : vector<32xf32> to vector<32x1xf32>
    %cst_82 = arith.constant 1.000000e-24 : f32
    %195 = vector.broadcast %cst_82 : f32 to vector<32x1xf32>
    %196 = arith.maximumf %194, %195 : vector<32x1xf32>
    %197 = math.rsqrt %196 : vector<32x1xf32>
    %198 = vector.broadcast %197 : vector<32x1xf32> to vector<32x16xf32>
    %199 = arith.mulf %191, %198 : vector<32x16xf32>
    %200 = vector.broadcast %11 : vector<32x1xf32> to vector<32x16xf32>
    %201 = arith.mulf %199, %200 : vector<32x16xf32>
    %202 = vector.extract_strided_slice %201 {offsets = [0, 0], sizes = [16, 16], strides = [1, 1]} : vector<32x16xf32> to vector<16x16xf32>
    %cst_83 = arith.constant dense<0xFF800000> : vector<16xf32>
    %203 = vector.multi_reduction <maximumf>, %202, %cst_83 [0] : vector<16x16xf32> to vector<16xf32>
    %204 = vector.shape_cast %203 : vector<16xf32> to vector<1x16xf32>
    %c0_84 = arith.constant 0 : index
    %c0_85 = arith.constant 0 : index
    %c0_86 = arith.constant 0 : index
    %205 = vector.load %arg3[%c0_84, %c0_85, %c0_86] : memref<2x16x4xf32, #tpu.memory_space<vmem>>, vector<1x16x4xf32>
    %206 = vector.shape_cast %205 : vector<1x16x4xf32> to vector<16x4xf32>
    %cst_87 = arith.constant dense<0.000000e+00> : vector<4x16xf32>
    %207 = tpu.matmul %206, %202, %cst_87 {dimension_numbers = #tpu.dot_dimension_numbers<[0], [0], [1], [1], [0, 1, 1, 1], [], []>} : vector<16x4xf32>, vector<16x16xf32>, vector<4x16xf32> -> vector<4x16xf32>
    %208 = vector.extract_strided_slice %201 {offsets = [16, 0], sizes = [16, 16], strides = [1, 1]} : vector<32x16xf32> to vector<16x16xf32>
    %cst_88 = arith.constant dense<0xFF800000> : vector<16xf32>
    %209 = vector.multi_reduction <maximumf>, %208, %cst_88 [0] : vector<16x16xf32> to vector<16xf32>
    %210 = vector.shape_cast %209 : vector<16xf32> to vector<1x16xf32>
    %c1_89 = arith.constant 1 : index
    %c0_90 = arith.constant 0 : index
    %c0_91 = arith.constant 0 : index
    %211 = vector.load %arg3[%c1_89, %c0_90, %c0_91] : memref<2x16x4xf32, #tpu.memory_space<vmem>>, vector<1x16x4xf32>
    %212 = vector.shape_cast %211 : vector<1x16x4xf32> to vector<16x4xf32>
    %cst_92 = arith.constant dense<0.000000e+00> : vector<4x16xf32>
    %213 = tpu.matmul %212, %208, %cst_92 {dimension_numbers = #tpu.dot_dimension_numbers<[0], [0], [1], [1], [0, 1, 1, 1], [], []>} : vector<16x4xf32>, vector<16x16xf32>, vector<4x16xf32> -> vector<4x16xf32>
    %214 = vector.broadcast %16 : vector<2x1xf32> to vector<2x16xf32>
    %215 = vector.broadcast %204 : vector<1x16xf32> to vector<2x16xf32>
    %216 = arith.mulf %214, %215 : vector<2x16xf32>
    %217 = vector.broadcast %20 : vector<2x1xf32> to vector<2x16xf32>
    %218 = vector.broadcast %210 : vector<1x16xf32> to vector<2x16xf32>
    %219 = arith.mulf %217, %218 : vector<2x16xf32>
    %220 = arith.addf %216, %219 : vector<2x16xf32>
    %c0_93 = arith.constant 0 : index
    %c0_94 = arith.constant 0 : index
    %c0_95 = arith.constant 0 : index
    %221 = vector.load %arg3[%c0_93, %c0_94, %c0_95] : memref<2x16x4xf32, #tpu.memory_space<vmem>>, vector<1x16x4xf32>
    %222 = vector.shape_cast %221 : vector<1x16x4xf32> to vector<16x4xf32>
    %c0_96 = arith.constant 0 : index
    %c0_97 = arith.constant 0 : index
    %c0_98 = arith.constant 0 : index
    %223 = vector.load %arg1[%c0_96, %c0_97, %c0_98] : memref<2x16x16xf32, #tpu.memory_space<vmem>>, vector<1x16x16xf32>
    %224 = vector.shape_cast %223 : vector<1x16x16xf32> to vector<16x16xf32>
    %cst_99 = arith.constant dense<0.000000e+00> : vector<4x16xf32>
    %225 = tpu.matmul %222, %224, %cst_99 {dimension_numbers = #tpu.dot_dimension_numbers<[0], [0], [1], [1], [0, 1, 1, 1], [], []>} : vector<16x4xf32>, vector<16x16xf32>, vector<4x16xf32> -> vector<4x16xf32>
    %c0_100 = arith.constant 0 : index
    %c0_101 = arith.constant 0 : index
    %c0_102 = arith.constant 0 : index
    %226 = vector.load %arg3[%c0_100, %c0_101, %c0_102] : memref<2x16x4xf32, #tpu.memory_space<vmem>>, vector<1x16x4xf32>
    %227 = vector.shape_cast %226 : vector<1x16x4xf32> to vector<16x4xf32>
    %cst_103 = arith.constant dense<0.000000e+00> : vector<4x4xf32>
    %228 = tpu.matmul %225, %227, %cst_103 {dimension_numbers = #tpu.dot_dimension_numbers<[1], [0], [0], [1], [0, 0, 1, 1], [], []>} : vector<4x16xf32>, vector<16x4xf32>, vector<4x4xf32> -> vector<4x4xf32>
    %c1_104 = arith.constant 1 : index
    %c0_105 = arith.constant 0 : index
    %c0_106 = arith.constant 0 : index
    %229 = vector.load %arg3[%c1_104, %c0_105, %c0_106] : memref<2x16x4xf32, #tpu.memory_space<vmem>>, vector<1x16x4xf32>
    %230 = vector.shape_cast %229 : vector<1x16x4xf32> to vector<16x4xf32>
    %c1_107 = arith.constant 1 : index
    %c0_108 = arith.constant 0 : index
    %c0_109 = arith.constant 0 : index
    %231 = vector.load %arg1[%c1_107, %c0_108, %c0_109] : memref<2x16x16xf32, #tpu.memory_space<vmem>>, vector<1x16x16xf32>
    %232 = vector.shape_cast %231 : vector<1x16x16xf32> to vector<16x16xf32>
    %cst_110 = arith.constant dense<0.000000e+00> : vector<4x16xf32>
    %233 = tpu.matmul %230, %232, %cst_110 {dimension_numbers = #tpu.dot_dimension_numbers<[0], [0], [1], [1], [0, 1, 1, 1], [], []>} : vector<16x4xf32>, vector<16x16xf32>, vector<4x16xf32> -> vector<4x16xf32>
    %c1_111 = arith.constant 1 : index
    %c0_112 = arith.constant 0 : index
    %c0_113 = arith.constant 0 : index
    %234 = vector.load %arg3[%c1_111, %c0_112, %c0_113] : memref<2x16x4xf32, #tpu.memory_space<vmem>>, vector<1x16x4xf32>
    %235 = vector.shape_cast %234 : vector<1x16x4xf32> to vector<16x4xf32>
    %cst_114 = arith.constant dense<0.000000e+00> : vector<4x4xf32>
    %236 = tpu.matmul %233, %235, %cst_114 {dimension_numbers = #tpu.dot_dimension_numbers<[1], [0], [0], [1], [0, 0, 1, 1], [], []>} : vector<4x16xf32>, vector<16x4xf32>, vector<4x4xf32> -> vector<4x4xf32>
    %c64 = arith.constant 64 : index
    %c0_115 = arith.constant 0 : index
    %237 = vector.load %arg4[%c64, %c0_115] : memref<336x128xf32, #tpu.memory_space<vmem>>, vector<48x16xf32>
    %c112 = arith.constant 112 : index
    %c0_116 = arith.constant 0 : index
    %238 = vector.load %arg4[%c112, %c0_116] : memref<336x128xf32, #tpu.memory_space<vmem>>, vector<1x16xf32>
    %239 = vector.extract_strided_slice %237 {offsets = [0, 0], sizes = [16, 16], strides = [1, 1]} : vector<48x16xf32> to vector<16x16xf32>
    %cst_117 = arith.constant dense<0.000000e+00> : vector<4x16xf32>
    %240 = tpu.matmul %88, %239, %cst_117 {dimension_numbers = #tpu.dot_dimension_numbers<[1], [0], [0], [1], [0, 0, 1, 1], [], []>} : vector<4x16xf32>, vector<16x16xf32>, vector<4x16xf32> -> vector<4x16xf32>
    %241 = vector.extract_strided_slice %237 {offsets = [16, 0], sizes = [16, 16], strides = [1, 1]} : vector<48x16xf32> to vector<16x16xf32>
    %cst_118 = arith.constant dense<0.000000e+00> : vector<4x16xf32>
    %242 = tpu.matmul %164, %241, %cst_118 {dimension_numbers = #tpu.dot_dimension_numbers<[1], [0], [0], [1], [0, 0, 1, 1], [], []>} : vector<4x16xf32>, vector<16x16xf32>, vector<4x16xf32> -> vector<4x16xf32>
    %243 = arith.addf %240, %242 : vector<4x16xf32>
    %244 = vector.extract_strided_slice %237 {offsets = [32, 0], sizes = [16, 16], strides = [1, 1]} : vector<48x16xf32> to vector<16x16xf32>
    %cst_119 = arith.constant dense<0.000000e+00> : vector<4x16xf32>
    %245 = tpu.matmul %207, %244, %cst_119 {dimension_numbers = #tpu.dot_dimension_numbers<[1], [0], [0], [1], [0, 0, 1, 1], [], []>} : vector<4x16xf32>, vector<16x16xf32>, vector<4x16xf32> -> vector<4x16xf32>
    %246 = arith.addf %243, %245 : vector<4x16xf32>
    %cst_120 = arith.constant dense<0.000000e+00> : vector<4x16xf32>
    %247 = tpu.matmul %228, %246, %cst_120 {dimension_numbers = #tpu.dot_dimension_numbers<[1], [0], [0], [1], [0, 0, 1, 1], [], []>} : vector<4x4xf32>, vector<4x16xf32>, vector<4x16xf32> -> vector<4x16xf32>
    %248 = vector.broadcast %238 : vector<1x16xf32> to vector<4x16xf32>
    %249 = arith.addf %247, %248 : vector<4x16xf32>
    %250 = arith.mulf %249, %249 : vector<4x16xf32>
    %cst_121 = arith.constant dense<0.000000e+00> : vector<4xf32>
    %251 = vector.multi_reduction <add>, %250, %cst_121 [1] : vector<4x16xf32> to vector<4xf32>
    %252 = vector.shape_cast %251 : vector<4xf32> to vector<4x1xf32>
    %cst_122 = arith.constant 1.000000e-24 : f32
    %253 = vector.broadcast %cst_122 : f32 to vector<4x1xf32>
    %254 = arith.maximumf %252, %253 : vector<4x1xf32>
    %255 = math.rsqrt %254 : vector<4x1xf32>
    %256 = vector.broadcast %255 : vector<4x1xf32> to vector<4x16xf32>
    %257 = arith.mulf %249, %256 : vector<4x16xf32>
    %cst_123 = arith.constant 0.000000e+00 : f32
    %258 = vector.broadcast %cst_123 : f32 to vector<4x16xf32>
    %259 = arith.maximumf %257, %258 : vector<4x16xf32>
    %260 = vector.extract_strided_slice %237 {offsets = [0, 0], sizes = [16, 16], strides = [1, 1]} : vector<48x16xf32> to vector<16x16xf32>
    %cst_124 = arith.constant dense<0.000000e+00> : vector<4x16xf32>
    %261 = tpu.matmul %94, %260, %cst_124 {dimension_numbers = #tpu.dot_dimension_numbers<[1], [0], [0], [1], [0, 0, 1, 1], [], []>} : vector<4x16xf32>, vector<16x16xf32>, vector<4x16xf32> -> vector<4x16xf32>
    %262 = vector.extract_strided_slice %237 {offsets = [16, 0], sizes = [16, 16], strides = [1, 1]} : vector<48x16xf32> to vector<16x16xf32>
    %cst_125 = arith.constant dense<0.000000e+00> : vector<4x16xf32>
    %263 = tpu.matmul %170, %262, %cst_125 {dimension_numbers = #tpu.dot_dimension_numbers<[1], [0], [0], [1], [0, 0, 1, 1], [], []>} : vector<4x16xf32>, vector<16x16xf32>, vector<4x16xf32> -> vector<4x16xf32>
    %264 = arith.addf %261, %263 : vector<4x16xf32>
    %265 = vector.extract_strided_slice %237 {offsets = [32, 0], sizes = [16, 16], strides = [1, 1]} : vector<48x16xf32> to vector<16x16xf32>
    %cst_126 = arith.constant dense<0.000000e+00> : vector<4x16xf32>
    %266 = tpu.matmul %213, %265, %cst_126 {dimension_numbers = #tpu.dot_dimension_numbers<[1], [0], [0], [1], [0, 0, 1, 1], [], []>} : vector<4x16xf32>, vector<16x16xf32>, vector<4x16xf32> -> vector<4x16xf32>
    %267 = arith.addf %264, %266 : vector<4x16xf32>
    %cst_127 = arith.constant dense<0.000000e+00> : vector<4x16xf32>
    %268 = tpu.matmul %236, %267, %cst_127 {dimension_numbers = #tpu.dot_dimension_numbers<[1], [0], [0], [1], [0, 0, 1, 1], [], []>} : vector<4x4xf32>, vector<4x16xf32>, vector<4x16xf32> -> vector<4x16xf32>
    %269 = vector.broadcast %238 : vector<1x16xf32> to vector<4x16xf32>
    %270 = arith.addf %268, %269 : vector<4x16xf32>
    %271 = arith.mulf %270, %270 : vector<4x16xf32>
    %cst_128 = arith.constant dense<0.000000e+00> : vector<4xf32>
    %272 = vector.multi_reduction <add>, %271, %cst_128 [1] : vector<4x16xf32> to vector<4xf32>
    %273 = vector.shape_cast %272 : vector<4xf32> to vector<4x1xf32>
    %cst_129 = arith.constant 1.000000e-24 : f32
    %274 = vector.broadcast %cst_129 : f32 to vector<4x1xf32>
    %275 = arith.maximumf %273, %274 : vector<4x1xf32>
    %276 = math.rsqrt %275 : vector<4x1xf32>
    %277 = vector.broadcast %276 : vector<4x1xf32> to vector<4x16xf32>
    %278 = arith.mulf %270, %277 : vector<4x16xf32>
    %cst_130 = arith.constant 0.000000e+00 : f32
    %279 = vector.broadcast %cst_130 : f32 to vector<4x16xf32>
    %280 = arith.maximumf %278, %279 : vector<4x16xf32>
    %cst_131 = arith.constant dense<0.000000e+00> : vector<4xf32>
    %281 = vector.multi_reduction <add>, %259, %cst_131 [1] : vector<4x16xf32> to vector<4xf32>
    %282 = vector.shape_cast %281 : vector<4xf32> to vector<4x1xf32>
    %283 = arith.mulf %259, %259 : vector<4x16xf32>
    %cst_132 = arith.constant dense<0.000000e+00> : vector<4xf32>
    %284 = vector.multi_reduction <add>, %283, %cst_132 [1] : vector<4x16xf32> to vector<4xf32>
    %285 = vector.shape_cast %284 : vector<4xf32> to vector<4x1xf32>
    %cst_133 = arith.constant dense<0.000000e+00> : vector<4xf32>
    %286 = vector.multi_reduction <add>, %280, %cst_133 [1] : vector<4x16xf32> to vector<4xf32>
    %287 = vector.shape_cast %286 : vector<4xf32> to vector<4x1xf32>
    %288 = arith.mulf %280, %280 : vector<4x16xf32>
    %cst_134 = arith.constant dense<0.000000e+00> : vector<4xf32>
    %289 = vector.multi_reduction <add>, %288, %cst_134 [1] : vector<4x16xf32> to vector<4xf32>
    %290 = vector.shape_cast %289 : vector<4xf32> to vector<4x1xf32>
    %291 = arith.addf %282, %287 : vector<4x1xf32>
    %292 = arith.addf %285, %290 : vector<4x1xf32>
    %cst_135 = arith.constant 3.200000e+01 : f32
    %293 = vector.broadcast %cst_135 : f32 to vector<4x1xf32>
    %294 = arith.divf %291, %293 : vector<4x1xf32>
    %cst_136 = arith.constant 3.200000e+01 : f32
    %295 = vector.broadcast %cst_136 : f32 to vector<4x1xf32>
    %296 = arith.divf %292, %295 : vector<4x1xf32>
    %297 = arith.mulf %294, %294 : vector<4x1xf32>
    %298 = arith.subf %296, %297 : vector<4x1xf32>
    %cst_137 = arith.constant 0.000000e+00 : f32
    %299 = vector.broadcast %cst_137 : f32 to vector<4x1xf32>
    %300 = arith.maximumf %298, %299 : vector<4x1xf32>
    %cst_138 = arith.constant 9.99999974E-6 : f32
    %301 = vector.broadcast %cst_138 : f32 to vector<4x1xf32>
    %302 = arith.addf %300, %301 : vector<4x1xf32>
    %303 = math.rsqrt %302 : vector<4x1xf32>
    %304 = vector.broadcast %294 : vector<4x1xf32> to vector<4x16xf32>
    %305 = arith.subf %259, %304 : vector<4x16xf32>
    %306 = vector.broadcast %303 : vector<4x1xf32> to vector<4x16xf32>
    %307 = arith.mulf %305, %306 : vector<4x16xf32>
    %308 = vector.broadcast %294 : vector<4x1xf32> to vector<4x16xf32>
    %309 = arith.subf %280, %308 : vector<4x16xf32>
    %310 = vector.broadcast %303 : vector<4x1xf32> to vector<4x16xf32>
    %311 = arith.mulf %309, %310 : vector<4x16xf32>
    %cst_139 = arith.constant dense<0xFF800000> : vector<16xf32>
    %312 = vector.multi_reduction <maximumf>, %307, %cst_139 [0] : vector<4x16xf32> to vector<16xf32>
    %313 = vector.shape_cast %312 : vector<16xf32> to vector<1x16xf32>
    %cst_140 = arith.constant dense<0xFF800000> : vector<16xf32>
    %314 = vector.multi_reduction <maximumf>, %311, %cst_140 [0] : vector<4x16xf32> to vector<16xf32>
    %315 = vector.shape_cast %314 : vector<16xf32> to vector<1x16xf32>
    %316 = vector.broadcast %16 : vector<2x1xf32> to vector<2x16xf32>
    %317 = vector.broadcast %313 : vector<1x16xf32> to vector<2x16xf32>
    %318 = arith.mulf %316, %317 : vector<2x16xf32>
    %319 = vector.broadcast %20 : vector<2x1xf32> to vector<2x16xf32>
    %320 = vector.broadcast %315 : vector<1x16xf32> to vector<2x16xf32>
    %321 = arith.mulf %319, %320 : vector<2x16xf32>
    %322 = arith.addf %318, %321 : vector<2x16xf32>
    %c120 = arith.constant 120 : index
    %c0_141 = arith.constant 0 : index
    %323 = vector.load %arg4[%c120, %c0_141] : memref<336x128xf32, #tpu.memory_space<vmem>>, vector<16x16xf32>
    %c136 = arith.constant 136 : index
    %c0_142 = arith.constant 0 : index
    %324 = vector.load %arg4[%c136, %c0_142] : memref<336x128xf32, #tpu.memory_space<vmem>>, vector<1x16xf32>
    %cst_143 = arith.constant dense<0.000000e+00> : vector<4x16xf32>
    %325 = tpu.matmul %228, %307, %cst_143 {dimension_numbers = #tpu.dot_dimension_numbers<[1], [0], [0], [1], [0, 0, 1, 1], [], []>} : vector<4x4xf32>, vector<4x16xf32>, vector<4x16xf32> -> vector<4x16xf32>
    %cst_144 = arith.constant dense<0.000000e+00> : vector<4x16xf32>
    %326 = tpu.matmul %325, %323, %cst_144 {dimension_numbers = #tpu.dot_dimension_numbers<[1], [0], [0], [1], [0, 0, 1, 1], [], []>} : vector<4x16xf32>, vector<16x16xf32>, vector<4x16xf32> -> vector<4x16xf32>
    %327 = vector.broadcast %324 : vector<1x16xf32> to vector<4x16xf32>
    %328 = arith.addf %326, %327 : vector<4x16xf32>
    %329 = arith.mulf %328, %328 : vector<4x16xf32>
    %cst_145 = arith.constant dense<0.000000e+00> : vector<4xf32>
    %330 = vector.multi_reduction <add>, %329, %cst_145 [1] : vector<4x16xf32> to vector<4xf32>
    %331 = vector.shape_cast %330 : vector<4xf32> to vector<4x1xf32>
    %cst_146 = arith.constant 1.000000e-24 : f32
    %332 = vector.broadcast %cst_146 : f32 to vector<4x1xf32>
    %333 = arith.maximumf %331, %332 : vector<4x1xf32>
    %334 = math.rsqrt %333 : vector<4x1xf32>
    %335 = vector.broadcast %334 : vector<4x1xf32> to vector<4x16xf32>
    %336 = arith.mulf %328, %335 : vector<4x16xf32>
    %cst_147 = arith.constant 0.000000e+00 : f32
    %337 = vector.broadcast %cst_147 : f32 to vector<4x16xf32>
    %338 = arith.maximumf %336, %337 : vector<4x16xf32>
    %cst_148 = arith.constant dense<0.000000e+00> : vector<4x16xf32>
    %339 = tpu.matmul %236, %311, %cst_148 {dimension_numbers = #tpu.dot_dimension_numbers<[1], [0], [0], [1], [0, 0, 1, 1], [], []>} : vector<4x4xf32>, vector<4x16xf32>, vector<4x16xf32> -> vector<4x16xf32>
    %cst_149 = arith.constant dense<0.000000e+00> : vector<4x16xf32>
    %340 = tpu.matmul %339, %323, %cst_149 {dimension_numbers = #tpu.dot_dimension_numbers<[1], [0], [0], [1], [0, 0, 1, 1], [], []>} : vector<4x16xf32>, vector<16x16xf32>, vector<4x16xf32> -> vector<4x16xf32>
    %341 = vector.broadcast %324 : vector<1x16xf32> to vector<4x16xf32>
    %342 = arith.addf %340, %341 : vector<4x16xf32>
    %343 = arith.mulf %342, %342 : vector<4x16xf32>
    %cst_150 = arith.constant dense<0.000000e+00> : vector<4xf32>
    %344 = vector.multi_reduction <add>, %343, %cst_150 [1] : vector<4x16xf32> to vector<4xf32>
    %345 = vector.shape_cast %344 : vector<4xf32> to vector<4x1xf32>
    %cst_151 = arith.constant 1.000000e-24 : f32
    %346 = vector.broadcast %cst_151 : f32 to vector<4x1xf32>
    %347 = arith.maximumf %345, %346 : vector<4x1xf32>
    %348 = math.rsqrt %347 : vector<4x1xf32>
    %349 = vector.broadcast %348 : vector<4x1xf32> to vector<4x16xf32>
    %350 = arith.mulf %342, %349 : vector<4x16xf32>
    %cst_152 = arith.constant 0.000000e+00 : f32
    %351 = vector.broadcast %cst_152 : f32 to vector<4x16xf32>
    %352 = arith.maximumf %350, %351 : vector<4x16xf32>
    %cst_153 = arith.constant dense<0.000000e+00> : vector<4xf32>
    %353 = vector.multi_reduction <add>, %338, %cst_153 [1] : vector<4x16xf32> to vector<4xf32>
    %354 = vector.shape_cast %353 : vector<4xf32> to vector<4x1xf32>
    %355 = arith.mulf %338, %338 : vector<4x16xf32>
    %cst_154 = arith.constant dense<0.000000e+00> : vector<4xf32>
    %356 = vector.multi_reduction <add>, %355, %cst_154 [1] : vector<4x16xf32> to vector<4xf32>
    %357 = vector.shape_cast %356 : vector<4xf32> to vector<4x1xf32>
    %cst_155 = arith.constant dense<0.000000e+00> : vector<4xf32>
    %358 = vector.multi_reduction <add>, %352, %cst_155 [1] : vector<4x16xf32> to vector<4xf32>
    %359 = vector.shape_cast %358 : vector<4xf32> to vector<4x1xf32>
    %360 = arith.mulf %352, %352 : vector<4x16xf32>
    %cst_156 = arith.constant dense<0.000000e+00> : vector<4xf32>
    %361 = vector.multi_reduction <add>, %360, %cst_156 [1] : vector<4x16xf32> to vector<4xf32>
    %362 = vector.shape_cast %361 : vector<4xf32> to vector<4x1xf32>
    %363 = arith.addf %354, %359 : vector<4x1xf32>
    %364 = arith.addf %357, %362 : vector<4x1xf32>
    %cst_157 = arith.constant 3.200000e+01 : f32
    %365 = vector.broadcast %cst_157 : f32 to vector<4x1xf32>
    %366 = arith.divf %363, %365 : vector<4x1xf32>
    %cst_158 = arith.constant 3.200000e+01 : f32
    %367 = vector.broadcast %cst_158 : f32 to vector<4x1xf32>
    %368 = arith.divf %364, %367 : vector<4x1xf32>
    %369 = arith.mulf %366, %366 : vector<4x1xf32>
    %370 = arith.subf %368, %369 : vector<4x1xf32>
    %cst_159 = arith.constant 0.000000e+00 : f32
    %371 = vector.broadcast %cst_159 : f32 to vector<4x1xf32>
    %372 = arith.maximumf %370, %371 : vector<4x1xf32>
    %cst_160 = arith.constant 9.99999974E-6 : f32
    %373 = vector.broadcast %cst_160 : f32 to vector<4x1xf32>
    %374 = arith.addf %372, %373 : vector<4x1xf32>
    %375 = math.rsqrt %374 : vector<4x1xf32>
    %376 = vector.broadcast %366 : vector<4x1xf32> to vector<4x16xf32>
    %377 = arith.subf %338, %376 : vector<4x16xf32>
    %378 = vector.broadcast %375 : vector<4x1xf32> to vector<4x16xf32>
    %379 = arith.mulf %377, %378 : vector<4x16xf32>
    %380 = vector.broadcast %366 : vector<4x1xf32> to vector<4x16xf32>
    %381 = arith.subf %352, %380 : vector<4x16xf32>
    %382 = vector.broadcast %375 : vector<4x1xf32> to vector<4x16xf32>
    %383 = arith.mulf %381, %382 : vector<4x16xf32>
    %cst_161 = arith.constant dense<0xFF800000> : vector<16xf32>
    %384 = vector.multi_reduction <maximumf>, %379, %cst_161 [0] : vector<4x16xf32> to vector<16xf32>
    %385 = vector.shape_cast %384 : vector<16xf32> to vector<1x16xf32>
    %cst_162 = arith.constant dense<0xFF800000> : vector<16xf32>
    %386 = vector.multi_reduction <maximumf>, %383, %cst_162 [0] : vector<4x16xf32> to vector<16xf32>
    %387 = vector.shape_cast %386 : vector<16xf32> to vector<1x16xf32>
    %388 = vector.broadcast %16 : vector<2x1xf32> to vector<2x16xf32>
    %389 = vector.broadcast %385 : vector<1x16xf32> to vector<2x16xf32>
    %390 = arith.mulf %388, %389 : vector<2x16xf32>
    %391 = vector.broadcast %20 : vector<2x1xf32> to vector<2x16xf32>
    %392 = vector.broadcast %387 : vector<1x16xf32> to vector<2x16xf32>
    %393 = arith.mulf %391, %392 : vector<2x16xf32>
    %394 = arith.addf %390, %393 : vector<2x16xf32>
    %c144 = arith.constant 144 : index
    %c0_163 = arith.constant 0 : index
    %395 = vector.load %arg4[%c144, %c0_163] : memref<336x128xf32, #tpu.memory_space<vmem>>, vector<16x16xf32>
    %c160 = arith.constant 160 : index
    %c0_164 = arith.constant 0 : index
    %396 = vector.load %arg4[%c160, %c0_164] : memref<336x128xf32, #tpu.memory_space<vmem>>, vector<1x16xf32>
    %cst_165 = arith.constant dense<0.000000e+00> : vector<4x16xf32>
    %397 = tpu.matmul %228, %379, %cst_165 {dimension_numbers = #tpu.dot_dimension_numbers<[1], [0], [0], [1], [0, 0, 1, 1], [], []>} : vector<4x4xf32>, vector<4x16xf32>, vector<4x16xf32> -> vector<4x16xf32>
    %cst_166 = arith.constant dense<0.000000e+00> : vector<4x16xf32>
    %398 = tpu.matmul %397, %395, %cst_166 {dimension_numbers = #tpu.dot_dimension_numbers<[1], [0], [0], [1], [0, 0, 1, 1], [], []>} : vector<4x16xf32>, vector<16x16xf32>, vector<4x16xf32> -> vector<4x16xf32>
    %399 = vector.broadcast %396 : vector<1x16xf32> to vector<4x16xf32>
    %400 = arith.addf %398, %399 : vector<4x16xf32>
    %401 = arith.mulf %400, %400 : vector<4x16xf32>
    %cst_167 = arith.constant dense<0.000000e+00> : vector<4xf32>
    %402 = vector.multi_reduction <add>, %401, %cst_167 [1] : vector<4x16xf32> to vector<4xf32>
    %403 = vector.shape_cast %402 : vector<4xf32> to vector<4x1xf32>
    %cst_168 = arith.constant 1.000000e-24 : f32
    %404 = vector.broadcast %cst_168 : f32 to vector<4x1xf32>
    %405 = arith.maximumf %403, %404 : vector<4x1xf32>
    %406 = math.rsqrt %405 : vector<4x1xf32>
    %407 = vector.broadcast %406 : vector<4x1xf32> to vector<4x16xf32>
    %408 = arith.mulf %400, %407 : vector<4x16xf32>
    %cst_169 = arith.constant dense<0.000000e+00> : vector<4x16xf32>
    %409 = tpu.matmul %236, %383, %cst_169 {dimension_numbers = #tpu.dot_dimension_numbers<[1], [0], [0], [1], [0, 0, 1, 1], [], []>} : vector<4x4xf32>, vector<4x16xf32>, vector<4x16xf32> -> vector<4x16xf32>
    %cst_170 = arith.constant dense<0.000000e+00> : vector<4x16xf32>
    %410 = tpu.matmul %409, %395, %cst_170 {dimension_numbers = #tpu.dot_dimension_numbers<[1], [0], [0], [1], [0, 0, 1, 1], [], []>} : vector<4x16xf32>, vector<16x16xf32>, vector<4x16xf32> -> vector<4x16xf32>
    %411 = vector.broadcast %396 : vector<1x16xf32> to vector<4x16xf32>
    %412 = arith.addf %410, %411 : vector<4x16xf32>
    %413 = arith.mulf %412, %412 : vector<4x16xf32>
    %cst_171 = arith.constant dense<0.000000e+00> : vector<4xf32>
    %414 = vector.multi_reduction <add>, %413, %cst_171 [1] : vector<4x16xf32> to vector<4xf32>
    %415 = vector.shape_cast %414 : vector<4xf32> to vector<4x1xf32>
    %cst_172 = arith.constant 1.000000e-24 : f32
    %416 = vector.broadcast %cst_172 : f32 to vector<4x1xf32>
    %417 = arith.maximumf %415, %416 : vector<4x1xf32>
    %418 = math.rsqrt %417 : vector<4x1xf32>
    %419 = vector.broadcast %418 : vector<4x1xf32> to vector<4x16xf32>
    %420 = arith.mulf %412, %419 : vector<4x16xf32>
    %cst_173 = arith.constant dense<0xFF800000> : vector<16xf32>
    %421 = vector.multi_reduction <maximumf>, %408, %cst_173 [0] : vector<4x16xf32> to vector<16xf32>
    %422 = vector.shape_cast %421 : vector<16xf32> to vector<1x16xf32>
    %cst_174 = arith.constant dense<0xFF800000> : vector<16xf32>
    %423 = vector.multi_reduction <maximumf>, %420, %cst_174 [0] : vector<4x16xf32> to vector<16xf32>
    %424 = vector.shape_cast %423 : vector<16xf32> to vector<1x16xf32>
    %425 = vector.broadcast %16 : vector<2x1xf32> to vector<2x16xf32>
    %426 = vector.broadcast %422 : vector<1x16xf32> to vector<2x16xf32>
    %427 = arith.mulf %425, %426 : vector<2x16xf32>
    %428 = vector.broadcast %20 : vector<2x1xf32> to vector<2x16xf32>
    %429 = vector.broadcast %424 : vector<1x16xf32> to vector<2x16xf32>
    %430 = arith.mulf %428, %429 : vector<2x16xf32>
    %431 = arith.addf %427, %430 : vector<2x16xf32>
    %c168 = arith.constant 168 : index
    %c0_175 = arith.constant 0 : index
    %432 = vector.load %arg4[%c168, %c0_175] : memref<336x128xf32, #tpu.memory_space<vmem>>, vector<16x50xf32>
    %cst_176 = arith.constant dense<0.000000e+00> : vector<2x50xf32>
    %433 = tpu.matmul %101, %432, %cst_176 {dimension_numbers = #tpu.dot_dimension_numbers<[1], [0], [0], [1], [0, 0, 1, 1], [], []>} : vector<2x16xf32>, vector<16x50xf32>, vector<2x50xf32> -> vector<2x50xf32>
    %c184 = arith.constant 184 : index
    %c0_177 = arith.constant 0 : index
    %434 = vector.load %arg4[%c184, %c0_177] : memref<336x128xf32, #tpu.memory_space<vmem>>, vector<16x50xf32>
    %cst_178 = arith.constant dense<0.000000e+00> : vector<2x50xf32>
    %435 = tpu.matmul %177, %434, %cst_178 {dimension_numbers = #tpu.dot_dimension_numbers<[1], [0], [0], [1], [0, 0, 1, 1], [], []>} : vector<2x16xf32>, vector<16x50xf32>, vector<2x50xf32> -> vector<2x50xf32>
    %436 = arith.addf %433, %435 : vector<2x50xf32>
    %c200 = arith.constant 200 : index
    %c0_179 = arith.constant 0 : index
    %437 = vector.load %arg4[%c200, %c0_179] : memref<336x128xf32, #tpu.memory_space<vmem>>, vector<16x50xf32>
    %cst_180 = arith.constant dense<0.000000e+00> : vector<2x50xf32>
    %438 = tpu.matmul %220, %437, %cst_180 {dimension_numbers = #tpu.dot_dimension_numbers<[1], [0], [0], [1], [0, 0, 1, 1], [], []>} : vector<2x16xf32>, vector<16x50xf32>, vector<2x50xf32> -> vector<2x50xf32>
    %439 = arith.addf %436, %438 : vector<2x50xf32>
    %c216 = arith.constant 216 : index
    %c0_181 = arith.constant 0 : index
    %440 = vector.load %arg4[%c216, %c0_181] : memref<336x128xf32, #tpu.memory_space<vmem>>, vector<16x50xf32>
    %cst_182 = arith.constant dense<0.000000e+00> : vector<2x50xf32>
    %441 = tpu.matmul %322, %440, %cst_182 {dimension_numbers = #tpu.dot_dimension_numbers<[1], [0], [0], [1], [0, 0, 1, 1], [], []>} : vector<2x16xf32>, vector<16x50xf32>, vector<2x50xf32> -> vector<2x50xf32>
    %442 = arith.addf %439, %441 : vector<2x50xf32>
    %c232 = arith.constant 232 : index
    %c0_183 = arith.constant 0 : index
    %443 = vector.load %arg4[%c232, %c0_183] : memref<336x128xf32, #tpu.memory_space<vmem>>, vector<16x50xf32>
    %cst_184 = arith.constant dense<0.000000e+00> : vector<2x50xf32>
    %444 = tpu.matmul %394, %443, %cst_184 {dimension_numbers = #tpu.dot_dimension_numbers<[1], [0], [0], [1], [0, 0, 1, 1], [], []>} : vector<2x16xf32>, vector<16x50xf32>, vector<2x50xf32> -> vector<2x50xf32>
    %445 = arith.addf %442, %444 : vector<2x50xf32>
    %c248 = arith.constant 248 : index
    %c0_185 = arith.constant 0 : index
    %446 = vector.load %arg4[%c248, %c0_185] : memref<336x128xf32, #tpu.memory_space<vmem>>, vector<16x50xf32>
    %cst_186 = arith.constant dense<0.000000e+00> : vector<2x50xf32>
    %447 = tpu.matmul %431, %446, %cst_186 {dimension_numbers = #tpu.dot_dimension_numbers<[1], [0], [0], [1], [0, 0, 1, 1], [], []>} : vector<2x16xf32>, vector<16x50xf32>, vector<2x50xf32> -> vector<2x50xf32>
    %448 = arith.addf %445, %447 : vector<2x50xf32>
    %c264 = arith.constant 264 : index
    %c0_187 = arith.constant 0 : index
    %449 = vector.load %arg4[%c264, %c0_187] : memref<336x128xf32, #tpu.memory_space<vmem>>, vector<1x50xf32>
    %450 = vector.broadcast %449 : vector<1x50xf32> to vector<2x50xf32>
    %451 = arith.addf %448, %450 : vector<2x50xf32>
    %cst_188 = arith.constant 0.000000e+00 : f32
    %452 = vector.broadcast %cst_188 : f32 to vector<2x50xf32>
    %453 = arith.maximumf %451, %452 : vector<2x50xf32>
    %c272 = arith.constant 272 : index
    %c0_189 = arith.constant 0 : index
    %454 = vector.load %arg4[%c272, %c0_189] : memref<336x128xf32, #tpu.memory_space<vmem>>, vector<50x4xf32>
    %cst_190 = arith.constant dense<0.000000e+00> : vector<2x4xf32>
    %455 = tpu.matmul %453, %454, %cst_190 {dimension_numbers = #tpu.dot_dimension_numbers<[1], [0], [0], [1], [0, 0, 1, 1], [], []>} : vector<2x50xf32>, vector<50x4xf32>, vector<2x4xf32> -> vector<2x4xf32>
    %c328 = arith.constant 328 : index
    %c0_191 = arith.constant 0 : index
    %456 = vector.load %arg4[%c328, %c0_191] : memref<336x128xf32, #tpu.memory_space<vmem>>, vector<1x4xf32>
    %457 = vector.broadcast %456 : vector<1x4xf32> to vector<2x4xf32>
    %458 = arith.addf %455, %457 : vector<2x4xf32>
    %c0_192 = arith.constant 0 : index
    %c0_193 = arith.constant 0 : index
    %459 = vector.load %arg5[%c0_192, %c0_193] : memref<2x4xf32, #tpu.memory_space<vmem>>, vector<2x4xf32>
    tpu.vector_store %arg5[%c0_192, %c0_193], %458 {strides = array<i32>} : memref<2x4xf32, #tpu.memory_space<vmem>>, vector<2x4xf32>,
    return
  }
}

</mosaic_0001>

<llo_original>
// kernel: tpu_custom_call.1
$region0: #{tpu_custom_call.1}
  #allocation0 [shape = 'u32[]', space=smem, size = 0x4, offset = 0x4, fixed_abs, tag = 'smem constant byte address 0x4 - core index']
  #allocation1 [shape = 'u32[144,128]{1,0:T(1,128)}', space=vmem, size = 0x12000, scoped, tag = 'internal scratch']
  %s0 = inlined_call_operand.vmem [shape: s32[2], index: 0, kind: input, shape index: {}]
  %s1 = inlined_call_operand.vmem [shape: f32[2,16,16], index: 1, kind: input, shape index: {}]
  %s2 = inlined_call_operand.vmem [shape: f32[2,16,8], index: 2, kind: input, shape index: {}]
  %s3 = inlined_call_operand.vmem [shape: f32[2,16,4], index: 3, kind: input, shape index: {}]
  %s4 = inlined_call_operand.hbm [shape: f32[336,128], index: 4, kind: input, shape index: {}]
  %s5 = inlined_call_operand.hbm [shape: f32[2,4], index: 5, kind: output, shape index: {}]
  %s6 = sld [smem:[#allocation0]]
  $region38: #{tpu_custom_call.1} parent=0
    _
  %s8 = ssub.s32 1, %s6
  %s9 = scalar_select 0, %s8, %s6
  $region1: #{tpu_custom_call.1} parent=0
    #allocation2 [shape = 'u8[512]{0}', space=smem, size = 0x200, scoped, tag = 'input window, operand 0, single buffered']
    #allocation3 [shape = 's32[1]{0}', space=sflag, size = 0x4, scoped, tag = 'scoped memory for tpu_custom_call.1']
    #allocation4 [shape = 's32[1]{0}', space=sflag, size = 0x4, scoped, tag = 'scoped memory for tpu_custom_call.1']
    #allocation5 [shape = 's32[1]{0}', space=sflag, size = 0x4, scoped, tag = 'scoped memory for tpu_custom_call.1']
    #allocation6 [shape = 'u8[172032]{0}', space=vmem, size = 0x2a000, scoped, tag = 'input window, operand 4, single buffered']
    #allocation7 [shape = 'u8[1024]{0}', space=vmem, size = 0x400, scoped, tag = 'output window, operand 0, single buffered']
    %10 = vsyncpa [#allocation5], 0
    %11 = vsyncpa [#allocation3], 0
    %12 = vsyncpa [#allocation4], 0
    // Predicated region
    $region2: #{tpu_custom_call.1} parent=1 // pred_check
      _
    $region3: #{tpu_custom_call.1} parent=1 // pred_check_branch
      %14 = sbr.rel (0) target = $region5
    $region4: #{tpu_custom_call.1} parent=1 // pred_region
      %s16 = ssub.s32 16, 16
      %17 = vsyncadd [#allocation5], %s16
      %s19 = sshll.u32 %s0, 4
      %s20 = int_to_ptr.vmem [resolvable:$true] %s19
      %22 = dma.vmem_to_smem %s20, 16, [#allocation2], [#allocation5]
    $region5: #{tpu_custom_call.1} parent=1 // pred_fallthru
      _
    // Predicated region
    $region6: #{tpu_custom_call.1} parent=1 // pred_check
      _
    $region7: #{tpu_custom_call.1} parent=1 // pred_check_branch
      %24 = sbr.rel (0) target = $region9
    $region8: #{tpu_custom_call.1} parent=1 // pred_region
      _
    $region9: #{tpu_custom_call.1} parent=1 // pred_fallthru
      _
    // Predicated region
    $region10: #{tpu_custom_call.1} parent=1 // pred_check
      _
    $region11: #{tpu_custom_call.1} parent=1 // pred_check_branch
      %26 = sbr.rel (0) target = $region13
    $region12: #{tpu_custom_call.1} parent=1 // pred_region
      _
    $region13: #{tpu_custom_call.1} parent=1 // pred_fallthru
      _
    // Predicated region
    $region14: #{tpu_custom_call.1} parent=1 // pred_check
      _
    $region15: #{tpu_custom_call.1} parent=1 // pred_check_branch
      %28 = sbr.rel (0) target = $region17
    $region16: #{tpu_custom_call.1} parent=1 // pred_region
      _
    $region17: #{tpu_custom_call.1} parent=1 // pred_fallthru
      _
    // Predicated region
    $region18: #{tpu_custom_call.1} parent=1 // pred_check
      _
    $region19: #{tpu_custom_call.1} parent=1 // pred_check_branch
      %30 = sbr.rel (0) target = $region21
    $region20: #{tpu_custom_call.1} parent=1 // pred_region
      %s32 = ssub.s32 5376, 5376
      %33 = vsyncadd [#allocation3], %s32
      %s34 = sshll.u32 [#allocation6], 4
      %s35 = int_to_ptr.vmem [resolvable:$true] %s34
      %40 = dma.hbm_to_vmem [thread:$0]  %s4, 5376, %s35, [#allocation3], 128, 128, 8
    $region21: #{tpu_custom_call.1} parent=1 // pred_fallthru
      _
    // Predicated region
    $region22: #{tpu_custom_call.1} parent=1 // pred_check
      _
    $region23: #{tpu_custom_call.1} parent=1 // pred_check_branch
      %42 = sbr.rel (0) target = $region25
    $region24: #{tpu_custom_call.1} parent=1 // pred_region
      %43 = dma.done [#allocation5], 16
    $region25: #{tpu_custom_call.1} parent=1 // pred_fallthru
      _
    // Predicated region
    $region26: #{tpu_custom_call.1} parent=1 // pred_check
      _
    $region27: #{tpu_custom_call.1} parent=1 // pred_check_branch
      %45 = sbr.rel (0) target = $region29
    $region28: #{tpu_custom_call.1} parent=1 // pred_region
      %46 = dma.done [#allocation3], 5376
    $region29: #{tpu_custom_call.1} parent=1 // pred_fallthru
      _
    %47 = sfence
    %v48 = vlaneseq
    %v49 = vshrl.u32 %v48, 7
    %v50 = vadd.s32 %v49, 8
    %s51 = sld [smem:[#allocation2]]
    %v52 = vstv %s51
    %vm53 = vcmp.lt.s32.totalorder %v49, %v52
    %vm54 = vcmp.lt.s32.totalorder %v50, %v52
    %v55 = vsel %vm53, 1, 0
    %v56 = vsel %vm54, 1, 0
    %v57 = vcvt.s32.f32 %v55
    %v58 = vcvt.s32.f32 %v56
    %s59 = sld [smem:[#allocation2 + $0x1]]
    %v60 = vstv %s59
    %vm61 = vcmp.lt.s32.totalorder %v49, %v60
    %vm62 = vcmp.lt.s32.totalorder %v50, %v60
    %v63 = vsel %vm61, 1, 0
    %v64 = vsel %vm62, 1, 0
    %v65 = vcvt.s32.f32 %v63
    %v66 = vcvt.s32.f32 %v64
    %vm67 = vcmp.eq.s32.totalorder %v49, 0
    %v68 = vsel %vm67, 1, 0
    %v69 = vcvt.s32.f32 %v68
    %vm70 = vcmp.eq.s32.totalorder %v49, 1
    %v71 = vsel %vm70, 1, 0
    %v72 = vcvt.s32.f32 %v71
    %v73 = vld [vmem:[%s2] sm:$0xff]
    %v74 = vld [vmem:[%s2 + $0x8] sm:$0xff]
    %s75 = scalar_lea.vmem %s2, 16
    %v76 = vld [vmem:[%s75] sm:$0xff]
    %v77 = vld [vmem:[%s75 + $0x8] sm:$0xff]
    %v78 = vld [vmem:[#allocation6] sm:$0xff]
    %v79 = vld [vmem:[#allocation6 + $0x8] sm:$0x1]
    %v80 = vld [vmem:[%s1] sm:$0xff]
    %v81 = vld [vmem:[%s1 + $0x8] sm:$0xff]
    %vm82 = vcmask 130048
    %v84 = vsel %vm82, %v80, 0
    %v87 = vsel %vm82, %v81, 0
    %89 = vmatprep.subr.mxu0 0.0
    %90 = vmatpush1.msra.mxu0 0.0
    %91 = vmatprep.subr.mxu0 0.0
    %92 = vmatpush1.msra.mxu0 0.0
    %93 = vmatprep.subr.mxu0 0.0
    %94 = vmatpush1.msra.mxu0 0.0
    %95 = vmatprep.subr.mxu0 0.0
    %96 = vmatpush1.msra.mxu0 0.0
    %97 = vmatprep.subr.mxu0 0.0
    %98 = vmatpush1.msra.mxu0 0.0
    %99 = vmatprep.subr.mxu0 0.0
    %100 = vmatpush1.msra.mxu0 0.0
    %101 = vmatprep.subr.mxu0 0.0
    %102 = vmatpush1.msra.mxu0 0.0
    %103 = vmatprep.subr.mxu0 0.0
    %104 = vmatpush1.msra.mxu0 0.0
    %105 = vmatprep.subr.mxu0 0.0
    %106 = vmatpush1.msra.mxu0 0.0
    %107 = vmatprep.subr.mxu0 0.0
    %108 = vmatpush1.msra.mxu0 0.0
    %109 = vmatprep.subr.mxu0 0.0
    %110 = vmatpush1.msra.mxu0 0.0
    %111 = vmatprep.subr.mxu0 0.0
    %112 = vmatpush1.msra.mxu0 0.0
    %113 = vmatprep.subr.mxu0 0.0
    %114 = vmatpush1.msra.mxu0 0.0
    %115 = vmatprep.subr.mxu0 0.0
    %116 = vmatpush1.msra.mxu0 0.0
    %117 = vmatprep.subr.mxu0 0.0
    %118 = vmatpush1.msra.mxu0 %v74
    %119 = vmatprep.subr.mxu0 0.0
    %120 = vmatpush1.msra.mxu0 %v73
    %121 = vmatprep.subr.mxu0 0.0
    %122 = vmatpush2.msra.mxu0 0.0
    %123 = vmatprep.subr.mxu0 0.0
    %124 = vmatpush2.msra.mxu0 0.0
    %125 = vmatprep.subr.mxu0 0.0
    %126 = vmatpush2.msra.mxu0 0.0
    %127 = vmatprep.subr.mxu0 0.0
    %128 = vmatpush2.msra.mxu0 0.0
    %129 = vmatprep.subr.mxu0 0.0
    %130 = vmatpush2.msra.mxu0 0.0
    %131 = vmatprep.subr.mxu0 0.0
    %132 = vmatpush2.msra.mxu0 0.0
    %133 = vmatprep.subr.mxu0 0.0
    %134 = vmatpush2.msra.mxu0 0.0
    %135 = vmatprep.subr.mxu0 0.0
    %136 = vmatpush2.msra.mxu0 0.0
    %137 = vmatprep.subr.mxu0 0.0
    %138 = vmatpush2.msra.mxu0 0.0
    %139 = vmatprep.subr.mxu0 0.0
    %140 = vmatpush2.msra.mxu0 0.0
    %141 = vmatprep.subr.mxu0 0.0
    %142 = vmatpush2.msra.mxu0 0.0
    %143 = vmatprep.subr.mxu0 0.0
    %144 = vmatpush2.msra.mxu0 0.0
    %145 = vmatprep.subr.mxu0 0.0
    %146 = vmatpush2.msra.mxu0 0.0
    %147 = vmatprep.subr.mxu0 0.0
    %148 = vmatpush2.msra.mxu0 0.0
    %149 = vmatprep.subr.mxu0 0.0
    %150 = vmatpush2.msra.mxu0 0.0
    %151 = vmatprep.subr.mxu0 0.0
    %152 = vmatpush2.msra.mxu0 0.0
    %153 = vmatprep.mubr.f32.mxu0 0.0
    %154 = vmatmul.mubr.f32.gmra.mxu0 %v84
    %v155 = vpop.f32.mrf.mxu0
    %v156 = vadd.f32 0.0, %v155
    %v157 = vpop.f32.mrf.mxu0
    %158 = vmatprep.mubr.f32.mxu0 0.0
    %159 = vmatmul.mubr.f32.gmra.mxu0 %v87
    %v160 = vpop.f32.mrf.mxu0
    %v161 = vadd.f32 0.0, %v160
    %v162 = vpop.f32.mrf.mxu0
    %163 = vdwg.mxu0
    %s164 = scalar_lea.vmem %s1, 16
    %v165 = vld [vmem:[%s164] sm:$0xff]
    %v166 = vld [vmem:[%s164 + $0x8] sm:$0xff]
    %v168 = vsel %vm82, %v165, 0
    %v171 = vsel %vm82, %v166, 0
    %173 = vmatprep.subr.mxu0 0.0
    %174 = vmatpush1.msra.mxu0 0.0
    %175 = vmatprep.subr.mxu0 0.0
    %176 = vmatpush1.msra.mxu0 0.0
    %177 = vmatprep.subr.mxu0 0.0
    %178 = vmatpush1.msra.mxu0 0.0
    %179 = vmatprep.subr.mxu0 0.0
    %180 = vmatpush1.msra.mxu0 0.0
    %181 = vmatprep.subr.mxu0 0.0
    %182 = vmatpush1.msra.mxu0 0.0
    %183 = vmatprep.subr.mxu0 0.0
    %184 = vmatpush1.msra.mxu0 0.0
    %185 = vmatprep.subr.mxu0 0.0
    %186 = vmatpush1.msra.mxu0 0.0
    %187 = vmatprep.subr.mxu0 0.0
    %188 = vmatpush1.msra.mxu0 0.0
    %189 = vmatprep.subr.mxu0 0.0
    %190 = vmatpush1.msra.mxu0 0.0
    %191 = vmatprep.subr.mxu0 0.0
    %192 = vmatpush1.msra.mxu0 0.0
    %193 = vmatprep.subr.mxu0 0.0
    %194 = vmatpush1.msra.mxu0 0.0
    %195 = vmatprep.subr.mxu0 0.0
    %196 = vmatpush1.msra.mxu0 0.0
    %197 = vmatprep.subr.mxu0 0.0
    %198 = vmatpush1.msra.mxu0 0.0
    %199 = vmatprep.subr.mxu0 0.0
    %200 = vmatpush1.msra.mxu0 0.0
    %201 = vmatprep.subr.mxu0 0.0
    %202 = vmatpush1.msra.mxu0 %v77
    %203 = vmatprep.subr.mxu0 0.0
    %204 = vmatpush1.msra.mxu0 %v76
    %205 = vmatprep.subr.mxu0 0.0
    %206 = vmatpush2.msra.mxu0 0.0
    %207 = vmatprep.subr.mxu0 0.0
    %208 = vmatpush2.msra.mxu0 0.0
    %209 = vmatprep.subr.mxu0 0.0
    %210 = vmatpush2.msra.mxu0 0.0
    %211 = vmatprep.subr.mxu0 0.0
    %212 = vmatpush2.msra.mxu0 0.0
    %213 = vmatprep.subr.mxu0 0.0
    %214 = vmatpush2.msra.mxu0 0.0
    %215 = vmatprep.subr.mxu0 0.0
    %216 = vmatpush2.msra.mxu0 0.0
    %217 = vmatprep.subr.mxu0 0.0
    %218 = vmatpush2.msra.mxu0 0.0
    %219 = vmatprep.subr.mxu0 0.0
    %220 = vmatpush2.msra.mxu0 0.0
    %221 = vmatprep.subr.mxu0 0.0
    %222 = vmatpush2.msra.mxu0 0.0
    %223 = vmatprep.subr.mxu0 0.0
    %224 = vmatpush2.msra.mxu0 0.0
    %225 = vmatprep.subr.mxu0 0.0
    %226 = vmatpush2.msra.mxu0 0.0
    %227 = vmatprep.subr.mxu0 0.0
    %228 = vmatpush2.msra.mxu0 0.0
    %229 = vmatprep.subr.mxu0 0.0
    %230 = vmatpush2.msra.mxu0 0.0
    %231 = vmatprep.subr.mxu0 0.0
    %232 = vmatpush2.msra.mxu0 0.0
    %233 = vmatprep.subr.mxu0 0.0
    %234 = vmatpush2.msra.mxu0 0.0
    %235 = vmatprep.subr.mxu0 0.0
    %236 = vmatpush2.msra.mxu0 0.0
    %237 = vmatprep.mubr.f32.mxu0 0.0
    %238 = vmatmul.mubr.f32.gmra.mxu0 %v168
    %v239 = vpop.f32.mrf.mxu0
    %v240 = vadd.f32 0.0, %v239
    %v241 = vpop.f32.mrf.mxu0
    %242 = vmatprep.mubr.f32.mxu0 0.0
    %243 = vmatmul.mubr.f32.gmra.mxu0 %v171
    %v244 = vpop.f32.mrf.mxu0
    %v245 = vadd.f32 0.0, %v244
    %v246 = vpop.f32.mrf.mxu0
    %247 = vdwg.mxu0
    %v248 = vlaneseq
    %v249 = vshrl.u32 %v248, 7
    %v250 = vsub.s32 0, %v249
    %v251 = vrot.slane %v79, %v250
    %vm252 = vcmask 64512
    %v254 = vsel %vm252, %v156, 0
    %v257 = vsel %vm252, %v161, 0
    %v260 = vsel %vm252, %v240, 0
    %v263 = vsel %vm252, %v245, 0
    %265 = vmatprep.subr.mxu0 0.0
    %266 = vmatpush1.msra.mxu0 0.0
    %267 = vmatprep.subr.mxu0 0.0
    %268 = vmatpush1.msra.mxu0 0.0
    %269 = vmatprep.subr.mxu0 0.0
    %270 = vmatpush1.msra.mxu0 0.0
    %271 = vmatprep.subr.mxu0 0.0
    %272 = vmatpush1.msra.mxu0 0.0
    %273 = vmatprep.subr.mxu0 0.0
    %274 = vmatpush1.msra.mxu0 0.0
    %275 = vmatprep.subr.mxu0 0.0
    %276 = vmatpush1.msra.mxu0 0.0
    %277 = vmatprep.subr.mxu0 0.0
    %278 = vmatpush1.msra.mxu0 0.0
    %279 = vmatprep.subr.mxu0 0.0
    %280 = vmatpush1.msra.mxu0 0.0
    %281 = vmatprep.subr.mxu0 0.0
    %282 = vmatpush1.msra.mxu0 0.0
    %283 = vmatprep.subr.mxu0 0.0
    %284 = vmatpush1.msra.mxu0 0.0
    %285 = vmatprep.subr.mxu0 0.0
    %286 = vmatpush1.msra.mxu0 0.0
    %287 = vmatprep.subr.mxu0 0.0
    %288 = vmatpush1.msra.mxu0 0.0
    %289 = vmatprep.subr.mxu0 0.0
    %290 = vmatpush1.msra.mxu0 0.0
    %291 = vmatprep.subr.mxu0 0.0
    %292 = vmatpush1.msra.mxu0 0.0
    %293 = vmatprep.subr.mxu0 0.0
    %294 = vmatpush1.msra.mxu0 0.0
    %295 = vmatprep.subr.mxu0 0.0
    %296 = vmatpush1.msra.mxu0 %v78
    %297 = vmatprep.subr.mxu0 0.0
    %298 = vmatpush2.msra.mxu0 0.0
    %299 = vmatprep.subr.mxu0 0.0
    %300 = vmatpush2.msra.mxu0 0.0
    %301 = vmatprep.subr.mxu0 0.0
    %302 = vmatpush2.msra.mxu0 0.0
    %303 = vmatprep.subr.mxu0 0.0
    %304 = vmatpush2.msra.mxu0 0.0
    %305 = vmatprep.subr.mxu0 0.0
    %306 = vmatpush2.msra.mxu0 0.0
    %307 = vmatprep.subr.mxu0 0.0
    %308 = vmatpush2.msra.mxu0 0.0
    %309 = vmatprep.subr.mxu0 0.0
    %310 = vmatpush2.msra.mxu0 0.0
    %311 = vmatprep.subr.mxu0 0.0
    %312 = vmatpush2.msra.mxu0 0.0
    %313 = vmatprep.subr.mxu0 0.0
    %314 = vmatpush2.msra.mxu0 0.0
    %315 = vmatprep.subr.mxu0 0.0
    %316 = vmatpush2.msra.mxu0 0.0
    %317 = vmatprep.subr.mxu0 0.0
    %318 = vmatpush2.msra.mxu0 0.0
    %319 = vmatprep.subr.mxu0 0.0
    %320 = vmatpush2.msra.mxu0 0.0
    %321 = vmatprep.subr.mxu0 0.0
    %322 = vmatpush2.msra.mxu0 0.0
    %323 = vmatprep.subr.mxu0 0.0
    %324 = vmatpush2.msra.mxu0 0.0
    %325 = vmatprep.subr.mxu0 0.0
    %326 = vmatpush2.msra.mxu0 0.0
    %327 = vmatprep.subr.mxu0 0.0
    %328 = vmatpush2.msra.mxu0 0.0
    %329 = vmatprep.mubr.f32.mxu0 0.0
    %330 = vmatmul.mubr.f32.gmra.mxu0 %v254
    %v331 = vpop.f32.mrf.mxu0
    %v332 = vadd.f32 %v251, %v331
    %v333 = vpop.f32.mrf.mxu0
    %334 = vmatprep.mubr.f32.mxu0 0.0
    %335 = vmatmul.mubr.f32.gmra.mxu0 %v257
    %v336 = vpop.f32.mrf.mxu0
    %v337 = vadd.f32 %v251, %v336
    %v338 = vpop.f32.mrf.mxu0
    %339 = vmatprep.mubr.f32.mxu0 0.0
    %340 = vmatmul.mubr.f32.gmra.mxu0 %v260
    %v341 = vpop.f32.mrf.mxu0
    %v342 = vadd.f32 %v251, %v341
    %v343 = vpop.f32.mrf.mxu0
    %344 = vmatprep.mubr.f32.mxu0 0.0
    %345 = vmatmul.mubr.f32.gmra.mxu0 %v263
    %v346 = vpop.f32.mrf.mxu0
    %v347 = vadd.f32 %v251, %v346
    %v348 = vpop.f32.mrf.mxu0
    %349 = vdwg.mxu0
    %v350 = vmul.f32 %v332, %v332
    %v351 = vmul.f32 %v337, %v337
    %v352 = vmul.f32 %v342, %v342
    %v353 = vmul.f32 %v347, %v347
    %v354 = vsel %vm82, %v350, 0.0
    %355 = vadd.xlane.f32.xlu0 %v354
    %v356 = vpop.xlane.xlu0 %355
    %v357 = vsel %vm82, %v351, 0.0
    %358 = vadd.xlane.f32.xlu0 %v357
    %v359 = vpop.xlane.xlu0 %358
    %v360 = vsel %vm82, %v352, 0.0
    %361 = vadd.xlane.f32.xlu0 %v360
    %v362 = vpop.xlane.xlu0 %361
    %v363 = vsel %vm82, %v353, 0.0
    %364 = vadd.xlane.f32.xlu0 %v363
    %v365 = vpop.xlane.xlu0 %364
    %v366 = vmax.f32 %v356, 1e-24
    %v367 = vmax.f32 %v359, 1e-24
    %v368 = vmax.f32 %v362, 1e-24
    %v369 = vmax.f32 %v365, 1e-24
    %v370 = vrsqrt.pop %v366
    %v371 = vrsqrt.pop %v367
    %v372 = vrsqrt.pop %v368
    %v373 = vrsqrt.pop %v369
    %v374 = vmul.f32 %v332, %v370
    %v375 = vmul.f32 %v337, %v371
    %v376 = vmul.f32 %v342, %v372
    %v377 = vmul.f32 %v347, %v373
    %v378 = vmax.f32 %v374, 0.0
    %v379 = vmax.f32 %v375, 0.0
    %v380 = vmax.f32 %v376, 0.0
    %v381 = vmax.f32 %v377, 0.0
    %v382 = vsel %vm82, %v378, 0.0
    %383 = vadd.xlane.f32.xlu0 %v382
    %v384 = vpop.xlane.xlu0 %383
    %v385 = vsel %vm82, %v379, 0.0
    %386 = vadd.xlane.f32.xlu0 %v385
    %v387 = vpop.xlane.xlu0 %386
    %v388 = vmul.f32 %v378, %v378
    %v389 = vmul.f32 %v379, %v379
    %v390 = vsel %vm82, %v388, 0.0
    %391 = vadd.xlane.f32.xlu0 %v390
    %v392 = vpop.xlane.xlu0 %391
    %v393 = vsel %vm82, %v389, 0.0
    %394 = vadd.xlane.f32.xlu0 %v393
    %v395 = vpop.xlane.xlu0 %394
    %v396 = vsel %vm82, %v380, 0.0
    %397 = vadd.xlane.f32.xlu0 %v396
    %v398 = vpop.xlane.xlu0 %397
    %v399 = vsel %vm82, %v381, 0.0
    %400 = vadd.xlane.f32.xlu0 %v399
    %v401 = vpop.xlane.xlu0 %400
    %v402 = vmul.f32 %v380, %v380
    %v403 = vmul.f32 %v381, %v381
    %v404 = vsel %vm82, %v402, 0.0
    %405 = vadd.xlane.f32.xlu0 %v404
    %v406 = vpop.xlane.xlu0 %405
    %v407 = vsel %vm82, %v403, 0.0
    %408 = vadd.xlane.f32.xlu0 %v407
    %v409 = vpop.xlane.xlu0 %408
    %v410 = vadd.f32 %v384, %v398
    %v411 = vadd.f32 %v387, %v401
    %v412 = vadd.f32 %v392, %v406
    %v413 = vadd.f32 %v395, %v409
    %v414 = vrcp.pop 32.0
    %v415 = vmul.f32 %v410, %v414
    %v416 = vmul.f32 %v411, %v414
    %v417 = vmul.f32 %v412, %v414
    %v418 = vmul.f32 %v413, %v414
    %v419 = vmul.f32 %v415, %v415
    %v420 = vmul.f32 %v416, %v416
    %v421 = vsub.f32 %v417, %v419
    %v422 = vsub.f32 %v418, %v420
    %v423 = vmax.f32 %v421, 0.0
    %v424 = vmax.f32 %v422, 0.0
    %v425 = vadd.f32 %v423, 1e-05
    %v426 = vadd.f32 %v424, 1e-05
    %v427 = vrsqrt.pop %v425
    %v428 = vrsqrt.pop %v426
    %430 = vset.pattern.permute.xlu0 0
    %431 = vperm.xlu0 %430, %v415
    %v432 = vpop.permute.xlu0 %431
    %435 = vset.pattern.permute.xlu0 0
    %436 = vperm.xlu0 %435, %v416
    %v437 = vpop.permute.xlu0 %436
    %v439 = vsub.f32 %v378, %v432
    %v440 = vsub.f32 %v379, %v437
    %v441 = vsub.f32 %v380, %v432
    %v442 = vsub.f32 %v381, %v437
    %444 = vset.pattern.permute.xlu0 0
    %445 = vperm.xlu0 %444, %v427
    %v446 = vpop.permute.xlu0 %445
    %449 = vset.pattern.permute.xlu0 0
    %450 = vperm.xlu0 %449, %v428
    %v451 = vpop.permute.xlu0 %450
    %v453 = vmul.f32 %v439, %v446
    %v454 = vmul.f32 %v440, %v451
    %v455 = vmul.f32 %v441, %v446
    %v456 = vmul.f32 %v442, %v451
    %458 = vset.pattern.permute.xlu0 0
    %459 = vperm.xlu0 %458, %v57
    %v460 = vpop.permute.xlu0 %459
    %463 = vset.pattern.permute.xlu0 0
    %464 = vperm.xlu0 %463, %v58
    %v465 = vpop.permute.xlu0 %464
    %468 = vset.pattern.permute.xlu0 0
    %469 = vperm.xlu0 %468, %v65
    %v470 = vpop.permute.xlu0 %469
    %473 = vset.pattern.permute.xlu0 0
    %474 = vperm.xlu0 %473, %v66
    %v475 = vpop.permute.xlu0 %474
    %v477 = vmul.f32 %v453, %v460
    %v478 = vmul.f32 %v454, %v465
    %v479 = vmul.f32 %v455, %v470
    %v480 = vmul.f32 %v456, %v475
    %v481 = vsel %vm82, %v477, -inf
    %v482 = vsel %vm82, %v478, -inf
    %v483 = vmax.f32 %v481, %v482
    %v484 = vrot.slane %v483, 4
    %v485 = vmax.f32 %v483, %v484
    %v486 = vrot.slane %v485, 2
    %v487 = vmax.f32 %v485, %v486
    %v488 = vrot.slane %v487, 1
    %v489 = vmax.f32 %v487, %v488
    %v490 = vld [vmem:[%s3] sm:$0xff]
    %v491 = vld [vmem:[%s3 + $0x8] sm:$0xff]
    %492 = vxpose.xlu0.b32.start [1/16] %v490, 128
    %493 = vxpose.xlu0.b32.cont [2/16] %v491, 128
    %494 = vxpose.xlu0.b32.cont [3/16] 0.0, 128
    %495 = vxpose.xlu0.b32.cont [4/16] 0.0, 128
    %496 = vxpose.xlu0.b32.cont [5/16] 0.0, 128
    %497 = vxpose.xlu0.b32.cont [6/16] 0.0, 128
    %498 = vxpose.xlu0.b32.cont [7/16] 0.0, 128
    %499 = vxpose.xlu0.b32.cont [8/16] 0.0, 128
    %500 = vxpose.xlu0.b32.cont [9/16] 0.0, 128
    %501 = vxpose.xlu0.b32.cont [10/16] 0.0, 128
    %502 = vxpose.xlu0.b32.cont [11/16] 0.0, 128
    %503 = vxpose.xlu0.b32.cont [12/16] 0.0, 128
    %504 = vxpose.xlu0.b32.cont [13/16] 0.0, 128
    %505 = vxpose.xlu0.b32.cont [14/16] 0.0, 128
    %506 = vxpose.xlu0.b32.cont [15/16] 0.0, 128
    %507 = vxpose.xlu0.b32.end [16/16] 0.0, 128
    %v508 = vpop.trf.xlu0
    %v509 = vpop.trf.xlu0
    %v510 = vpop.trf.xlu0
    %v511 = vpop.trf.xlu0
    %v512 = vpop.trf.xlu0
    %v513 = vpop.trf.xlu0
    %v514 = vpop.trf.xlu0
    %v515 = vpop.trf.xlu0
    %v516 = vpop.trf.xlu0
    %v517 = vpop.trf.xlu0
    %v518 = vpop.trf.xlu0
    %v519 = vpop.trf.xlu0
    %v520 = vpop.trf.xlu0
    %v521 = vpop.trf.xlu0
    %v522 = vpop.trf.xlu0
    %v523 = vpop.trf.xlu0
    %v525 = vsel %vm82, %v508, 0
    %527 = vmatprep.subr.mxu0 0.0
    %528 = vmatpush1.msra.mxu0 0.0
    %529 = vmatprep.subr.mxu0 0.0
    %530 = vmatpush1.msra.mxu0 0.0
    %531 = vmatprep.subr.mxu0 0.0
    %532 = vmatpush1.msra.mxu0 0.0
    %533 = vmatprep.subr.mxu0 0.0
    %534 = vmatpush1.msra.mxu0 0.0
    %535 = vmatprep.subr.mxu0 0.0
    %536 = vmatpush1.msra.mxu0 0.0
    %537 = vmatprep.subr.mxu0 0.0
    %538 = vmatpush1.msra.mxu0 0.0
    %539 = vmatprep.subr.mxu0 0.0
    %540 = vmatpush1.msra.mxu0 0.0
    %541 = vmatprep.subr.mxu0 0.0
    %542 = vmatpush1.msra.mxu0 0.0
    %543 = vmatprep.subr.mxu0 0.0
    %544 = vmatpush1.msra.mxu0 0.0
    %545 = vmatprep.subr.mxu0 0.0
    %546 = vmatpush1.msra.mxu0 0.0
    %547 = vmatprep.subr.mxu0 0.0
    %548 = vmatpush1.msra.mxu0 0.0
    %549 = vmatprep.subr.mxu0 0.0
    %550 = vmatpush1.msra.mxu0 0.0
    %551 = vmatprep.subr.mxu0 0.0
    %552 = vmatpush1.msra.mxu0 0.0
    %553 = vmatprep.subr.mxu0 0.0
    %554 = vmatpush1.msra.mxu0 0.0
    %555 = vmatprep.subr.mxu0 0.0
    %556 = vmatpush1.msra.mxu0 %v478
    %557 = vmatprep.subr.mxu0 0.0
    %558 = vmatpush1.msra.mxu0 %v477
    %559 = vmatprep.subr.mxu0 0.0
    %560 = vmatpush2.msra.mxu0 0.0
    %561 = vmatprep.subr.mxu0 0.0
    %562 = vmatpush2.msra.mxu0 0.0
    %563 = vmatprep.subr.mxu0 0.0
    %564 = vmatpush2.msra.mxu0 0.0
    %565 = vmatprep.subr.mxu0 0.0
    %566 = vmatpush2.msra.mxu0 0.0
    %567 = vmatprep.subr.mxu0 0.0
    %568 = vmatpush2.msra.mxu0 0.0
    %569 = vmatprep.subr.mxu0 0.0
    %570 = vmatpush2.msra.mxu0 0.0
    %571 = vmatprep.subr.mxu0 0.0
    %572 = vmatpush2.msra.mxu0 0.0
    %573 = vmatprep.subr.mxu0 0.0
    %574 = vmatpush2.msra.mxu0 0.0
    %575 = vmatprep.subr.mxu0 0.0
    %576 = vmatpush2.msra.mxu0 0.0
    %577 = vmatprep.subr.mxu0 0.0
    %578 = vmatpush2.msra.mxu0 0.0
    %579 = vmatprep.subr.mxu0 0.0
    %580 = vmatpush2.msra.mxu0 0.0
    %581 = vmatprep.subr.mxu0 0.0
    %582 = vmatpush2.msra.mxu0 0.0
    %583 = vmatprep.subr.mxu0 0.0
    %584 = vmatpush2.msra.mxu0 0.0
    %585 = vmatprep.subr.mxu0 0.0
    %586 = vmatpush2.msra.mxu0 0.0
    %587 = vmatprep.subr.mxu0 0.0
    %588 = vmatpush2.msra.mxu0 0.0
    %589 = vmatprep.subr.mxu0 0.0
    %590 = vmatpush2.msra.mxu0 0.0
    %591 = vmatprep.mubr.f32.mxu0 0.0
    %592 = vmatmul.mubr.f32.gmra.mxu0 %v525
    %v593 = vpop.f32.mrf.mxu0
    %v594 = vadd.f32 0.0, %v593
    %v595 = vpop.f32.mrf.mxu0
    %596 = vdwg.mxu0
    %v597 = vsel %vm82, %v479, -inf
    %v598 = vsel %vm82, %v480, -inf
    %v599 = vmax.f32 %v597, %v598
    %v600 = vrot.slane %v599, 4
    %v601 = vmax.f32 %v599, %v600
    %v602 = vrot.slane %v601, 2
    %v603 = vmax.f32 %v601, %v602
    %v604 = vrot.slane %v603, 1
    %v605 = vmax.f32 %v603, %v604
    %s606 = scalar_lea.vmem %s3, 16
    %v607 = vld [vmem:[%s606] sm:$0xff]
    %v608 = vld [vmem:[%s606 + $0x8] sm:$0xff]
    %609 = vxpose.xlu0.b32.start [1/16] %v607, 128
    %610 = vxpose.xlu0.b32.cont [2/16] %v608, 128
    %611 = vxpose.xlu0.b32.cont [3/16] 0.0, 128
    %612 = vxpose.xlu0.b32.cont [4/16] 0.0, 128
    %613 = vxpose.xlu0.b32.cont [5/16] 0.0, 128
    %614 = vxpose.xlu0.b32.cont [6/16] 0.0, 128
    %615 = vxpose.xlu0.b32.cont [7/16] 0.0, 128
    %616 = vxpose.xlu0.b32.cont [8/16] 0.0, 128
    %617 = vxpose.xlu0.b32.cont [9/16] 0.0, 128
    %618 = vxpose.xlu0.b32.cont [10/16] 0.0, 128
    %619 = vxpose.xlu0.b32.cont [11/16] 0.0, 128
    %620 = vxpose.xlu0.b32.cont [12/16] 0.0, 128
    %621 = vxpose.xlu0.b32.cont [13/16] 0.0, 128
    %622 = vxpose.xlu0.b32.cont [14/16] 0.0, 128
    %623 = vxpose.xlu0.b32.cont [15/16] 0.0, 128
    %624 = vxpose.xlu0.b32.end [16/16] 0.0, 128
    %v625 = vpop.trf.xlu0
    %v626 = vpop.trf.xlu0
    %v627 = vpop.trf.xlu0
    %v628 = vpop.trf.xlu0
    %v629 = vpop.trf.xlu0
    %v630 = vpop.trf.xlu0
    %v631 = vpop.trf.xlu0
    %v632 = vpop.trf.xlu0
    %v633 = vpop.trf.xlu0
    %v634 = vpop.trf.xlu0
    %v635 = vpop.trf.xlu0
    %v636 = vpop.trf.xlu0
    %v637 = vpop.trf.xlu0
    %v638 = vpop.trf.xlu0
    %v639 = vpop.trf.xlu0
    %v640 = vpop.trf.xlu0
    %v642 = vsel %vm82, %v625, 0
    %644 = vmatprep.subr.mxu0 0.0
    %645 = vmatpush1.msra.mxu0 0.0
    %646 = vmatprep.subr.mxu0 0.0
    %647 = vmatpush1.msra.mxu0 0.0
    %648 = vmatprep.subr.mxu0 0.0
    %649 = vmatpush1.msra.mxu0 0.0
    %650 = vmatprep.subr.mxu0 0.0
    %651 = vmatpush1.msra.mxu0 0.0
    %652 = vmatprep.subr.mxu0 0.0
    %653 = vmatpush1.msra.mxu0 0.0
    %654 = vmatprep.subr.mxu0 0.0
    %655 = vmatpush1.msra.mxu0 0.0
    %656 = vmatprep.subr.mxu0 0.0
    %657 = vmatpush1.msra.mxu0 0.0
    %658 = vmatprep.subr.mxu0 0.0
    %659 = vmatpush1.msra.mxu0 0.0
    %660 = vmatprep.subr.mxu0 0.0
    %661 = vmatpush1.msra.mxu0 0.0
    %662 = vmatprep.subr.mxu0 0.0
    %663 = vmatpush1.msra.mxu0 0.0
    %664 = vmatprep.subr.mxu0 0.0
    %665 = vmatpush1.msra.mxu0 0.0
    %666 = vmatprep.subr.mxu0 0.0
    %667 = vmatpush1.msra.mxu0 0.0
    %668 = vmatprep.subr.mxu0 0.0
    %669 = vmatpush1.msra.mxu0 0.0
    %670 = vmatprep.subr.mxu0 0.0
    %671 = vmatpush1.msra.mxu0 0.0
    %672 = vmatprep.subr.mxu0 0.0
    %673 = vmatpush1.msra.mxu0 %v480
    %674 = vmatprep.subr.mxu0 0.0
    %675 = vmatpush1.msra.mxu0 %v479
    %676 = vmatprep.subr.mxu0 0.0
    %677 = vmatpush2.msra.mxu0 0.0
    %678 = vmatprep.subr.mxu0 0.0
    %679 = vmatpush2.msra.mxu0 0.0
    %680 = vmatprep.subr.mxu0 0.0
    %681 = vmatpush2.msra.mxu0 0.0
    %682 = vmatprep.subr.mxu0 0.0
    %683 = vmatpush2.msra.mxu0 0.0
    %684 = vmatprep.subr.mxu0 0.0
    %685 = vmatpush2.msra.mxu0 0.0
    %686 = vmatprep.subr.mxu0 0.0
    %687 = vmatpush2.msra.mxu0 0.0
    %688 = vmatprep.subr.mxu0 0.0
    %689 = vmatpush2.msra.mxu0 0.0
    %690 = vmatprep.subr.mxu0 0.0
    %691 = vmatpush2.msra.mxu0 0.0
    %692 = vmatprep.subr.mxu0 0.0
    %693 = vmatpush2.msra.mxu0 0.0
    %694 = vmatprep.subr.mxu0 0.0
    %695 = vmatpush2.msra.mxu0 0.0
    %696 = vmatprep.subr.mxu0 0.0
    %697 = vmatpush2.msra.mxu0 0.0
    %698 = vmatprep.subr.mxu0 0.0
    %699 = vmatpush2.msra.mxu0 0.0
    %700 = vmatprep.subr.mxu0 0.0
    %701 = vmatpush2.msra.mxu0 0.0
    %702 = vmatprep.subr.mxu0 0.0
    %703 = vmatpush2.msra.mxu0 0.0
    %704 = vmatprep.subr.mxu0 0.0
    %705 = vmatpush2.msra.mxu0 0.0
    %706 = vmatprep.subr.mxu0 0.0
    %707 = vmatpush2.msra.mxu0 0.0
    %708 = vmatprep.mubr.f32.mxu0 0.0
    %709 = vmatmul.mubr.f32.gmra.mxu0 %v642
    %v710 = vpop.f32.mrf.mxu0
    %v711 = vadd.f32 0.0, %v710
    %v712 = vpop.f32.mrf.mxu0
    %713 = vdwg.mxu0
    %v714 = vmul.f32 %v69, %v489
    %v715 = vmul.f32 %v72, %v605
    %v716 = vadd.f32 %v714, %v715
    %v717 = vld [vmem:[#allocation6 + $0x10] sm:$0xff]
    %v718 = vld [vmem:[#allocation6 + $0x18] sm:$0xff]
    %v719 = vld [vmem:[#allocation6 + $0x20] sm:$0x1]
    %720 = vmatprep.subr.mxu0 0.0
    %721 = vmatpush1.msra.mxu0 0.0
    %722 = vmatprep.subr.mxu0 0.0
    %723 = vmatpush1.msra.mxu0 0.0
    %724 = vmatprep.subr.mxu0 0.0
    %725 = vmatpush1.msra.mxu0 0.0
    %726 = vmatprep.subr.mxu0 0.0
    %727 = vmatpush1.msra.mxu0 0.0
    %728 = vmatprep.subr.mxu0 0.0
    %729 = vmatpush1.msra.mxu0 0.0
    %730 = vmatprep.subr.mxu0 0.0
    %731 = vmatpush1.msra.mxu0 0.0
    %732 = vmatprep.subr.mxu0 0.0
    %733 = vmatpush1.msra.mxu0 0.0
    %734 = vmatprep.subr.mxu0 0.0
    %735 = vmatpush1.msra.mxu0 0.0
    %736 = vmatprep.subr.mxu0 0.0
    %737 = vmatpush1.msra.mxu0 0.0
    %738 = vmatprep.subr.mxu0 0.0
    %739 = vmatpush1.msra.mxu0 0.0
    %740 = vmatprep.subr.mxu0 0.0
    %741 = vmatpush1.msra.mxu0 0.0
    %742 = vmatprep.subr.mxu0 0.0
    %743 = vmatpush1.msra.mxu0 0.0
    %744 = vmatprep.subr.mxu0 0.0
    %745 = vmatpush1.msra.mxu0 0.0
    %746 = vmatprep.subr.mxu0 0.0
    %747 = vmatpush1.msra.mxu0 0.0
    %748 = vmatprep.subr.mxu0 0.0
    %749 = vmatpush1.msra.mxu0 %v454
    %750 = vmatprep.subr.mxu0 0.0
    %751 = vmatpush1.msra.mxu0 %v453
    %752 = vmatprep.subr.mxu0 0.0
    %753 = vmatpush2.msra.mxu0 0.0
    %754 = vmatprep.subr.mxu0 0.0
    %755 = vmatpush2.msra.mxu0 0.0
    %756 = vmatprep.subr.mxu0 0.0
    %757 = vmatpush2.msra.mxu0 0.0
    %758 = vmatprep.subr.mxu0 0.0
    %759 = vmatpush2.msra.mxu0 0.0
    %760 = vmatprep.subr.mxu0 0.0
    %761 = vmatpush2.msra.mxu0 0.0
    %762 = vmatprep.subr.mxu0 0.0
    %763 = vmatpush2.msra.mxu0 0.0
    %764 = vmatprep.subr.mxu0 0.0
    %765 = vmatpush2.msra.mxu0 0.0
    %766 = vmatprep.subr.mxu0 0.0
    %767 = vmatpush2.msra.mxu0 0.0
    %768 = vmatprep.subr.mxu0 0.0
    %769 = vmatpush2.msra.mxu0 0.0
    %770 = vmatprep.subr.mxu0 0.0
    %771 = vmatpush2.msra.mxu0 0.0
    %772 = vmatprep.subr.mxu0 0.0
    %773 = vmatpush2.msra.mxu0 0.0
    %774 = vmatprep.subr.mxu0 0.0
    %775 = vmatpush2.msra.mxu0 0.0
    %776 = vmatprep.subr.mxu0 0.0
    %777 = vmatpush2.msra.mxu0 0.0
    %778 = vmatprep.subr.mxu0 0.0
    %779 = vmatpush2.msra.mxu0 0.0
    %780 = vmatprep.subr.mxu0 0.0
    %781 = vmatpush2.msra.mxu0 0.0
    %782 = vmatprep.subr.mxu0 0.0
    %783 = vmatpush2.msra.mxu0 0.0
    %784 = vmatprep.mubr.f32.mxu0 0.0
    %785 = vmatmul.mubr.f32.gmra.mxu0 %v84
    %v786 = vpop.f32.mrf.mxu0
    %v787 = vadd.f32 0.0, %v786
    %v788 = vpop.f32.mrf.mxu0
    %789 = vmatprep.mubr.f32.mxu0 0.0
    %790 = vmatmul.mubr.f32.gmra.mxu0 %v87
    %v791 = vpop.f32.mrf.mxu0
    %v792 = vadd.f32 0.0, %v791
    %v793 = vpop.f32.mrf.mxu0
    %794 = vdwg.mxu0
    %795 = vmatprep.subr.mxu0 0.0
    %796 = vmatpush1.msra.mxu0 0.0
    %797 = vmatprep.subr.mxu0 0.0
    %798 = vmatpush1.msra.mxu0 0.0
    %799 = vmatprep.subr.mxu0 0.0
    %800 = vmatpush1.msra.mxu0 0.0
    %801 = vmatprep.subr.mxu0 0.0
    %802 = vmatpush1.msra.mxu0 0.0
    %803 = vmatprep.subr.mxu0 0.0
    %804 = vmatpush1.msra.mxu0 0.0
    %805 = vmatprep.subr.mxu0 0.0
    %806 = vmatpush1.msra.mxu0 0.0
    %807 = vmatprep.subr.mxu0 0.0
    %808 = vmatpush1.msra.mxu0 0.0
    %809 = vmatprep.subr.mxu0 0.0
    %810 = vmatpush1.msra.mxu0 0.0
    %811 = vmatprep.subr.mxu0 0.0
    %812 = vmatpush1.msra.mxu0 0.0
    %813 = vmatprep.subr.mxu0 0.0
    %814 = vmatpush1.msra.mxu0 0.0
    %815 = vmatprep.subr.mxu0 0.0
    %816 = vmatpush1.msra.mxu0 0.0
    %817 = vmatprep.subr.mxu0 0.0
    %818 = vmatpush1.msra.mxu0 0.0
    %819 = vmatprep.subr.mxu0 0.0
    %820 = vmatpush1.msra.mxu0 0.0
    %821 = vmatprep.subr.mxu0 0.0
    %822 = vmatpush1.msra.mxu0 0.0
    %823 = vmatprep.subr.mxu0 0.0
    %824 = vmatpush1.msra.mxu0 %v456
    %825 = vmatprep.subr.mxu0 0.0
    %826 = vmatpush1.msra.mxu0 %v455
    %827 = vmatprep.subr.mxu0 0.0
    %828 = vmatpush2.msra.mxu0 0.0
    %829 = vmatprep.subr.mxu0 0.0
    %830 = vmatpush2.msra.mxu0 0.0
    %831 = vmatprep.subr.mxu0 0.0
    %832 = vmatpush2.msra.mxu0 0.0
    %833 = vmatprep.subr.mxu0 0.0
    %834 = vmatpush2.msra.mxu0 0.0
    %835 = vmatprep.subr.mxu0 0.0
    %836 = vmatpush2.msra.mxu0 0.0
    %837 = vmatprep.subr.mxu0 0.0
    %838 = vmatpush2.msra.mxu0 0.0
    %839 = vmatprep.subr.mxu0 0.0
    %840 = vmatpush2.msra.mxu0 0.0
    %841 = vmatprep.subr.mxu0 0.0
    %842 = vmatpush2.msra.mxu0 0.0
    %843 = vmatprep.subr.mxu0 0.0
    %844 = vmatpush2.msra.mxu0 0.0
    %845 = vmatprep.subr.mxu0 0.0
    %846 = vmatpush2.msra.mxu0 0.0
    %847 = vmatprep.subr.mxu0 0.0
    %848 = vmatpush2.msra.mxu0 0.0
    %849 = vmatprep.subr.mxu0 0.0
    %850 = vmatpush2.msra.mxu0 0.0
    %851 = vmatprep.subr.mxu0 0.0
    %852 = vmatpush2.msra.mxu0 0.0
    %853 = vmatprep.subr.mxu0 0.0
    %854 = vmatpush2.msra.mxu0 0.0
    %855 = vmatprep.subr.mxu0 0.0
    %856 = vmatpush2.msra.mxu0 0.0
    %857 = vmatprep.subr.mxu0 0.0
    %858 = vmatpush2.msra.mxu0 0.0
    %859 = vmatprep.mubr.f32.mxu0 0.0
    %860 = vmatmul.mubr.f32.gmra.mxu0 %v168
    %v861 = vpop.f32.mrf.mxu0
    %v862 = vadd.f32 0.0, %v861
    %v863 = vpop.f32.mrf.mxu0
    %864 = vmatprep.mubr.f32.mxu0 0.0
    %865 = vmatmul.mubr.f32.gmra.mxu0 %v171
    %v866 = vpop.f32.mrf.mxu0
    %v867 = vadd.f32 0.0, %v866
    %v868 = vpop.f32.mrf.mxu0
    %869 = vdwg.mxu0
    %v870 = vlaneseq
    %v871 = vshrl.u32 %v870, 7
    %v872 = vsub.s32 0, %v871
    %v873 = vrot.slane %v719, %v872
    %v875 = vsel %vm82, %v787, 0
    %v878 = vsel %vm82, %v792, 0
    %v881 = vsel %vm82, %v862, 0
    %v884 = vsel %vm82, %v867, 0
    %886 = vmatprep.subr.mxu0 0.0
    %887 = vmatpush1.msra.mxu0 0.0
    %888 = vmatprep.subr.mxu0 0.0
    %889 = vmatpush1.msra.mxu0 0.0
    %890 = vmatprep.subr.mxu0 0.0
    %891 = vmatpush1.msra.mxu0 0.0
    %892 = vmatprep.subr.mxu0 0.0
    %893 = vmatpush1.msra.mxu0 0.0
    %894 = vmatprep.subr.mxu0 0.0
    %895 = vmatpush1.msra.mxu0 0.0
    %896 = vmatprep.subr.mxu0 0.0
    %897 = vmatpush1.msra.mxu0 0.0
    %898 = vmatprep.subr.mxu0 0.0
    %899 = vmatpush1.msra.mxu0 0.0
    %900 = vmatprep.subr.mxu0 0.0
    %901 = vmatpush1.msra.mxu0 0.0
    %902 = vmatprep.subr.mxu0 0.0
    %903 = vmatpush1.msra.mxu0 0.0
    %904 = vmatprep.subr.mxu0 0.0
    %905 = vmatpush1.msra.mxu0 0.0
    %906 = vmatprep.subr.mxu0 0.0
    %907 = vmatpush1.msra.mxu0 0.0
    %908 = vmatprep.subr.mxu0 0.0
    %909 = vmatpush1.msra.mxu0 0.0
    %910 = vmatprep.subr.mxu0 0.0
    %911 = vmatpush1.msra.mxu0 0.0
    %912 = vmatprep.subr.mxu0 0.0
    %913 = vmatpush1.msra.mxu0 0.0
    %914 = vmatprep.subr.mxu0 0.0
    %915 = vmatpush1.msra.mxu0 %v718
    %916 = vmatprep.subr.mxu0 0.0
    %917 = vmatpush1.msra.mxu0 %v717
    %918 = vmatprep.subr.mxu0 0.0
    %919 = vmatpush2.msra.mxu0 0.0
    %920 = vmatprep.subr.mxu0 0.0
    %921 = vmatpush2.msra.mxu0 0.0
    %922 = vmatprep.subr.mxu0 0.0
    %923 = vmatpush2.msra.mxu0 0.0
    %924 = vmatprep.subr.mxu0 0.0
    %925 = vmatpush2.msra.mxu0 0.0
    %926 = vmatprep.subr.mxu0 0.0
    %927 = vmatpush2.msra.mxu0 0.0
    %928 = vmatprep.subr.mxu0 0.0
    %929 = vmatpush2.msra.mxu0 0.0
    %930 = vmatprep.subr.mxu0 0.0
    %931 = vmatpush2.msra.mxu0 0.0
    %932 = vmatprep.subr.mxu0 0.0
    %933 = vmatpush2.msra.mxu0 0.0
    %934 = vmatprep.subr.mxu0 0.0
    %935 = vmatpush2.msra.mxu0 0.0
    %936 = vmatprep.subr.mxu0 0.0
    %937 = vmatpush2.msra.mxu0 0.0
    %938 = vmatprep.subr.mxu0 0.0
    %939 = vmatpush2.msra.mxu0 0.0
    %940 = vmatprep.subr.mxu0 0.0
    %941 = vmatpush2.msra.mxu0 0.0
    %942 = vmatprep.subr.mxu0 0.0
    %943 = vmatpush2.msra.mxu0 0.0
    %944 = vmatprep.subr.mxu0 0.0
    %945 = vmatpush2.msra.mxu0 0.0
    %946 = vmatprep.subr.mxu0 0.0
    %947 = vmatpush2.msra.mxu0 0.0
    %948 = vmatprep.subr.mxu0 0.0
    %949 = vmatpush2.msra.mxu0 0.0
    %950 = vmatprep.mubr.f32.mxu0 0.0
    %951 = vmatmul.mubr.f32.gmra.mxu0 %v875
    %v952 = vpop.f32.mrf.mxu0
    %v953 = vadd.f32 %v873, %v952
    %v954 = vpop.f32.mrf.mxu0
    %955 = vmatprep.mubr.f32.mxu0 0.0
    %956 = vmatmul.mubr.f32.gmra.mxu0 %v878
    %v957 = vpop.f32.mrf.mxu0
    %v958 = vadd.f32 %v873, %v957
    %v959 = vpop.f32.mrf.mxu0
    %960 = vmatprep.mubr.f32.mxu0 0.0
    %961 = vmatmul.mubr.f32.gmra.mxu0 %v881
    %v962 = vpop.f32.mrf.mxu0
    %v963 = vadd.f32 %v873, %v962
    %v964 = vpop.f32.mrf.mxu0
    %965 = vmatprep.mubr.f32.mxu0 0.0
    %966 = vmatmul.mubr.f32.gmra.mxu0 %v884
    %v967 = vpop.f32.mrf.mxu0
    %v968 = vadd.f32 %v873, %v967
    %v969 = vpop.f32.mrf.mxu0
    %970 = vdwg.mxu0
    %v971 = vmul.f32 %v953, %v953
    %v972 = vmul.f32 %v958, %v958
    %v973 = vmul.f32 %v963, %v963
    %v974 = vmul.f32 %v968, %v968
    %v975 = vsel %vm82, %v971, 0.0
    %976 = vadd.xlane.f32.xlu0 %v975
    %v977 = vpop.xlane.xlu0 %976
    %v978 = vsel %vm82, %v972, 0.0
    %979 = vadd.xlane.f32.xlu0 %v978
    %v980 = vpop.xlane.xlu0 %979
    %v981 = vsel %vm82, %v973, 0.0
    %982 = vadd.xlane.f32.xlu0 %v981
    %v983 = vpop.xlane.xlu0 %982
    %v984 = vsel %vm82, %v974, 0.0
    %985 = vadd.xlane.f32.xlu0 %v984
    %v986 = vpop.xlane.xlu0 %985
    %v987 = vmax.f32 %v977, 1e-24
    %v988 = vmax.f32 %v980, 1e-24
    %v989 = vmax.f32 %v983, 1e-24
    %v990 = vmax.f32 %v986, 1e-24
    %v991 = vrsqrt.pop %v987
    %v992 = vrsqrt.pop %v988
    %v993 = vrsqrt.pop %v989
    %v994 = vrsqrt.pop %v990
    %v995 = vmul.f32 %v953, %v991
    %v996 = vmul.f32 %v958, %v992
    %v997 = vmul.f32 %v963, %v993
    %v998 = vmul.f32 %v968, %v994
    %v999 = vmax.f32 %v995, 0.0
    %v1000 = vmax.f32 %v996, 0.0
    %v1001 = vmax.f32 %v997, 0.0
    %v1002 = vmax.f32 %v998, 0.0
    %v1003 = vsel %vm82, %v999, 0.0
    %1004 = vadd.xlane.f32.xlu0 %v1003
    %v1005 = vpop.xlane.xlu0 %1004
    %v1006 = vsel %vm82, %v1000, 0.0
    %1007 = vadd.xlane.f32.xlu0 %v1006
    %v1008 = vpop.xlane.xlu0 %1007
    %v1009 = vmul.f32 %v999, %v999
    %v1010 = vmul.f32 %v1000, %v1000
    %v1011 = vsel %vm82, %v1009, 0.0
    %1012 = vadd.xlane.f32.xlu0 %v1011
    %v1013 = vpop.xlane.xlu0 %1012
    %v1014 = vsel %vm82, %v1010, 0.0
    %1015 = vadd.xlane.f32.xlu0 %v1014
    %v1016 = vpop.xlane.xlu0 %1015
    %v1017 = vsel %vm82, %v1001, 0.0
    %1018 = vadd.xlane.f32.xlu0 %v1017
    %v1019 = vpop.xlane.xlu0 %1018
    %v1020 = vsel %vm82, %v1002, 0.0
    %1021 = vadd.xlane.f32.xlu0 %v1020
    %v1022 = vpop.xlane.xlu0 %1021
    %v1023 = vmul.f32 %v1001, %v1001
    %v1024 = vmul.f32 %v1002, %v1002
    %v1025 = vsel %vm82, %v1023, 0.0
    %1026 = vadd.xlane.f32.xlu0 %v1025
    %v1027 = vpop.xlane.xlu0 %1026
    %v1028 = vsel %vm82, %v1024, 0.0
    %1029 = vadd.xlane.f32.xlu0 %v1028
    %v1030 = vpop.xlane.xlu0 %1029
    %v1031 = vadd.f32 %v1005, %v1019
    %v1032 = vadd.f32 %v1008, %v1022
    %v1033 = vadd.f32 %v1013, %v1027
    %v1034 = vadd.f32 %v1016, %v1030
    %v1035 = vmul.f32 %v1031, %v414
    %v1036 = vmul.f32 %v1032, %v414
    %v1037 = vmul.f32 %v1033, %v414
    %v1038 = vmul.f32 %v1034, %v414
    %v1039 = vmul.f32 %v1035, %v1035
    %v1040 = vmul.f32 %v1036, %v1036
    %v1041 = vsub.f32 %v1037, %v1039
    %v1042 = vsub.f32 %v1038, %v1040
    %v1043 = vmax.f32 %v1041, 0.0
    %v1044 = vmax.f32 %v1042, 0.0
    %v1045 = vadd.f32 %v1043, 1e-05
    %v1046 = vadd.f32 %v1044, 1e-05
    %v1047 = vrsqrt.pop %v1045
    %v1048 = vrsqrt.pop %v1046
    %1050 = vset.pattern.permute.xlu0 0
    %1051 = vperm.xlu0 %1050, %v1035
    %v1052 = vpop.permute.xlu0 %1051
    %1055 = vset.pattern.permute.xlu0 0
    %1056 = vperm.xlu0 %1055, %v1036
    %v1057 = vpop.permute.xlu0 %1056
    %v1059 = vsub.f32 %v999, %v1052
    %v1060 = vsub.f32 %v1000, %v1057
    %v1061 = vsub.f32 %v1001, %v1052
    %v1062 = vsub.f32 %v1002, %v1057
    %1064 = vset.pattern.permute.xlu0 0
    %1065 = vperm.xlu0 %1064, %v1047
    %v1066 = vpop.permute.xlu0 %1065
    %1069 = vset.pattern.permute.xlu0 0
    %1070 = vperm.xlu0 %1069, %v1048
    %v1071 = vpop.permute.xlu0 %1070
    %v1073 = vmul.f32 %v1059, %v1066
    %v1074 = vmul.f32 %v1060, %v1071
    %v1075 = vmul.f32 %v1061, %v1066
    %v1076 = vmul.f32 %v1062, %v1071
    %v1077 = vmul.f32 %v1073, %v460
    %v1078 = vmul.f32 %v1074, %v465
    %v1079 = vmul.f32 %v1075, %v470
    %v1080 = vmul.f32 %v1076, %v475
    %v1081 = vsel %vm82, %v1077, -inf
    %v1082 = vsel %vm82, %v1078, -inf
    %v1083 = vmax.f32 %v1081, %v1082
    %v1084 = vrot.slane %v1083, 4
    %v1085 = vmax.f32 %v1083, %v1084
    %v1086 = vrot.slane %v1085, 2
    %v1087 = vmax.f32 %v1085, %v1086
    %v1088 = vrot.slane %v1087, 1
    %v1089 = vmax.f32 %v1087, %v1088
    %1090 = vmatprep.subr.mxu0 0.0
    %1091 = vmatpush1.msra.mxu0 0.0
    %1092 = vmatprep.subr.mxu0 0.0
    %1093 = vmatpush1.msra.mxu0 0.0
    %1094 = vmatprep.subr.mxu0 0.0
    %1095 = vmatpush1.msra.mxu0 0.0
    %1096 = vmatprep.subr.mxu0 0.0
    %1097 = vmatpush1.msra.mxu0 0.0
    %1098 = vmatprep.subr.mxu0 0.0
    %1099 = vmatpush1.msra.mxu0 0.0
    %1100 = vmatprep.subr.mxu0 0.0
    %1101 = vmatpush1.msra.mxu0 0.0
    %1102 = vmatprep.subr.mxu0 0.0
    %1103 = vmatpush1.msra.mxu0 0.0
    %1104 = vmatprep.subr.mxu0 0.0
    %1105 = vmatpush1.msra.mxu0 0.0
    %1106 = vmatprep.subr.mxu0 0.0
    %1107 = vmatpush1.msra.mxu0 0.0
    %1108 = vmatprep.subr.mxu0 0.0
    %1109 = vmatpush1.msra.mxu0 0.0
    %1110 = vmatprep.subr.mxu0 0.0
    %1111 = vmatpush1.msra.mxu0 0.0
    %1112 = vmatprep.subr.mxu0 0.0
    %1113 = vmatpush1.msra.mxu0 0.0
    %1114 = vmatprep.subr.mxu0 0.0
    %1115 = vmatpush1.msra.mxu0 0.0
    %1116 = vmatprep.subr.mxu0 0.0
    %1117 = vmatpush1.msra.mxu0 0.0
    %1118 = vmatprep.subr.mxu0 0.0
    %1119 = vmatpush1.msra.mxu0 %v1078
    %1120 = vmatprep.subr.mxu0 0.0
    %1121 = vmatpush1.msra.mxu0 %v1077
    %1122 = vmatprep.subr.mxu0 0.0
    %1123 = vmatpush2.msra.mxu0 0.0
    %1124 = vmatprep.subr.mxu0 0.0
    %1125 = vmatpush2.msra.mxu0 0.0
    %1126 = vmatprep.subr.mxu0 0.0
    %1127 = vmatpush2.msra.mxu0 0.0
    %1128 = vmatprep.subr.mxu0 0.0
    %1129 = vmatpush2.msra.mxu0 0.0
    %1130 = vmatprep.subr.mxu0 0.0
    %1131 = vmatpush2.msra.mxu0 0.0
    %1132 = vmatprep.subr.mxu0 0.0
    %1133 = vmatpush2.msra.mxu0 0.0
    %1134 = vmatprep.subr.mxu0 0.0
    %1135 = vmatpush2.msra.mxu0 0.0
    %1136 = vmatprep.subr.mxu0 0.0
    %1137 = vmatpush2.msra.mxu0 0.0
    %1138 = vmatprep.subr.mxu0 0.0
    %1139 = vmatpush2.msra.mxu0 0.0
    %1140 = vmatprep.subr.mxu0 0.0
    %1141 = vmatpush2.msra.mxu0 0.0
    %1142 = vmatprep.subr.mxu0 0.0
    %1143 = vmatpush2.msra.mxu0 0.0
    %1144 = vmatprep.subr.mxu0 0.0
    %1145 = vmatpush2.msra.mxu0 0.0
    %1146 = vmatprep.subr.mxu0 0.0
    %1147 = vmatpush2.msra.mxu0 0.0
    %1148 = vmatprep.subr.mxu0 0.0
    %1149 = vmatpush2.msra.mxu0 0.0
    %1150 = vmatprep.subr.mxu0 0.0
    %1151 = vmatpush2.msra.mxu0 0.0
    %1152 = vmatprep.subr.mxu0 0.0
    %1153 = vmatpush2.msra.mxu0 0.0
    %1154 = vmatprep.mubr.f32.mxu0 0.0
    %1155 = vmatmul.mubr.f32.gmra.mxu0 %v525
    %v1156 = vpop.f32.mrf.mxu0
    %v1157 = vadd.f32 0.0, %v1156
    %v1158 = vpop.f32.mrf.mxu0
    %1159 = vdwg.mxu0
    %v1160 = vsel %vm82, %v1079, -inf
    %v1161 = vsel %vm82, %v1080, -inf
    %v1162 = vmax.f32 %v1160, %v1161
    %v1163 = vrot.slane %v1162, 4
    %v1164 = vmax.f32 %v1162, %v1163
    %v1165 = vrot.slane %v1164, 2
    %v1166 = vmax.f32 %v1164, %v1165
    %v1167 = vrot.slane %v1166, 1
    %v1168 = vmax.f32 %v1166, %v1167
    %1169 = vmatprep.subr.mxu0 0.0
    %1170 = vmatpush1.msra.mxu0 0.0
    %1171 = vmatprep.subr.mxu0 0.0
    %1172 = vmatpush1.msra.mxu0 0.0
    %1173 = vmatprep.subr.mxu0 0.0
    %1174 = vmatpush1.msra.mxu0 0.0
    %1175 = vmatprep.subr.mxu0 0.0
    %1176 = vmatpush1.msra.mxu0 0.0
    %1177 = vmatprep.subr.mxu0 0.0
    %1178 = vmatpush1.msra.mxu0 0.0
    %1179 = vmatprep.subr.mxu0 0.0
    %1180 = vmatpush1.msra.mxu0 0.0
    %1181 = vmatprep.subr.mxu0 0.0
    %1182 = vmatpush1.msra.mxu0 0.0
    %1183 = vmatprep.subr.mxu0 0.0
    %1184 = vmatpush1.msra.mxu0 0.0
    %1185 = vmatprep.subr.mxu0 0.0
    %1186 = vmatpush1.msra.mxu0 0.0
    %1187 = vmatprep.subr.mxu0 0.0
    %1188 = vmatpush1.msra.mxu0 0.0
    %1189 = vmatprep.subr.mxu0 0.0
    %1190 = vmatpush1.msra.mxu0 0.0
    %1191 = vmatprep.subr.mxu0 0.0
    %1192 = vmatpush1.msra.mxu0 0.0
    %1193 = vmatprep.subr.mxu0 0.0
    %1194 = vmatpush1.msra.mxu0 0.0
    %1195 = vmatprep.subr.mxu0 0.0
    %1196 = vmatpush1.msra.mxu0 0.0
    %1197 = vmatprep.subr.mxu0 0.0
    %1198 = vmatpush1.msra.mxu0 %v1080
    %1199 = vmatprep.subr.mxu0 0.0
    %1200 = vmatpush1.msra.mxu0 %v1079
    %1201 = vmatprep.subr.mxu0 0.0
    %1202 = vmatpush2.msra.mxu0 0.0
    %1203 = vmatprep.subr.mxu0 0.0
    %1204 = vmatpush2.msra.mxu0 0.0
    %1205 = vmatprep.subr.mxu0 0.0
    %1206 = vmatpush2.msra.mxu0 0.0
    %1207 = vmatprep.subr.mxu0 0.0
    %1208 = vmatpush2.msra.mxu0 0.0
    %1209 = vmatprep.subr.mxu0 0.0
    %1210 = vmatpush2.msra.mxu0 0.0
    %1211 = vmatprep.subr.mxu0 0.0
    %1212 = vmatpush2.msra.mxu0 0.0
    %1213 = vmatprep.subr.mxu0 0.0
    %1214 = vmatpush2.msra.mxu0 0.0
    %1215 = vmatprep.subr.mxu0 0.0
    %1216 = vmatpush2.msra.mxu0 0.0
    %1217 = vmatprep.subr.mxu0 0.0
    %1218 = vmatpush2.msra.mxu0 0.0
    %1219 = vmatprep.subr.mxu0 0.0
    %1220 = vmatpush2.msra.mxu0 0.0
    %1221 = vmatprep.subr.mxu0 0.0
    %1222 = vmatpush2.msra.mxu0 0.0
    %1223 = vmatprep.subr.mxu0 0.0
    %1224 = vmatpush2.msra.mxu0 0.0
    %1225 = vmatprep.subr.mxu0 0.0
    %1226 = vmatpush2.msra.mxu0 0.0
    %1227 = vmatprep.subr.mxu0 0.0
    %1228 = vmatpush2.msra.mxu0 0.0
    %1229 = vmatprep.subr.mxu0 0.0
    %1230 = vmatpush2.msra.mxu0 0.0
    %1231 = vmatprep.subr.mxu0 0.0
    %1232 = vmatpush2.msra.mxu0 0.0
    %1233 = vmatprep.mubr.f32.mxu0 0.0
    %1234 = vmatmul.mubr.f32.gmra.mxu0 %v642
    %v1235 = vpop.f32.mrf.mxu0
    %v1236 = vadd.f32 0.0, %v1235
    %v1237 = vpop.f32.mrf.mxu0
    %1238 = vdwg.mxu0
    %v1239 = vmul.f32 %v69, %v1089
    %v1240 = vmul.f32 %v72, %v1168
    %v1241 = vadd.f32 %v1239, %v1240
    %v1242 = vld [vmem:[#allocation6 + $0x28] sm:$0xff]
    %v1243 = vld [vmem:[#allocation6 + $0x30] sm:$0xff]
    %v1244 = vld [vmem:[#allocation6 + $0x38] sm:$0x1]
    %1245 = vmatprep.subr.mxu0 0.0
    %1246 = vmatpush1.msra.mxu0 0.0
    %1247 = vmatprep.subr.mxu0 0.0
    %1248 = vmatpush1.msra.mxu0 0.0
    %1249 = vmatprep.subr.mxu0 0.0
    %1250 = vmatpush1.msra.mxu0 0.0
    %1251 = vmatprep.subr.mxu0 0.0
    %1252 = vmatpush1.msra.mxu0 0.0
    %1253 = vmatprep.subr.mxu0 0.0
    %1254 = vmatpush1.msra.mxu0 0.0
    %1255 = vmatprep.subr.mxu0 0.0
    %1256 = vmatpush1.msra.mxu0 0.0
    %1257 = vmatprep.subr.mxu0 0.0
    %1258 = vmatpush1.msra.mxu0 0.0
    %1259 = vmatprep.subr.mxu0 0.0
    %1260 = vmatpush1.msra.mxu0 0.0
    %1261 = vmatprep.subr.mxu0 0.0
    %1262 = vmatpush1.msra.mxu0 0.0
    %1263 = vmatprep.subr.mxu0 0.0
    %1264 = vmatpush1.msra.mxu0 0.0
    %1265 = vmatprep.subr.mxu0 0.0
    %1266 = vmatpush1.msra.mxu0 0.0
    %1267 = vmatprep.subr.mxu0 0.0
    %1268 = vmatpush1.msra.mxu0 0.0
    %1269 = vmatprep.subr.mxu0 0.0
    %1270 = vmatpush1.msra.mxu0 0.0
    %1271 = vmatprep.subr.mxu0 0.0
    %1272 = vmatpush1.msra.mxu0 0.0
    %1273 = vmatprep.subr.mxu0 0.0
    %1274 = vmatpush1.msra.mxu0 %v1074
    %1275 = vmatprep.subr.mxu0 0.0
    %1276 = vmatpush1.msra.mxu0 %v1073
    %1277 = vmatprep.subr.mxu0 0.0
    %1278 = vmatpush2.msra.mxu0 0.0
    %1279 = vmatprep.subr.mxu0 0.0
    %1280 = vmatpush2.msra.mxu0 0.0
    %1281 = vmatprep.subr.mxu0 0.0
    %1282 = vmatpush2.msra.mxu0 0.0
    %1283 = vmatprep.subr.mxu0 0.0
    %1284 = vmatpush2.msra.mxu0 0.0
    %1285 = vmatprep.subr.mxu0 0.0
    %1286 = vmatpush2.msra.mxu0 0.0
    %1287 = vmatprep.subr.mxu0 0.0
    %1288 = vmatpush2.msra.mxu0 0.0
    %1289 = vmatprep.subr.mxu0 0.0
    %1290 = vmatpush2.msra.mxu0 0.0
    %1291 = vmatprep.subr.mxu0 0.0
    %1292 = vmatpush2.msra.mxu0 0.0
    %1293 = vmatprep.subr.mxu0 0.0
    %1294 = vmatpush2.msra.mxu0 0.0
    %1295 = vmatprep.subr.mxu0 0.0
    %1296 = vmatpush2.msra.mxu0 0.0
    %1297 = vmatprep.subr.mxu0 0.0
    %1298 = vmatpush2.msra.mxu0 0.0
    %1299 = vmatprep.subr.mxu0 0.0
    %1300 = vmatpush2.msra.mxu0 0.0
    %1301 = vmatprep.subr.mxu0 0.0
    %1302 = vmatpush2.msra.mxu0 0.0
    %1303 = vmatprep.subr.mxu0 0.0
    %1304 = vmatpush2.msra.mxu0 0.0
    %1305 = vmatprep.subr.mxu0 0.0
    %1306 = vmatpush2.msra.mxu0 0.0
    %1307 = vmatprep.subr.mxu0 0.0
    %1308 = vmatpush2.msra.mxu0 0.0
    %1309 = vmatprep.mubr.f32.mxu0 0.0
    %1310 = vmatmul.mubr.f32.gmra.mxu0 %v84
    %v1311 = vpop.f32.mrf.mxu0
    %v1312 = vadd.f32 0.0, %v1311
    %v1313 = vpop.f32.mrf.mxu0
    %1314 = vmatprep.mubr.f32.mxu0 0.0
    %1315 = vmatmul.mubr.f32.gmra.mxu0 %v87
    %v1316 = vpop.f32.mrf.mxu0
    %v1317 = vadd.f32 0.0, %v1316
    %v1318 = vpop.f32.mrf.mxu0
    %1319 = vdwg.mxu0
    %1320 = vmatprep.subr.mxu0 0.0
    %1321 = vmatpush1.msra.mxu0 0.0
    %1322 = vmatprep.subr.mxu0 0.0
    %1323 = vmatpush1.msra.mxu0 0.0
    %1324 = vmatprep.subr.mxu0 0.0
    %1325 = vmatpush1.msra.mxu0 0.0
    %1326 = vmatprep.subr.mxu0 0.0
    %1327 = vmatpush1.msra.mxu0 0.0
    %1328 = vmatprep.subr.mxu0 0.0
    %1329 = vmatpush1.msra.mxu0 0.0
    %1330 = vmatprep.subr.mxu0 0.0
    %1331 = vmatpush1.msra.mxu0 0.0
    %1332 = vmatprep.subr.mxu0 0.0
    %1333 = vmatpush1.msra.mxu0 0.0
    %1334 = vmatprep.subr.mxu0 0.0
    %1335 = vmatpush1.msra.mxu0 0.0
    %1336 = vmatprep.subr.mxu0 0.0
    %1337 = vmatpush1.msra.mxu0 0.0
    %1338 = vmatprep.subr.mxu0 0.0
    %1339 = vmatpush1.msra.mxu0 0.0
    %1340 = vmatprep.subr.mxu0 0.0
    %1341 = vmatpush1.msra.mxu0 0.0
    %1342 = vmatprep.subr.mxu0 0.0
    %1343 = vmatpush1.msra.mxu0 0.0
    %1344 = vmatprep.subr.mxu0 0.0
    %1345 = vmatpush1.msra.mxu0 0.0
    %1346 = vmatprep.subr.mxu0 0.0
    %1347 = vmatpush1.msra.mxu0 0.0
    %1348 = vmatprep.subr.mxu0 0.0
    %1349 = vmatpush1.msra.mxu0 %v1076
    %1350 = vmatprep.subr.mxu0 0.0
    %1351 = vmatpush1.msra.mxu0 %v1075
    %1352 = vmatprep.subr.mxu0 0.0
    %1353 = vmatpush2.msra.mxu0 0.0
    %1354 = vmatprep.subr.mxu0 0.0
    %1355 = vmatpush2.msra.mxu0 0.0
    %1356 = vmatprep.subr.mxu0 0.0
    %1357 = vmatpush2.msra.mxu0 0.0
    %1358 = vmatprep.subr.mxu0 0.0
    %1359 = vmatpush2.msra.mxu0 0.0
    %1360 = vmatprep.subr.mxu0 0.0
    %1361 = vmatpush2.msra.mxu0 0.0
    %1362 = vmatprep.subr.mxu0 0.0
    %1363 = vmatpush2.msra.mxu0 0.0
    %1364 = vmatprep.subr.mxu0 0.0
    %1365 = vmatpush2.msra.mxu0 0.0
    %1366 = vmatprep.subr.mxu0 0.0
    %1367 = vmatpush2.msra.mxu0 0.0
    %1368 = vmatprep.subr.mxu0 0.0
    %1369 = vmatpush2.msra.mxu0 0.0
    %1370 = vmatprep.subr.mxu0 0.0
    %1371 = vmatpush2.msra.mxu0 0.0
    %1372 = vmatprep.subr.mxu0 0.0
    %1373 = vmatpush2.msra.mxu0 0.0
    %1374 = vmatprep.subr.mxu0 0.0
    %1375 = vmatpush2.msra.mxu0 0.0
    %1376 = vmatprep.subr.mxu0 0.0
    %1377 = vmatpush2.msra.mxu0 0.0
    %1378 = vmatprep.subr.mxu0 0.0
    %1379 = vmatpush2.msra.mxu0 0.0
    %1380 = vmatprep.subr.mxu0 0.0
    %1381 = vmatpush2.msra.mxu0 0.0
    %1382 = vmatprep.subr.mxu0 0.0
    %1383 = vmatpush2.msra.mxu0 0.0
    %1384 = vmatprep.mubr.f32.mxu0 0.0
    %1385 = vmatmul.mubr.f32.gmra.mxu0 %v168
    %v1386 = vpop.f32.mrf.mxu0
    %v1387 = vadd.f32 0.0, %v1386
    %v1388 = vpop.f32.mrf.mxu0
    %1389 = vmatprep.mubr.f32.mxu0 0.0
    %1390 = vmatmul.mubr.f32.gmra.mxu0 %v171
    %v1391 = vpop.f32.mrf.mxu0
    %v1392 = vadd.f32 0.0, %v1391
    %v1393 = vpop.f32.mrf.mxu0
    %1394 = vdwg.mxu0
    %v1395 = vlaneseq
    %v1396 = vshrl.u32 %v1395, 7
    %v1397 = vsub.s32 0, %v1396
    %v1398 = vrot.slane %v1244, %v1397
    %v1400 = vsel %vm82, %v1312, 0
    %v1403 = vsel %vm82, %v1317, 0
    %v1406 = vsel %vm82, %v1387, 0
    %v1409 = vsel %vm82, %v1392, 0
    %1411 = vmatprep.subr.mxu0 0.0
    %1412 = vmatpush1.msra.mxu0 0.0
    %1413 = vmatprep.subr.mxu0 0.0
    %1414 = vmatpush1.msra.mxu0 0.0
    %1415 = vmatprep.subr.mxu0 0.0
    %1416 = vmatpush1.msra.mxu0 0.0
    %1417 = vmatprep.subr.mxu0 0.0
    %1418 = vmatpush1.msra.mxu0 0.0
    %1419 = vmatprep.subr.mxu0 0.0
    %1420 = vmatpush1.msra.mxu0 0.0
    %1421 = vmatprep.subr.mxu0 0.0
    %1422 = vmatpush1.msra.mxu0 0.0
    %1423 = vmatprep.subr.mxu0 0.0
    %1424 = vmatpush1.msra.mxu0 0.0
    %1425 = vmatprep.subr.mxu0 0.0
    %1426 = vmatpush1.msra.mxu0 0.0
    %1427 = vmatprep.subr.mxu0 0.0
    %1428 = vmatpush1.msra.mxu0 0.0
    %1429 = vmatprep.subr.mxu0 0.0
    %1430 = vmatpush1.msra.mxu0 0.0
    %1431 = vmatprep.subr.mxu0 0.0
    %1432 = vmatpush1.msra.mxu0 0.0
    %1433 = vmatprep.subr.mxu0 0.0
    %1434 = vmatpush1.msra.mxu0 0.0
    %1435 = vmatprep.subr.mxu0 0.0
    %1436 = vmatpush1.msra.mxu0 0.0
    %1437 = vmatprep.subr.mxu0 0.0
    %1438 = vmatpush1.msra.mxu0 0.0
    %1439 = vmatprep.subr.mxu0 0.0
    %1440 = vmatpush1.msra.mxu0 %v1243
    %1441 = vmatprep.subr.mxu0 0.0
    %1442 = vmatpush1.msra.mxu0 %v1242
    %1443 = vmatprep.subr.mxu0 0.0
    %1444 = vmatpush2.msra.mxu0 0.0
    %1445 = vmatprep.subr.mxu0 0.0
    %1446 = vmatpush2.msra.mxu0 0.0
    %1447 = vmatprep.subr.mxu0 0.0
    %1448 = vmatpush2.msra.mxu0 0.0
    %1449 = vmatprep.subr.mxu0 0.0
    %1450 = vmatpush2.msra.mxu0 0.0
    %1451 = vmatprep.subr.mxu0 0.0
    %1452 = vmatpush2.msra.mxu0 0.0
    %1453 = vmatprep.subr.mxu0 0.0
    %1454 = vmatpush2.msra.mxu0 0.0
    %1455 = vmatprep.subr.mxu0 0.0
    %1456 = vmatpush2.msra.mxu0 0.0
    %1457 = vmatprep.subr.mxu0 0.0
    %1458 = vmatpush2.msra.mxu0 0.0
    %1459 = vmatprep.subr.mxu0 0.0
    %1460 = vmatpush2.msra.mxu0 0.0
    %1461 = vmatprep.subr.mxu0 0.0
    %1462 = vmatpush2.msra.mxu0 0.0
    %1463 = vmatprep.subr.mxu0 0.0
    %1464 = vmatpush2.msra.mxu0 0.0
    %1465 = vmatprep.subr.mxu0 0.0
    %1466 = vmatpush2.msra.mxu0 0.0
    %1467 = vmatprep.subr.mxu0 0.0
    %1468 = vmatpush2.msra.mxu0 0.0
    %1469 = vmatprep.subr.mxu0 0.0
    %1470 = vmatpush2.msra.mxu0 0.0
    %1471 = vmatprep.subr.mxu0 0.0
    %1472 = vmatpush2.msra.mxu0 0.0
    %1473 = vmatprep.subr.mxu0 0.0
    %1474 = vmatpush2.msra.mxu0 0.0
    %1475 = vmatprep.mubr.f32.mxu0 0.0
    %1476 = vmatmul.mubr.f32.gmra.mxu0 %v1400
    %v1477 = vpop.f32.mrf.mxu0
    %v1478 = vadd.f32 %v1398, %v1477
    %v1479 = vpop.f32.mrf.mxu0
    %1480 = vmatprep.mubr.f32.mxu0 0.0
    %1481 = vmatmul.mubr.f32.gmra.mxu0 %v1403
    %v1482 = vpop.f32.mrf.mxu0
    %v1483 = vadd.f32 %v1398, %v1482
    %v1484 = vpop.f32.mrf.mxu0
    %1485 = vmatprep.mubr.f32.mxu0 0.0
    %1486 = vmatmul.mubr.f32.gmra.mxu0 %v1406
    %v1487 = vpop.f32.mrf.mxu0
    %v1488 = vadd.f32 %v1398, %v1487
    %v1489 = vpop.f32.mrf.mxu0
    %1490 = vmatprep.mubr.f32.mxu0 0.0
    %1491 = vmatmul.mubr.f32.gmra.mxu0 %v1409
    %v1492 = vpop.f32.mrf.mxu0
    %v1493 = vadd.f32 %v1398, %v1492
    %v1494 = vpop.f32.mrf.mxu0
    %1495 = vdwg.mxu0
    %v1496 = vmul.f32 %v1478, %v1478
    %v1497 = vmul.f32 %v1483, %v1483
    %v1498 = vmul.f32 %v1488, %v1488
    %v1499 = vmul.f32 %v1493, %v1493
    %v1500 = vsel %vm82, %v1496, 0.0
    %1501 = vadd.xlane.f32.xlu0 %v1500
    %v1502 = vpop.xlane.xlu0 %1501
    %v1503 = vsel %vm82, %v1497, 0.0
    %1504 = vadd.xlane.f32.xlu0 %v1503
    %v1505 = vpop.xlane.xlu0 %1504
    %v1506 = vsel %vm82, %v1498, 0.0
    %1507 = vadd.xlane.f32.xlu0 %v1506
    %v1508 = vpop.xlane.xlu0 %1507
    %v1509 = vsel %vm82, %v1499, 0.0
    %1510 = vadd.xlane.f32.xlu0 %v1509
    %v1511 = vpop.xlane.xlu0 %1510
    %v1512 = vmax.f32 %v1502, 1e-24
    %v1513 = vmax.f32 %v1505, 1e-24
    %v1514 = vmax.f32 %v1508, 1e-24
    %v1515 = vmax.f32 %v1511, 1e-24
    %v1516 = vrsqrt.pop %v1512
    %v1517 = vrsqrt.pop %v1513
    %v1518 = vrsqrt.pop %v1514
    %v1519 = vrsqrt.pop %v1515
    %v1520 = vmul.f32 %v1478, %v1516
    %v1521 = vmul.f32 %v1483, %v1517
    %v1522 = vmul.f32 %v1488, %v1518
    %v1523 = vmul.f32 %v1493, %v1519
    %v1524 = vmul.f32 %v1520, %v460
    %v1525 = vmul.f32 %v1521, %v465
    %v1526 = vmul.f32 %v1522, %v470
    %v1527 = vmul.f32 %v1523, %v475
    %v1528 = vsel %vm82, %v1524, -inf
    %v1529 = vsel %vm82, %v1525, -inf
    %v1530 = vmax.f32 %v1528, %v1529
    %v1531 = vrot.slane %v1530, 4
    %v1532 = vmax.f32 %v1530, %v1531
    %v1533 = vrot.slane %v1532, 2
    %v1534 = vmax.f32 %v1532, %v1533
    %v1535 = vrot.slane %v1534, 1
    %v1536 = vmax.f32 %v1534, %v1535
    %1537 = vmatprep.subr.mxu0 0.0
    %1538 = vmatpush1.msra.mxu0 0.0
    %1539 = vmatprep.subr.mxu0 0.0
    %1540 = vmatpush1.msra.mxu0 0.0
    %1541 = vmatprep.subr.mxu0 0.0
    %1542 = vmatpush1.msra.mxu0 0.0
    %1543 = vmatprep.subr.mxu0 0.0
    %1544 = vmatpush1.msra.mxu0 0.0
    %1545 = vmatprep.subr.mxu0 0.0
    %1546 = vmatpush1.msra.mxu0 0.0
    %1547 = vmatprep.subr.mxu0 0.0
    %1548 = vmatpush1.msra.mxu0 0.0
    %1549 = vmatprep.subr.mxu0 0.0
    %1550 = vmatpush1.msra.mxu0 0.0
    %1551 = vmatprep.subr.mxu0 0.0
    %1552 = vmatpush1.msra.mxu0 0.0
    %1553 = vmatprep.subr.mxu0 0.0
    %1554 = vmatpush1.msra.mxu0 0.0
    %1555 = vmatprep.subr.mxu0 0.0
    %1556 = vmatpush1.msra.mxu0 0.0
    %1557 = vmatprep.subr.mxu0 0.0
    %1558 = vmatpush1.msra.mxu0 0.0
    %1559 = vmatprep.subr.mxu0 0.0
    %1560 = vmatpush1.msra.mxu0 0.0
    %1561 = vmatprep.subr.mxu0 0.0
    %1562 = vmatpush1.msra.mxu0 0.0
    %1563 = vmatprep.subr.mxu0 0.0
    %1564 = vmatpush1.msra.mxu0 0.0
    %1565 = vmatprep.subr.mxu0 0.0
    %1566 = vmatpush1.msra.mxu0 %v1525
    %1567 = vmatprep.subr.mxu0 0.0
    %1568 = vmatpush1.msra.mxu0 %v1524
    %1569 = vmatprep.subr.mxu0 0.0
    %1570 = vmatpush2.msra.mxu0 0.0
    %1571 = vmatprep.subr.mxu0 0.0
    %1572 = vmatpush2.msra.mxu0 0.0
    %1573 = vmatprep.subr.mxu0 0.0
    %1574 = vmatpush2.msra.mxu0 0.0
    %1575 = vmatprep.subr.mxu0 0.0
    %1576 = vmatpush2.msra.mxu0 0.0
    %1577 = vmatprep.subr.mxu0 0.0
    %1578 = vmatpush2.msra.mxu0 0.0
    %1579 = vmatprep.subr.mxu0 0.0
    %1580 = vmatpush2.msra.mxu0 0.0
    %1581 = vmatprep.subr.mxu0 0.0
    %1582 = vmatpush2.msra.mxu0 0.0
    %1583 = vmatprep.subr.mxu0 0.0
    %1584 = vmatpush2.msra.mxu0 0.0
    %1585 = vmatprep.subr.mxu0 0.0
    %1586 = vmatpush2.msra.mxu0 0.0
    %1587 = vmatprep.subr.mxu0 0.0
    %1588 = vmatpush2.msra.mxu0 0.0
    %1589 = vmatprep.subr.mxu0 0.0
    %1590 = vmatpush2.msra.mxu0 0.0
    %1591 = vmatprep.subr.mxu0 0.0
    %1592 = vmatpush2.msra.mxu0 0.0
    %1593 = vmatprep.subr.mxu0 0.0
    %1594 = vmatpush2.msra.mxu0 0.0
    %1595 = vmatprep.subr.mxu0 0.0
    %1596 = vmatpush2.msra.mxu0 0.0
    %1597 = vmatprep.subr.mxu0 0.0
    %1598 = vmatpush2.msra.mxu0 0.0
    %1599 = vmatprep.subr.mxu0 0.0
    %1600 = vmatpush2.msra.mxu0 0.0
    %1601 = vmatprep.mubr.f32.mxu0 0.0
    %1602 = vmatmul.mubr.f32.gmra.mxu0 %v525
    %v1603 = vpop.f32.mrf.mxu0
    %v1604 = vadd.f32 0.0, %v1603
    %v1605 = vpop.f32.mrf.mxu0
    %1606 = vdwg.mxu0
    %v1607 = vsel %vm82, %v1526, -inf
    %v1608 = vsel %vm82, %v1527, -inf
    %v1609 = vmax.f32 %v1607, %v1608
    %v1610 = vrot.slane %v1609, 4
    %v1611 = vmax.f32 %v1609, %v1610
    %v1612 = vrot.slane %v1611, 2
    %v1613 = vmax.f32 %v1611, %v1612
    %v1614 = vrot.slane %v1613, 1
    %v1615 = vmax.f32 %v1613, %v1614
    %1616 = vmatprep.subr.mxu0 0.0
    %1617 = vmatpush1.msra.mxu0 0.0
    %1618 = vmatprep.subr.mxu0 0.0
    %1619 = vmatpush1.msra.mxu0 0.0
    %1620 = vmatprep.subr.mxu0 0.0
    %1621 = vmatpush1.msra.mxu0 0.0
    %1622 = vmatprep.subr.mxu0 0.0
    %1623 = vmatpush1.msra.mxu0 0.0
    %1624 = vmatprep.subr.mxu0 0.0
    %1625 = vmatpush1.msra.mxu0 0.0
    %1626 = vmatprep.subr.mxu0 0.0
    %1627 = vmatpush1.msra.mxu0 0.0
    %1628 = vmatprep.subr.mxu0 0.0
    %1629 = vmatpush1.msra.mxu0 0.0
    %1630 = vmatprep.subr.mxu0 0.0
    %1631 = vmatpush1.msra.mxu0 0.0
    %1632 = vmatprep.subr.mxu0 0.0
    %1633 = vmatpush1.msra.mxu0 0.0
    %1634 = vmatprep.subr.mxu0 0.0
    %1635 = vmatpush1.msra.mxu0 0.0
    %1636 = vmatprep.subr.mxu0 0.0
    %1637 = vmatpush1.msra.mxu0 0.0
    %1638 = vmatprep.subr.mxu0 0.0
    %1639 = vmatpush1.msra.mxu0 0.0
    %1640 = vmatprep.subr.mxu0 0.0
    %1641 = vmatpush1.msra.mxu0 0.0
    %1642 = vmatprep.subr.mxu0 0.0
    %1643 = vmatpush1.msra.mxu0 0.0
    %1644 = vmatprep.subr.mxu0 0.0
    %1645 = vmatpush1.msra.mxu0 %v1527
    %1646 = vmatprep.subr.mxu0 0.0
    %1647 = vmatpush1.msra.mxu0 %v1526
    %1648 = vmatprep.subr.mxu0 0.0
    %1649 = vmatpush2.msra.mxu0 0.0
    %1650 = vmatprep.subr.mxu0 0.0
    %1651 = vmatpush2.msra.mxu0 0.0
    %1652 = vmatprep.subr.mxu0 0.0
    %1653 = vmatpush2.msra.mxu0 0.0
    %1654 = vmatprep.subr.mxu0 0.0
    %1655 = vmatpush2.msra.mxu0 0.0
    %1656 = vmatprep.subr.mxu0 0.0
    %1657 = vmatpush2.msra.mxu0 0.0
    %1658 = vmatprep.subr.mxu0 0.0
    %1659 = vmatpush2.msra.mxu0 0.0
    %1660 = vmatprep.subr.mxu0 0.0
    %1661 = vmatpush2.msra.mxu0 0.0
    %1662 = vmatprep.subr.mxu0 0.0
    %1663 = vmatpush2.msra.mxu0 0.0
    %1664 = vmatprep.subr.mxu0 0.0
    %1665 = vmatpush2.msra.mxu0 0.0
    %1666 = vmatprep.subr.mxu0 0.0
    %1667 = vmatpush2.msra.mxu0 0.0
    %1668 = vmatprep.subr.mxu0 0.0
    %1669 = vmatpush2.msra.mxu0 0.0
    %1670 = vmatprep.subr.mxu0 0.0
    %1671 = vmatpush2.msra.mxu0 0.0
    %1672 = vmatprep.subr.mxu0 0.0
    %1673 = vmatpush2.msra.mxu0 0.0
    %1674 = vmatprep.subr.mxu0 0.0
    %1675 = vmatpush2.msra.mxu0 0.0
    %1676 = vmatprep.subr.mxu0 0.0
    %1677 = vmatpush2.msra.mxu0 0.0
    %1678 = vmatprep.subr.mxu0 0.0
    %1679 = vmatpush2.msra.mxu0 0.0
    %1680 = vmatprep.mubr.f32.mxu0 0.0
    %1681 = vmatmul.mubr.f32.gmra.mxu0 %v642
    %v1682 = vpop.f32.mrf.mxu0
    %v1683 = vadd.f32 0.0, %v1682
    %v1684 = vpop.f32.mrf.mxu0
    %1685 = vdwg.mxu0
    %v1686 = vmul.f32 %v69, %v1536
    %v1687 = vmul.f32 %v72, %v1615
    %v1688 = vadd.f32 %v1686, %v1687
    %1689 = vmatprep.subr.mxu0 0.0
    %1690 = vmatpush1.msra.mxu0 0.0
    %1691 = vmatprep.subr.mxu0 0.0
    %1692 = vmatpush1.msra.mxu0 0.0
    %1693 = vmatprep.subr.mxu0 0.0
    %1694 = vmatpush1.msra.mxu0 0.0
    %1695 = vmatprep.subr.mxu0 0.0
    %1696 = vmatpush1.msra.mxu0 0.0
    %1697 = vmatprep.subr.mxu0 0.0
    %1698 = vmatpush1.msra.mxu0 0.0
    %1699 = vmatprep.subr.mxu0 0.0
    %1700 = vmatpush1.msra.mxu0 0.0
    %1701 = vmatprep.subr.mxu0 0.0
    %1702 = vmatpush1.msra.mxu0 0.0
    %1703 = vmatprep.subr.mxu0 0.0
    %1704 = vmatpush1.msra.mxu0 0.0
    %1705 = vmatprep.subr.mxu0 0.0
    %1706 = vmatpush1.msra.mxu0 0.0
    %1707 = vmatprep.subr.mxu0 0.0
    %1708 = vmatpush1.msra.mxu0 0.0
    %1709 = vmatprep.subr.mxu0 0.0
    %1710 = vmatpush1.msra.mxu0 0.0
    %1711 = vmatprep.subr.mxu0 0.0
    %1712 = vmatpush1.msra.mxu0 0.0
    %1713 = vmatprep.subr.mxu0 0.0
    %1714 = vmatpush1.msra.mxu0 0.0
    %1715 = vmatprep.subr.mxu0 0.0
    %1716 = vmatpush1.msra.mxu0 0.0
    %1717 = vmatprep.subr.mxu0 0.0
    %1718 = vmatpush1.msra.mxu0 %v81
    %1719 = vmatprep.subr.mxu0 0.0
    %1720 = vmatpush1.msra.mxu0 %v80
    %1721 = vmatprep.subr.mxu0 0.0
    %1722 = vmatpush2.msra.mxu0 0.0
    %1723 = vmatprep.subr.mxu0 0.0
    %1724 = vmatpush2.msra.mxu0 0.0
    %1725 = vmatprep.subr.mxu0 0.0
    %1726 = vmatpush2.msra.mxu0 0.0
    %1727 = vmatprep.subr.mxu0 0.0
    %1728 = vmatpush2.msra.mxu0 0.0
    %1729 = vmatprep.subr.mxu0 0.0
    %1730 = vmatpush2.msra.mxu0 0.0
    %1731 = vmatprep.subr.mxu0 0.0
    %1732 = vmatpush2.msra.mxu0 0.0
    %1733 = vmatprep.subr.mxu0 0.0
    %1734 = vmatpush2.msra.mxu0 0.0
    %1735 = vmatprep.subr.mxu0 0.0
    %1736 = vmatpush2.msra.mxu0 0.0
    %1737 = vmatprep.subr.mxu0 0.0
    %1738 = vmatpush2.msra.mxu0 0.0
    %1739 = vmatprep.subr.mxu0 0.0
    %1740 = vmatpush2.msra.mxu0 0.0
    %1741 = vmatprep.subr.mxu0 0.0
    %1742 = vmatpush2.msra.mxu0 0.0
    %1743 = vmatprep.subr.mxu0 0.0
    %1744 = vmatpush2.msra.mxu0 0.0
    %1745 = vmatprep.subr.mxu0 0.0
    %1746 = vmatpush2.msra.mxu0 0.0
    %1747 = vmatprep.subr.mxu0 0.0
    %1748 = vmatpush2.msra.mxu0 0.0
    %1749 = vmatprep.subr.mxu0 0.0
    %1750 = vmatpush2.msra.mxu0 0.0
    %1751 = vmatprep.subr.mxu0 0.0
    %1752 = vmatpush2.msra.mxu0 0.0
    %1753 = vmatprep.mubr.f32.mxu0 0.0
    %1754 = vmatmul.mubr.f32.gmra.mxu0 %v525
    %v1755 = vpop.f32.mrf.mxu0
    %v1756 = vadd.f32 0.0, %v1755
    %v1757 = vpop.f32.mrf.mxu0
    %1758 = vdwg.mxu0
    %v1760 = vsel %vm82, %v1756, 0
    %1762 = vmatprep.subr.mxu0 0.0
    %1763 = vmatpush1.msra.mxu0 0.0
    %1764 = vmatprep.subr.mxu0 0.0
    %1765 = vmatpush1.msra.mxu0 0.0
    %1766 = vmatprep.subr.mxu0 0.0
    %1767 = vmatpush1.msra.mxu0 0.0
    %1768 = vmatprep.subr.mxu0 0.0
    %1769 = vmatpush1.msra.mxu0 0.0
    %1770 = vmatprep.subr.mxu0 0.0
    %1771 = vmatpush1.msra.mxu0 0.0
    %1772 = vmatprep.subr.mxu0 0.0
    %1773 = vmatpush1.msra.mxu0 0.0
    %1774 = vmatprep.subr.mxu0 0.0
    %1775 = vmatpush1.msra.mxu0 0.0
    %1776 = vmatprep.subr.mxu0 0.0
    %1777 = vmatpush1.msra.mxu0 0.0
    %1778 = vmatprep.subr.mxu0 0.0
    %1779 = vmatpush1.msra.mxu0 0.0
    %1780 = vmatprep.subr.mxu0 0.0
    %1781 = vmatpush1.msra.mxu0 0.0
    %1782 = vmatprep.subr.mxu0 0.0
    %1783 = vmatpush1.msra.mxu0 0.0
    %1784 = vmatprep.subr.mxu0 0.0
    %1785 = vmatpush1.msra.mxu0 0.0
    %1786 = vmatprep.subr.mxu0 0.0
    %1787 = vmatpush1.msra.mxu0 0.0
    %1788 = vmatprep.subr.mxu0 0.0
    %1789 = vmatpush1.msra.mxu0 0.0
    %1790 = vmatprep.subr.mxu0 0.0
    %1791 = vmatpush1.msra.mxu0 %v491
    %1792 = vmatprep.subr.mxu0 0.0
    %1793 = vmatpush1.msra.mxu0 %v490
    %1794 = vmatprep.subr.mxu0 0.0
    %1795 = vmatpush2.msra.mxu0 0.0
    %1796 = vmatprep.subr.mxu0 0.0
    %1797 = vmatpush2.msra.mxu0 0.0
    %1798 = vmatprep.subr.mxu0 0.0
    %1799 = vmatpush2.msra.mxu0 0.0
    %1800 = vmatprep.subr.mxu0 0.0
    %1801 = vmatpush2.msra.mxu0 0.0
    %1802 = vmatprep.subr.mxu0 0.0
    %1803 = vmatpush2.msra.mxu0 0.0
    %1804 = vmatprep.subr.mxu0 0.0
    %1805 = vmatpush2.msra.mxu0 0.0
    %1806 = vmatprep.subr.mxu0 0.0
    %1807 = vmatpush2.msra.mxu0 0.0
    %1808 = vmatprep.subr.mxu0 0.0
    %1809 = vmatpush2.msra.mxu0 0.0
    %1810 = vmatprep.subr.mxu0 0.0
    %1811 = vmatpush2.msra.mxu0 0.0
    %1812 = vmatprep.subr.mxu0 0.0
    %1813 = vmatpush2.msra.mxu0 0.0
    %1814 = vmatprep.subr.mxu0 0.0
    %1815 = vmatpush2.msra.mxu0 0.0
    %1816 = vmatprep.subr.mxu0 0.0
    %1817 = vmatpush2.msra.mxu0 0.0
    %1818 = vmatprep.subr.mxu0 0.0
    %1819 = vmatpush2.msra.mxu0 0.0
    %1820 = vmatprep.subr.mxu0 0.0
    %1821 = vmatpush2.msra.mxu0 0.0
    %1822 = vmatprep.subr.mxu0 0.0
    %1823 = vmatpush2.msra.mxu0 0.0
    %1824 = vmatprep.subr.mxu0 0.0
    %1825 = vmatpush2.msra.mxu0 0.0
    %1826 = vmatprep.mubr.f32.mxu0 0.0
    %1827 = vmatmul.mubr.f32.gmra.mxu0 %v1760
    %v1828 = vpop.f32.mrf.mxu0
    %v1829 = vadd.f32 0.0, %v1828
    %v1830 = vpop.f32.mrf.mxu0
    %1831 = vdwg.mxu0
    %1832 = vmatprep.subr.mxu0 0.0
    %1833 = vmatpush1.msra.mxu0 0.0
    %1834 = vmatprep.subr.mxu0 0.0
    %1835 = vmatpush1.msra.mxu0 0.0
    %1836 = vmatprep.subr.mxu0 0.0
    %1837 = vmatpush1.msra.mxu0 0.0
    %1838 = vmatprep.subr.mxu0 0.0
    %1839 = vmatpush1.msra.mxu0 0.0
    %1840 = vmatprep.subr.mxu0 0.0
    %1841 = vmatpush1.msra.mxu0 0.0
    %1842 = vmatprep.subr.mxu0 0.0
    %1843 = vmatpush1.msra.mxu0 0.0
    %1844 = vmatprep.subr.mxu0 0.0
    %1845 = vmatpush1.msra.mxu0 0.0
    %1846 = vmatprep.subr.mxu0 0.0
    %1847 = vmatpush1.msra.mxu0 0.0
    %1848 = vmatprep.subr.mxu0 0.0
    %1849 = vmatpush1.msra.mxu0 0.0
    %1850 = vmatprep.subr.mxu0 0.0
    %1851 = vmatpush1.msra.mxu0 0.0
    %1852 = vmatprep.subr.mxu0 0.0
    %1853 = vmatpush1.msra.mxu0 0.0
    %1854 = vmatprep.subr.mxu0 0.0
    %1855 = vmatpush1.msra.mxu0 0.0
    %1856 = vmatprep.subr.mxu0 0.0
    %1857 = vmatpush1.msra.mxu0 0.0
    %1858 = vmatprep.subr.mxu0 0.0
    %1859 = vmatpush1.msra.mxu0 0.0
    %1860 = vmatprep.subr.mxu0 0.0
    %1861 = vmatpush1.msra.mxu0 %v166
    %1862 = vmatprep.subr.mxu0 0.0
    %1863 = vmatpush1.msra.mxu0 %v165
    %1864 = vmatprep.subr.mxu0 0.0
    %1865 = vmatpush2.msra.mxu0 0.0
    %1866 = vmatprep.subr.mxu0 0.0
    %1867 = vmatpush2.msra.mxu0 0.0
    %1868 = vmatprep.subr.mxu0 0.0
    %1869 = vmatpush2.msra.mxu0 0.0
    %1870 = vmatprep.subr.mxu0 0.0
    %1871 = vmatpush2.msra.mxu0 0.0
    %1872 = vmatprep.subr.mxu0 0.0
    %1873 = vmatpush2.msra.mxu0 0.0
    %1874 = vmatprep.subr.mxu0 0.0
    %1875 = vmatpush2.msra.mxu0 0.0
    %1876 = vmatprep.subr.mxu0 0.0
    %1877 = vmatpush2.msra.mxu0 0.0
    %1878 = vmatprep.subr.mxu0 0.0
    %1879 = vmatpush2.msra.mxu0 0.0
    %1880 = vmatprep.subr.mxu0 0.0
    %1881 = vmatpush2.msra.mxu0 0.0
    %1882 = vmatprep.subr.mxu0 0.0
    %1883 = vmatpush2.msra.mxu0 0.0
    %1884 = vmatprep.subr.mxu0 0.0
    %1885 = vmatpush2.msra.mxu0 0.0
    %1886 = vmatprep.subr.mxu0 0.0
    %1887 = vmatpush2.msra.mxu0 0.0
    %1888 = vmatprep.subr.mxu0 0.0
    %1889 = vmatpush2.msra.mxu0 0.0
    %1890 = vmatprep.subr.mxu0 0.0
    %1891 = vmatpush2.msra.mxu0 0.0
    %1892 = vmatprep.subr.mxu0 0.0
    %1893 = vmatpush2.msra.mxu0 0.0
    %1894 = vmatprep.subr.mxu0 0.0
    %1895 = vmatpush2.msra.mxu0 0.0
    %1896 = vmatprep.mubr.f32.mxu0 0.0
    %1897 = vmatmul.mubr.f32.gmra.mxu0 %v642
    %v1898 = vpop.f32.mrf.mxu0
    %v1899 = vadd.f32 0.0, %v1898
    %v1900 = vpop.f32.mrf.mxu0
    %1901 = vdwg.mxu0
    %v1903 = vsel %vm82, %v1899, 0
    %1905 = vmatprep.subr.mxu0 0.0
    %1906 = vmatpush1.msra.mxu0 0.0
    %1907 = vmatprep.subr.mxu0 0.0
    %1908 = vmatpush1.msra.mxu0 0.0
    %1909 = vmatprep.subr.mxu0 0.0
    %1910 = vmatpush1.msra.mxu0 0.0
    %1911 = vmatprep.subr.mxu0 0.0
    %1912 = vmatpush1.msra.mxu0 0.0
    %1913 = vmatprep.subr.mxu0 0.0
    %1914 = vmatpush1.msra.mxu0 0.0
    %1915 = vmatprep.subr.mxu0 0.0
    %1916 = vmatpush1.msra.mxu0 0.0
    %1917 = vmatprep.subr.mxu0 0.0
    %1918 = vmatpush1.msra.mxu0 0.0
    %1919 = vmatprep.subr.mxu0 0.0
    %1920 = vmatpush1.msra.mxu0 0.0
    %1921 = vmatprep.subr.mxu0 0.0
    %1922 = vmatpush1.msra.mxu0 0.0
    %1923 = vmatprep.subr.mxu0 0.0
    %1924 = vmatpush1.msra.mxu0 0.0
    %1925 = vmatprep.subr.mxu0 0.0
    %1926 = vmatpush1.msra.mxu0 0.0
    %1927 = vmatprep.subr.mxu0 0.0
    %1928 = vmatpush1.msra.mxu0 0.0
    %1929 = vmatprep.subr.mxu0 0.0
    %1930 = vmatpush1.msra.mxu0 0.0
    %1931 = vmatprep.subr.mxu0 0.0
    %1932 = vmatpush1.msra.mxu0 0.0
    %1933 = vmatprep.subr.mxu0 0.0
    %1934 = vmatpush1.msra.mxu0 %v608
    %1935 = vmatprep.subr.mxu0 0.0
    %1936 = vmatpush1.msra.mxu0 %v607
    %1937 = vmatprep.subr.mxu0 0.0
    %1938 = vmatpush2.msra.mxu0 0.0
    %1939 = vmatprep.subr.mxu0 0.0
    %1940 = vmatpush2.msra.mxu0 0.0
    %1941 = vmatprep.subr.mxu0 0.0
    %1942 = vmatpush2.msra.mxu0 0.0
    %1943 = vmatprep.subr.mxu0 0.0
    %1944 = vmatpush2.msra.mxu0 0.0
    %1945 = vmatprep.subr.mxu0 0.0
    %1946 = vmatpush2.msra.mxu0 0.0
    %1947 = vmatprep.subr.mxu0 0.0
    %1948 = vmatpush2.msra.mxu0 0.0
    %1949 = vmatprep.subr.mxu0 0.0
    %1950 = vmatpush2.msra.mxu0 0.0
    %1951 = vmatprep.subr.mxu0 0.0
    %1952 = vmatpush2.msra.mxu0 0.0
    %1953 = vmatprep.subr.mxu0 0.0
    %1954 = vmatpush2.msra.mxu0 0.0
    %1955 = vmatprep.subr.mxu0 0.0
    %1956 = vmatpush2.msra.mxu0 0.0
    %1957 = vmatprep.subr.mxu0 0.0
    %1958 = vmatpush2.msra.mxu0 0.0
    %1959 = vmatprep.subr.mxu0 0.0
    %1960 = vmatpush2.msra.mxu0 0.0
    %1961 = vmatprep.subr.mxu0 0.0
    %1962 = vmatpush2.msra.mxu0 0.0
    %1963 = vmatprep.subr.mxu0 0.0
    %1964 = vmatpush2.msra.mxu0 0.0
    %1965 = vmatprep.subr.mxu0 0.0
    %1966 = vmatpush2.msra.mxu0 0.0
    %1967 = vmatprep.subr.mxu0 0.0
    %1968 = vmatpush2.msra.mxu0 0.0
    %1969 = vmatprep.mubr.f32.mxu0 0.0
    %1970 = vmatmul.mubr.f32.gmra.mxu0 %v1903
    %v1971 = vpop.f32.mrf.mxu0
    %v1972 = vadd.f32 0.0, %v1971
    %v1973 = vpop.f32.mrf.mxu0
    %1974 = vdwg.mxu0
    %v1975 = vld [vmem:[#allocation6 + $0x40] sm:$0xff]
    %v1976 = vld [vmem:[#allocation6 + $0x48] sm:$0xff]
    %v1977 = vld [vmem:[#allocation6 + $0x50] sm:$0xff]
    %v1978 = vld [vmem:[#allocation6 + $0x58] sm:$0xff]
    %v1979 = vld [vmem:[#allocation6 + $0x60] sm:$0xff]
    %v1980 = vld [vmem:[#allocation6 + $0x68] sm:$0xff]
    %v1981 = vld [vmem:[#allocation6 + $0x70] sm:$0x1]
    %v1983 = vsel %vm82, %v1157, 0
    %1985 = vmatprep.subr.mxu0 0.0
    %1986 = vmatpush1.msra.mxu0 0.0
    %1987 = vmatprep.subr.mxu0 0.0
    %1988 = vmatpush1.msra.mxu0 0.0
    %1989 = vmatprep.subr.mxu0 0.0
    %1990 = vmatpush1.msra.mxu0 0.0
    %1991 = vmatprep.subr.mxu0 0.0
    %1992 = vmatpush1.msra.mxu0 0.0
    %1993 = vmatprep.subr.mxu0 0.0
    %1994 = vmatpush1.msra.mxu0 0.0
    %1995 = vmatprep.subr.mxu0 0.0
    %1996 = vmatpush1.msra.mxu0 0.0
    %1997 = vmatprep.subr.mxu0 0.0
    %1998 = vmatpush1.msra.mxu0 0.0
    %1999 = vmatprep.subr.mxu0 0.0
    %2000 = vmatpush1.msra.mxu0 0.0
    %2001 = vmatprep.subr.mxu0 0.0
    %2002 = vmatpush1.msra.mxu0 0.0
    %2003 = vmatprep.subr.mxu0 0.0
    %2004 = vmatpush1.msra.mxu0 0.0
    %2005 = vmatprep.subr.mxu0 0.0
    %2006 = vmatpush1.msra.mxu0 0.0
    %2007 = vmatprep.subr.mxu0 0.0
    %2008 = vmatpush1.msra.mxu0 0.0
    %2009 = vmatprep.subr.mxu0 0.0
    %2010 = vmatpush1.msra.mxu0 0.0
    %2011 = vmatprep.subr.mxu0 0.0
    %2012 = vmatpush1.msra.mxu0 0.0
    %2013 = vmatprep.subr.mxu0 0.0
    %2014 = vmatpush1.msra.mxu0 %v1978
    %2015 = vmatprep.subr.mxu0 0.0
    %2016 = vmatpush1.msra.mxu0 %v1977
    %2017 = vmatprep.subr.mxu0 0.0
    %2018 = vmatpush2.msra.mxu0 0.0
    %2019 = vmatprep.subr.mxu0 0.0
    %2020 = vmatpush2.msra.mxu0 0.0
    %2021 = vmatprep.subr.mxu0 0.0
    %2022 = vmatpush2.msra.mxu0 0.0
    %2023 = vmatprep.subr.mxu0 0.0
    %2024 = vmatpush2.msra.mxu0 0.0
    %2025 = vmatprep.subr.mxu0 0.0
    %2026 = vmatpush2.msra.mxu0 0.0
    %2027 = vmatprep.subr.mxu0 0.0
    %2028 = vmatpush2.msra.mxu0 0.0
    %2029 = vmatprep.subr.mxu0 0.0
    %2030 = vmatpush2.msra.mxu0 0.0
    %2031 = vmatprep.subr.mxu0 0.0
    %2032 = vmatpush2.msra.mxu0 0.0
    %2033 = vmatprep.subr.mxu0 0.0
    %2034 = vmatpush2.msra.mxu0 0.0
    %2035 = vmatprep.subr.mxu0 0.0
    %2036 = vmatpush2.msra.mxu0 0.0
    %2037 = vmatprep.subr.mxu0 0.0
    %2038 = vmatpush2.msra.mxu0 0.0
    %2039 = vmatprep.subr.mxu0 0.0
    %2040 = vmatpush2.msra.mxu0 0.0
    %2041 = vmatprep.subr.mxu0 0.0
    %2042 = vmatpush2.msra.mxu0 0.0
    %2043 = vmatprep.subr.mxu0 0.0
    %2044 = vmatpush2.msra.mxu0 0.0
    %2045 = vmatprep.subr.mxu0 0.0
    %2046 = vmatpush2.msra.mxu0 0.0
    %2047 = vmatprep.subr.mxu0 0.0
    %2048 = vmatpush2.msra.mxu0 0.0
    %2049 = vmatprep.mubr.f32.mxu0 0.0
    %2050 = vmatmul.mubr.f32.gmra.mxu0 %v1983
    %v2051 = vpop.f32.mrf.mxu0
    %v2052 = vadd.f32 0.0, %v2051
    %v2053 = vpop.f32.mrf.mxu0
    %2054 = vdwg.mxu0
    %v2056 = vsel %vm82, %v594, 0
    %2058 = vmatprep.subr.mxu0 0.0
    %2059 = vmatpush1.msra.mxu0 0.0
    %2060 = vmatprep.subr.mxu0 0.0
    %2061 = vmatpush1.msra.mxu0 0.0
    %2062 = vmatprep.subr.mxu0 0.0
    %2063 = vmatpush1.msra.mxu0 0.0
    %2064 = vmatprep.subr.mxu0 0.0
    %2065 = vmatpush1.msra.mxu0 0.0
    %2066 = vmatprep.subr.mxu0 0.0
    %2067 = vmatpush1.msra.mxu0 0.0
    %2068 = vmatprep.subr.mxu0 0.0
    %2069 = vmatpush1.msra.mxu0 0.0
    %2070 = vmatprep.subr.mxu0 0.0
    %2071 = vmatpush1.msra.mxu0 0.0
    %2072 = vmatprep.subr.mxu0 0.0
    %2073 = vmatpush1.msra.mxu0 0.0
    %2074 = vmatprep.subr.mxu0 0.0
    %2075 = vmatpush1.msra.mxu0 0.0
    %2076 = vmatprep.subr.mxu0 0.0
    %2077 = vmatpush1.msra.mxu0 0.0
    %2078 = vmatprep.subr.mxu0 0.0
    %2079 = vmatpush1.msra.mxu0 0.0
    %2080 = vmatprep.subr.mxu0 0.0
    %2081 = vmatpush1.msra.mxu0 0.0
    %2082 = vmatprep.subr.mxu0 0.0
    %2083 = vmatpush1.msra.mxu0 0.0
    %2084 = vmatprep.subr.mxu0 0.0
    %2085 = vmatpush1.msra.mxu0 0.0
    %2086 = vmatprep.subr.mxu0 0.0
    %2087 = vmatpush1.msra.mxu0 %v1976
    %2088 = vmatprep.subr.mxu0 0.0
    %2089 = vmatpush1.msra.mxu0 %v1975
    %2090 = vmatprep.subr.mxu0 0.0
    %2091 = vmatpush2.msra.mxu0 0.0
    %2092 = vmatprep.subr.mxu0 0.0
    %2093 = vmatpush2.msra.mxu0 0.0
    %2094 = vmatprep.subr.mxu0 0.0
    %2095 = vmatpush2.msra.mxu0 0.0
    %2096 = vmatprep.subr.mxu0 0.0
    %2097 = vmatpush2.msra.mxu0 0.0
    %2098 = vmatprep.subr.mxu0 0.0
    %2099 = vmatpush2.msra.mxu0 0.0
    %2100 = vmatprep.subr.mxu0 0.0
    %2101 = vmatpush2.msra.mxu0 0.0
    %2102 = vmatprep.subr.mxu0 0.0
    %2103 = vmatpush2.msra.mxu0 0.0
    %2104 = vmatprep.subr.mxu0 0.0
    %2105 = vmatpush2.msra.mxu0 0.0
    %2106 = vmatprep.subr.mxu0 0.0
    %2107 = vmatpush2.msra.mxu0 0.0
    %2108 = vmatprep.subr.mxu0 0.0
    %2109 = vmatpush2.msra.mxu0 0.0
    %2110 = vmatprep.subr.mxu0 0.0
    %2111 = vmatpush2.msra.mxu0 0.0
    %2112 = vmatprep.subr.mxu0 0.0
    %2113 = vmatpush2.msra.mxu0 0.0
    %2114 = vmatprep.subr.mxu0 0.0
    %2115 = vmatpush2.msra.mxu0 0.0
    %2116 = vmatprep.subr.mxu0 0.0
    %2117 = vmatpush2.msra.mxu0 0.0
    %2118 = vmatprep.subr.mxu0 0.0
    %2119 = vmatpush2.msra.mxu0 0.0
    %2120 = vmatprep.subr.mxu0 0.0
    %2121 = vmatpush2.msra.mxu0 0.0
    %2122 = vmatprep.mubr.f32.mxu0 0.0
    %2123 = vmatmul.mubr.f32.gmra.mxu0 %v2056
    %v2124 = vpop.f32.mrf.mxu0
    %v2125 = vadd.f32 %v2052, %v2124
    %v2126 = vpop.f32.mrf.mxu0
    %2127 = vdwg.mxu0
    %v2129 = vsel %vm82, %v1604, 0
    %2131 = vmatprep.subr.mxu0 0.0
    %2132 = vmatpush1.msra.mxu0 0.0
    %2133 = vmatprep.subr.mxu0 0.0
    %2134 = vmatpush1.msra.mxu0 0.0
    %2135 = vmatprep.subr.mxu0 0.0
    %2136 = vmatpush1.msra.mxu0 0.0
    %2137 = vmatprep.subr.mxu0 0.0
    %2138 = vmatpush1.msra.mxu0 0.0
    %2139 = vmatprep.subr.mxu0 0.0
    %2140 = vmatpush1.msra.mxu0 0.0
    %2141 = vmatprep.subr.mxu0 0.0
    %2142 = vmatpush1.msra.mxu0 0.0
    %2143 = vmatprep.subr.mxu0 0.0
    %2144 = vmatpush1.msra.mxu0 0.0
    %2145 = vmatprep.subr.mxu0 0.0
    %2146 = vmatpush1.msra.mxu0 0.0
    %2147 = vmatprep.subr.mxu0 0.0
    %2148 = vmatpush1.msra.mxu0 0.0
    %2149 = vmatprep.subr.mxu0 0.0
    %2150 = vmatpush1.msra.mxu0 0.0
    %2151 = vmatprep.subr.mxu0 0.0
    %2152 = vmatpush1.msra.mxu0 0.0
    %2153 = vmatprep.subr.mxu0 0.0
    %2154 = vmatpush1.msra.mxu0 0.0
    %2155 = vmatprep.subr.mxu0 0.0
    %2156 = vmatpush1.msra.mxu0 0.0
    %2157 = vmatprep.subr.mxu0 0.0
    %2158 = vmatpush1.msra.mxu0 0.0
    %2159 = vmatprep.subr.mxu0 0.0
    %2160 = vmatpush1.msra.mxu0 %v1980
    %2161 = vmatprep.subr.mxu0 0.0
    %2162 = vmatpush1.msra.mxu0 %v1979
    %2163 = vmatprep.subr.mxu0 0.0
    %2164 = vmatpush2.msra.mxu0 0.0
    %2165 = vmatprep.subr.mxu0 0.0
    %2166 = vmatpush2.msra.mxu0 0.0
    %2167 = vmatprep.subr.mxu0 0.0
    %2168 = vmatpush2.msra.mxu0 0.0
    %2169 = vmatprep.subr.mxu0 0.0
    %2170 = vmatpush2.msra.mxu0 0.0
    %2171 = vmatprep.subr.mxu0 0.0
    %2172 = vmatpush2.msra.mxu0 0.0
    %2173 = vmatprep.subr.mxu0 0.0
    %2174 = vmatpush2.msra.mxu0 0.0
    %2175 = vmatprep.subr.mxu0 0.0
    %2176 = vmatpush2.msra.mxu0 0.0
    %2177 = vmatprep.subr.mxu0 0.0
    %2178 = vmatpush2.msra.mxu0 0.0
    %2179 = vmatprep.subr.mxu0 0.0
    %2180 = vmatpush2.msra.mxu0 0.0
    %2181 = vmatprep.subr.mxu0 0.0
    %2182 = vmatpush2.msra.mxu0 0.0
    %2183 = vmatprep.subr.mxu0 0.0
    %2184 = vmatpush2.msra.mxu0 0.0
    %2185 = vmatprep.subr.mxu0 0.0
    %2186 = vmatpush2.msra.mxu0 0.0
    %2187 = vmatprep.subr.mxu0 0.0
    %2188 = vmatpush2.msra.mxu0 0.0
    %2189 = vmatprep.subr.mxu0 0.0
    %2190 = vmatpush2.msra.mxu0 0.0
    %2191 = vmatprep.subr.mxu0 0.0
    %2192 = vmatpush2.msra.mxu0 0.0
    %2193 = vmatprep.subr.mxu0 0.0
    %2194 = vmatpush2.msra.mxu0 0.0
    %2195 = vmatprep.mubr.f32.mxu0 0.0
    %2196 = vmatmul.mubr.f32.gmra.mxu0 %v2129
    %v2197 = vpop.f32.mrf.mxu0
    %v2198 = vadd.f32 0.0, %v2197
    %v2199 = vpop.f32.mrf.mxu0
    %2200 = vdwg.mxu0
    %v2201 = vadd.f32 %v2125, %v2198
    %v2202 = vlaneseq
    %v2203 = vshrl.u32 %v2202, 7
    %v2204 = vsub.s32 0, %v2203
    %v2205 = vrot.slane %v1981, %v2204
    %vm2206 = vcmask 31744
    %v2208 = vsel %vm2206, %v1829, 0
    %vm2210 = vcmask 1043456
    %v2212 = vsel %vm2210, %v2201, 0
    %2214 = vmatprep.subr.mxu0 0.0
    %2215 = vmatpush1.msra.mxu0 0.0
    %2216 = vmatprep.subr.mxu0 0.0
    %2217 = vmatpush1.msra.mxu0 0.0
    %2218 = vmatprep.subr.mxu0 0.0
    %2219 = vmatpush1.msra.mxu0 0.0
    %2220 = vmatprep.subr.mxu0 0.0
    %2221 = vmatpush1.msra.mxu0 0.0
    %2222 = vmatprep.subr.mxu0 0.0
    %2223 = vmatpush1.msra.mxu0 0.0
    %2224 = vmatprep.subr.mxu0 0.0
    %2225 = vmatpush1.msra.mxu0 0.0
    %2226 = vmatprep.subr.mxu0 0.0
    %2227 = vmatpush1.msra.mxu0 0.0
    %2228 = vmatprep.subr.mxu0 0.0
    %2229 = vmatpush1.msra.mxu0 0.0
    %2230 = vmatprep.subr.mxu0 0.0
    %2231 = vmatpush1.msra.mxu0 0.0
    %2232 = vmatprep.subr.mxu0 0.0
    %2233 = vmatpush1.msra.mxu0 0.0
    %2234 = vmatprep.subr.mxu0 0.0
    %2235 = vmatpush1.msra.mxu0 0.0
    %2236 = vmatprep.subr.mxu0 0.0
    %2237 = vmatpush1.msra.mxu0 0.0
    %2238 = vmatprep.subr.mxu0 0.0
    %2239 = vmatpush1.msra.mxu0 0.0
    %2240 = vmatprep.subr.mxu0 0.0
    %2241 = vmatpush1.msra.mxu0 0.0
    %2242 = vmatprep.subr.mxu0 0.0
    %2243 = vmatpush1.msra.mxu0 0.0
    %2244 = vmatprep.subr.mxu0 0.0
    %2245 = vmatpush1.msra.mxu0 %v2212
    %2246 = vmatprep.subr.mxu0 0.0
    %2247 = vmatpush2.msra.mxu0 0.0
    %2248 = vmatprep.subr.mxu0 0.0
    %2249 = vmatpush2.msra.mxu0 0.0
    %2250 = vmatprep.subr.mxu0 0.0
    %2251 = vmatpush2.msra.mxu0 0.0
    %2252 = vmatprep.subr.mxu0 0.0
    %2253 = vmatpush2.msra.mxu0 0.0
    %2254 = vmatprep.subr.mxu0 0.0
    %2255 = vmatpush2.msra.mxu0 0.0
    %2256 = vmatprep.subr.mxu0 0.0
    %2257 = vmatpush2.msra.mxu0 0.0
    %2258 = vmatprep.subr.mxu0 0.0
    %2259 = vmatpush2.msra.mxu0 0.0
    %2260 = vmatprep.subr.mxu0 0.0
    %2261 = vmatpush2.msra.mxu0 0.0
    %2262 = vmatprep.subr.mxu0 0.0
    %2263 = vmatpush2.msra.mxu0 0.0
    %2264 = vmatprep.subr.mxu0 0.0
    %2265 = vmatpush2.msra.mxu0 0.0
    %2266 = vmatprep.subr.mxu0 0.0
    %2267 = vmatpush2.msra.mxu0 0.0
    %2268 = vmatprep.subr.mxu0 0.0
    %2269 = vmatpush2.msra.mxu0 0.0
    %2270 = vmatprep.subr.mxu0 0.0
    %2271 = vmatpush2.msra.mxu0 0.0
    %2272 = vmatprep.subr.mxu0 0.0
    %2273 = vmatpush2.msra.mxu0 0.0
    %2274 = vmatprep.subr.mxu0 0.0
    %2275 = vmatpush2.msra.mxu0 0.0
    %2276 = vmatprep.subr.mxu0 0.0
    %2277 = vmatpush2.msra.mxu0 0.0
    %2278 = vmatprep.mubr.f32.mxu0 0.0
    %2279 = vmatmul.mubr.f32.gmra.mxu0 %v2208
    %v2280 = vpop.f32.mrf.mxu0
    %v2281 = vadd.f32 %v2205, %v2280
    %v2282 = vpop.f32.mrf.mxu0
    %2283 = vdwg.mxu0
    %v2284 = vmul.f32 %v2281, %v2281
    %vm2285 = vcmask 125952
    %v2286 = vsel %vm2285, %v2284, 0.0
    %2287 = vadd.xlane.f32.xlu0 %v2286
    %v2288 = vpop.xlane.xlu0 %2287
    %v2289 = vmax.f32 %v2288, 1e-24
    %v2290 = vrsqrt.pop %v2289
    %v2291 = vmul.f32 %v2281, %v2290
    %v2292 = vmax.f32 %v2291, 0.0
    %v2294 = vsel %vm82, %v1236, 0
    %2296 = vmatprep.subr.mxu0 0.0
    %2297 = vmatpush1.msra.mxu0 0.0
    %2298 = vmatprep.subr.mxu0 0.0
    %2299 = vmatpush1.msra.mxu0 0.0
    %2300 = vmatprep.subr.mxu0 0.0
    %2301 = vmatpush1.msra.mxu0 0.0
    %2302 = vmatprep.subr.mxu0 0.0
    %2303 = vmatpush1.msra.mxu0 0.0
    %2304 = vmatprep.subr.mxu0 0.0
    %2305 = vmatpush1.msra.mxu0 0.0
    %2306 = vmatprep.subr.mxu0 0.0
    %2307 = vmatpush1.msra.mxu0 0.0
    %2308 = vmatprep.subr.mxu0 0.0
    %2309 = vmatpush1.msra.mxu0 0.0
    %2310 = vmatprep.subr.mxu0 0.0
    %2311 = vmatpush1.msra.mxu0 0.0
    %2312 = vmatprep.subr.mxu0 0.0
    %2313 = vmatpush1.msra.mxu0 0.0
    %2314 = vmatprep.subr.mxu0 0.0
    %2315 = vmatpush1.msra.mxu0 0.0
    %2316 = vmatprep.subr.mxu0 0.0
    %2317 = vmatpush1.msra.mxu0 0.0
    %2318 = vmatprep.subr.mxu0 0.0
    %2319 = vmatpush1.msra.mxu0 0.0
    %2320 = vmatprep.subr.mxu0 0.0
    %2321 = vmatpush1.msra.mxu0 0.0
    %2322 = vmatprep.subr.mxu0 0.0
    %2323 = vmatpush1.msra.mxu0 0.0
    %2324 = vmatprep.subr.mxu0 0.0
    %2325 = vmatpush1.msra.mxu0 %v1978
    %2326 = vmatprep.subr.mxu0 0.0
    %2327 = vmatpush1.msra.mxu0 %v1977
    %2328 = vmatprep.subr.mxu0 0.0
    %2329 = vmatpush2.msra.mxu0 0.0
    %2330 = vmatprep.subr.mxu0 0.0
    %2331 = vmatpush2.msra.mxu0 0.0
    %2332 = vmatprep.subr.mxu0 0.0
    %2333 = vmatpush2.msra.mxu0 0.0
    %2334 = vmatprep.subr.mxu0 0.0
    %2335 = vmatpush2.msra.mxu0 0.0
    %2336 = vmatprep.subr.mxu0 0.0
    %2337 = vmatpush2.msra.mxu0 0.0
    %2338 = vmatprep.subr.mxu0 0.0
    %2339 = vmatpush2.msra.mxu0 0.0
    %2340 = vmatprep.subr.mxu0 0.0
    %2341 = vmatpush2.msra.mxu0 0.0
    %2342 = vmatprep.subr.mxu0 0.0
    %2343 = vmatpush2.msra.mxu0 0.0
    %2344 = vmatprep.subr.mxu0 0.0
    %2345 = vmatpush2.msra.mxu0 0.0
    %2346 = vmatprep.subr.mxu0 0.0
    %2347 = vmatpush2.msra.mxu0 0.0
    %2348 = vmatprep.subr.mxu0 0.0
    %2349 = vmatpush2.msra.mxu0 0.0
    %2350 = vmatprep.subr.mxu0 0.0
    %2351 = vmatpush2.msra.mxu0 0.0
    %2352 = vmatprep.subr.mxu0 0.0
    %2353 = vmatpush2.msra.mxu0 0.0
    %2354 = vmatprep.subr.mxu0 0.0
    %2355 = vmatpush2.msra.mxu0 0.0
    %2356 = vmatprep.subr.mxu0 0.0
    %2357 = vmatpush2.msra.mxu0 0.0
    %2358 = vmatprep.subr.mxu0 0.0
    %2359 = vmatpush2.msra.mxu0 0.0
    %2360 = vmatprep.mubr.f32.mxu0 0.0
    %2361 = vmatmul.mubr.f32.gmra.mxu0 %v2294
    %v2362 = vpop.f32.mrf.mxu0
    %v2363 = vadd.f32 0.0, %v2362
    %v2364 = vpop.f32.mrf.mxu0
    %2365 = vdwg.mxu0
    %v2367 = vsel %vm82, %v711, 0
    %2369 = vmatprep.subr.mxu0 0.0
    %2370 = vmatpush1.msra.mxu0 0.0
    %2371 = vmatprep.subr.mxu0 0.0
    %2372 = vmatpush1.msra.mxu0 0.0
    %2373 = vmatprep.subr.mxu0 0.0
    %2374 = vmatpush1.msra.mxu0 0.0
    %2375 = vmatprep.subr.mxu0 0.0
    %2376 = vmatpush1.msra.mxu0 0.0
    %2377 = vmatprep.subr.mxu0 0.0
    %2378 = vmatpush1.msra.mxu0 0.0
    %2379 = vmatprep.subr.mxu0 0.0
    %2380 = vmatpush1.msra.mxu0 0.0
    %2381 = vmatprep.subr.mxu0 0.0
    %2382 = vmatpush1.msra.mxu0 0.0
    %2383 = vmatprep.subr.mxu0 0.0
    %2384 = vmatpush1.msra.mxu0 0.0
    %2385 = vmatprep.subr.mxu0 0.0
    %2386 = vmatpush1.msra.mxu0 0.0
    %2387 = vmatprep.subr.mxu0 0.0
    %2388 = vmatpush1.msra.mxu0 0.0
    %2389 = vmatprep.subr.mxu0 0.0
    %2390 = vmatpush1.msra.mxu0 0.0
    %2391 = vmatprep.subr.mxu0 0.0
    %2392 = vmatpush1.msra.mxu0 0.0
    %2393 = vmatprep.subr.mxu0 0.0
    %2394 = vmatpush1.msra.mxu0 0.0
    %2395 = vmatprep.subr.mxu0 0.0
    %2396 = vmatpush1.msra.mxu0 0.0
    %2397 = vmatprep.subr.mxu0 0.0
    %2398 = vmatpush1.msra.mxu0 %v1976
    %2399 = vmatprep.subr.mxu0 0.0
    %2400 = vmatpush1.msra.mxu0 %v1975
    %2401 = vmatprep.subr.mxu0 0.0
    %2402 = vmatpush2.msra.mxu0 0.0
    %2403 = vmatprep.subr.mxu0 0.0
    %2404 = vmatpush2.msra.mxu0 0.0
    %2405 = vmatprep.subr.mxu0 0.0
    %2406 = vmatpush2.msra.mxu0 0.0
    %2407 = vmatprep.subr.mxu0 0.0
    %2408 = vmatpush2.msra.mxu0 0.0
    %2409 = vmatprep.subr.mxu0 0.0
    %2410 = vmatpush2.msra.mxu0 0.0
    %2411 = vmatprep.subr.mxu0 0.0
    %2412 = vmatpush2.msra.mxu0 0.0
    %2413 = vmatprep.subr.mxu0 0.0
    %2414 = vmatpush2.msra.mxu0 0.0
    %2415 = vmatprep.subr.mxu0 0.0
    %2416 = vmatpush2.msra.mxu0 0.0
    %2417 = vmatprep.subr.mxu0 0.0
    %2418 = vmatpush2.msra.mxu0 0.0
    %2419 = vmatprep.subr.mxu0 0.0
    %2420 = vmatpush2.msra.mxu0 0.0
    %2421 = vmatprep.subr.mxu0 0.0
    %2422 = vmatpush2.msra.mxu0 0.0
    %2423 = vmatprep.subr.mxu0 0.0
    %2424 = vmatpush2.msra.mxu0 0.0
    %2425 = vmatprep.subr.mxu0 0.0
    %2426 = vmatpush2.msra.mxu0 0.0
    %2427 = vmatprep.subr.mxu0 0.0
    %2428 = vmatpush2.msra.mxu0 0.0
    %2429 = vmatprep.subr.mxu0 0.0
    %2430 = vmatpush2.msra.mxu0 0.0
    %2431 = vmatprep.subr.mxu0 0.0
    %2432 = vmatpush2.msra.mxu0 0.0
    %2433 = vmatprep.mubr.f32.mxu0 0.0
    %2434 = vmatmul.mubr.f32.gmra.mxu0 %v2367
    %v2435 = vpop.f32.mrf.mxu0
    %v2436 = vadd.f32 %v2363, %v2435
    %v2437 = vpop.f32.mrf.mxu0
    %2438 = vdwg.mxu0
    %v2440 = vsel %vm82, %v1683, 0
    %2442 = vmatprep.subr.mxu0 0.0
    %2443 = vmatpush1.msra.mxu0 0.0
    %2444 = vmatprep.subr.mxu0 0.0
    %2445 = vmatpush1.msra.mxu0 0.0
    %2446 = vmatprep.subr.mxu0 0.0
    %2447 = vmatpush1.msra.mxu0 0.0
    %2448 = vmatprep.subr.mxu0 0.0
    %2449 = vmatpush1.msra.mxu0 0.0
    %2450 = vmatprep.subr.mxu0 0.0
    %2451 = vmatpush1.msra.mxu0 0.0
    %2452 = vmatprep.subr.mxu0 0.0
    %2453 = vmatpush1.msra.mxu0 0.0
    %2454 = vmatprep.subr.mxu0 0.0
    %2455 = vmatpush1.msra.mxu0 0.0
    %2456 = vmatprep.subr.mxu0 0.0
    %2457 = vmatpush1.msra.mxu0 0.0
    %2458 = vmatprep.subr.mxu0 0.0
    %2459 = vmatpush1.msra.mxu0 0.0
    %2460 = vmatprep.subr.mxu0 0.0
    %2461 = vmatpush1.msra.mxu0 0.0
    %2462 = vmatprep.subr.mxu0 0.0
    %2463 = vmatpush1.msra.mxu0 0.0
    %2464 = vmatprep.subr.mxu0 0.0
    %2465 = vmatpush1.msra.mxu0 0.0
    %2466 = vmatprep.subr.mxu0 0.0
    %2467 = vmatpush1.msra.mxu0 0.0
    %2468 = vmatprep.subr.mxu0 0.0
    %2469 = vmatpush1.msra.mxu0 0.0
    %2470 = vmatprep.subr.mxu0 0.0
    %2471 = vmatpush1.msra.mxu0 %v1980
    %2472 = vmatprep.subr.mxu0 0.0
    %2473 = vmatpush1.msra.mxu0 %v1979
    %2474 = vmatprep.subr.mxu0 0.0
    %2475 = vmatpush2.msra.mxu0 0.0
    %2476 = vmatprep.subr.mxu0 0.0
    %2477 = vmatpush2.msra.mxu0 0.0
    %2478 = vmatprep.subr.mxu0 0.0
    %2479 = vmatpush2.msra.mxu0 0.0
    %2480 = vmatprep.subr.mxu0 0.0
    %2481 = vmatpush2.msra.mxu0 0.0
    %2482 = vmatprep.subr.mxu0 0.0
    %2483 = vmatpush2.msra.mxu0 0.0
    %2484 = vmatprep.subr.mxu0 0.0
    %2485 = vmatpush2.msra.mxu0 0.0
    %2486 = vmatprep.subr.mxu0 0.0
    %2487 = vmatpush2.msra.mxu0 0.0
    %2488 = vmatprep.subr.mxu0 0.0
    %2489 = vmatpush2.msra.mxu0 0.0
    %2490 = vmatprep.subr.mxu0 0.0
    %2491 = vmatpush2.msra.mxu0 0.0
    %2492 = vmatprep.subr.mxu0 0.0
    %2493 = vmatpush2.msra.mxu0 0.0
    %2494 = vmatprep.subr.mxu0 0.0
    %2495 = vmatpush2.msra.mxu0 0.0
    %2496 = vmatprep.subr.mxu0 0.0
    %2497 = vmatpush2.msra.mxu0 0.0
    %2498 = vmatprep.subr.mxu0 0.0
    %2499 = vmatpush2.msra.mxu0 0.0
    %2500 = vmatprep.subr.mxu0 0.0
    %2501 = vmatpush2.msra.mxu0 0.0
    %2502 = vmatprep.subr.mxu0 0.0
    %2503 = vmatpush2.msra.mxu0 0.0
    %2504 = vmatprep.subr.mxu0 0.0
    %2505 = vmatpush2.msra.mxu0 0.0
    %2506 = vmatprep.mubr.f32.mxu0 0.0
    %2507 = vmatmul.mubr.f32.gmra.mxu0 %v2440
    %v2508 = vpop.f32.mrf.mxu0
    %v2509 = vadd.f32 0.0, %v2508
    %v2510 = vpop.f32.mrf.mxu0
    %2511 = vdwg.mxu0
    %v2512 = vadd.f32 %v2436, %v2509
    %v2514 = vsel %vm2206, %v1972, 0
    %v2517 = vsel %vm2210, %v2512, 0
    %2519 = vmatprep.subr.mxu0 0.0
    %2520 = vmatpush1.msra.mxu0 0.0
    %2521 = vmatprep.subr.mxu0 0.0
    %2522 = vmatpush1.msra.mxu0 0.0
    %2523 = vmatprep.subr.mxu0 0.0
    %2524 = vmatpush1.msra.mxu0 0.0
    %2525 = vmatprep.subr.mxu0 0.0
    %2526 = vmatpush1.msra.mxu0 0.0
    %2527 = vmatprep.subr.mxu0 0.0
    %2528 = vmatpush1.msra.mxu0 0.0
    %2529 = vmatprep.subr.mxu0 0.0
    %2530 = vmatpush1.msra.mxu0 0.0
    %2531 = vmatprep.subr.mxu0 0.0
    %2532 = vmatpush1.msra.mxu0 0.0
    %2533 = vmatprep.subr.mxu0 0.0
    %2534 = vmatpush1.msra.mxu0 0.0
    %2535 = vmatprep.subr.mxu0 0.0
    %2536 = vmatpush1.msra.mxu0 0.0
    %2537 = vmatprep.subr.mxu0 0.0
    %2538 = vmatpush1.msra.mxu0 0.0
    %2539 = vmatprep.subr.mxu0 0.0
    %2540 = vmatpush1.msra.mxu0 0.0
    %2541 = vmatprep.subr.mxu0 0.0
    %2542 = vmatpush1.msra.mxu0 0.0
    %2543 = vmatprep.subr.mxu0 0.0
    %2544 = vmatpush1.msra.mxu0 0.0
    %2545 = vmatprep.subr.mxu0 0.0
    %2546 = vmatpush1.msra.mxu0 0.0
    %2547 = vmatprep.subr.mxu0 0.0
    %2548 = vmatpush1.msra.mxu0 0.0
    %2549 = vmatprep.subr.mxu0 0.0
    %2550 = vmatpush1.msra.mxu0 %v2517
    %2551 = vmatprep.subr.mxu0 0.0
    %2552 = vmatpush2.msra.mxu0 0.0
    %2553 = vmatprep.subr.mxu0 0.0
    %2554 = vmatpush2.msra.mxu0 0.0
    %2555 = vmatprep.subr.mxu0 0.0
    %2556 = vmatpush2.msra.mxu0 0.0
    %2557 = vmatprep.subr.mxu0 0.0
    %2558 = vmatpush2.msra.mxu0 0.0
    %2559 = vmatprep.subr.mxu0 0.0
    %2560 = vmatpush2.msra.mxu0 0.0
    %2561 = vmatprep.subr.mxu0 0.0
    %2562 = vmatpush2.msra.mxu0 0.0
    %2563 = vmatprep.subr.mxu0 0.0
    %2564 = vmatpush2.msra.mxu0 0.0
    %2565 = vmatprep.subr.mxu0 0.0
    %2566 = vmatpush2.msra.mxu0 0.0
    %2567 = vmatprep.subr.mxu0 0.0
    %2568 = vmatpush2.msra.mxu0 0.0
    %2569 = vmatprep.subr.mxu0 0.0
    %2570 = vmatpush2.msra.mxu0 0.0
    %2571 = vmatprep.subr.mxu0 0.0
    %2572 = vmatpush2.msra.mxu0 0.0
    %2573 = vmatprep.subr.mxu0 0.0
    %2574 = vmatpush2.msra.mxu0 0.0
    %2575 = vmatprep.subr.mxu0 0.0
    %2576 = vmatpush2.msra.mxu0 0.0
    %2577 = vmatprep.subr.mxu0 0.0
    %2578 = vmatpush2.msra.mxu0 0.0
    %2579 = vmatprep.subr.mxu0 0.0
    %2580 = vmatpush2.msra.mxu0 0.0
    %2581 = vmatprep.subr.mxu0 0.0
    %2582 = vmatpush2.msra.mxu0 0.0
    %2583 = vmatprep.mubr.f32.mxu0 0.0
    %2584 = vmatmul.mubr.f32.gmra.mxu0 %v2514
    %v2585 = vpop.f32.mrf.mxu0
    %v2586 = vadd.f32 %v2205, %v2585
    %v2587 = vpop.f32.mrf.mxu0
    %2588 = vdwg.mxu0
    %v2589 = vmul.f32 %v2586, %v2586
    %v2590 = vsel %vm2285, %v2589, 0.0
    %2591 = vadd.xlane.f32.xlu0 %v2590
    %v2592 = vpop.xlane.xlu0 %2591
    %v2593 = vmax.f32 %v2592, 1e-24
    %v2594 = vrsqrt.pop %v2593
    %v2595 = vmul.f32 %v2586, %v2594
    %v2596 = vmax.f32 %v2595, 0.0
    %v2597 = vsel %vm2285, %v2292, 0.0
    %2598 = vadd.xlane.f32.xlu0 %v2597
    %v2599 = vpop.xlane.xlu0 %2598
    %v2600 = vmul.f32 %v2292, %v2292
    %v2601 = vsel %vm2285, %v2600, 0.0
    %2602 = vadd.xlane.f32.xlu0 %v2601
    %v2603 = vpop.xlane.xlu0 %2602
    %v2604 = vsel %vm2285, %v2596, 0.0
    %2605 = vadd.xlane.f32.xlu0 %v2604
    %v2606 = vpop.xlane.xlu0 %2605
    %v2607 = vmul.f32 %v2596, %v2596
    %v2608 = vsel %vm2285, %v2607, 0.0
    %2609 = vadd.xlane.f32.xlu0 %v2608
    %v2610 = vpop.xlane.xlu0 %2609
    %v2611 = vadd.f32 %v2599, %v2606
    %v2612 = vadd.f32 %v2603, %v2610
    %v2613 = vmul.f32 %v2611, %v414
    %v2614 = vmul.f32 %v2612, %v414
    %v2615 = vmul.f32 %v2613, %v2613
    %v2616 = vsub.f32 %v2614, %v2615
    %v2617 = vmax.f32 %v2616, 0.0
    %v2618 = vadd.f32 %v2617, 1e-05
    %v2619 = vrsqrt.pop %v2618
    %v2620 = vsub.f32 %v2292, %v2613
    %v2621 = vmul.f32 %v2620, %v2619
    %v2622 = vsub.f32 %v2596, %v2613
    %v2623 = vmul.f32 %v2622, %v2619
    %v2624 = vsel %vm2285, %v2621, -inf
    %v2625 = vrot.slane %v2624, 4
    %v2626 = vmax.f32 %v2624, %v2625
    %v2627 = vrot.slane %v2626, 2
    %v2628 = vmax.f32 %v2626, %v2627
    %v2629 = vrot.slane %v2628, 1
    %v2630 = vmax.f32 %v2628, %v2629
    %v2631 = vsel %vm2285, %v2623, -inf
    %v2632 = vrot.slane %v2631, 4
    %v2633 = vmax.f32 %v2631, %v2632
    %v2634 = vrot.slane %v2633, 2
    %v2635 = vmax.f32 %v2633, %v2634
    %v2636 = vrot.slane %v2635, 1
    %v2637 = vmax.f32 %v2635, %v2636
    %v2638 = vmul.f32 %v69, %v2630
    %v2639 = vmul.f32 %v72, %v2637
    %v2640 = vadd.f32 %v2638, %v2639
    %v2641 = vld [vmem:[#allocation6 + $0x78] sm:$0xff]
    %v2642 = vld [vmem:[#allocation6 + $0x80] sm:$0xff]
    %v2643 = vld [vmem:[#allocation6 + $0x88] sm:$0x1]
    %v2645 = vsel %vm2210, %v2621, 0
    %2647 = vmatprep.subr.mxu0 0.0
    %2648 = vmatpush1.msra.mxu0 0.0
    %2649 = vmatprep.subr.mxu0 0.0
    %2650 = vmatpush1.msra.mxu0 0.0
    %2651 = vmatprep.subr.mxu0 0.0
    %2652 = vmatpush1.msra.mxu0 0.0
    %2653 = vmatprep.subr.mxu0 0.0
    %2654 = vmatpush1.msra.mxu0 0.0
    %2655 = vmatprep.subr.mxu0 0.0
    %2656 = vmatpush1.msra.mxu0 0.0
    %2657 = vmatprep.subr.mxu0 0.0
    %2658 = vmatpush1.msra.mxu0 0.0
    %2659 = vmatprep.subr.mxu0 0.0
    %2660 = vmatpush1.msra.mxu0 0.0
    %2661 = vmatprep.subr.mxu0 0.0
    %2662 = vmatpush1.msra.mxu0 0.0
    %2663 = vmatprep.subr.mxu0 0.0
    %2664 = vmatpush1.msra.mxu0 0.0
    %2665 = vmatprep.subr.mxu0 0.0
    %2666 = vmatpush1.msra.mxu0 0.0
    %2667 = vmatprep.subr.mxu0 0.0
    %2668 = vmatpush1.msra.mxu0 0.0
    %2669 = vmatprep.subr.mxu0 0.0
    %2670 = vmatpush1.msra.mxu0 0.0
    %2671 = vmatprep.subr.mxu0 0.0
    %2672 = vmatpush1.msra.mxu0 0.0
    %2673 = vmatprep.subr.mxu0 0.0
    %2674 = vmatpush1.msra.mxu0 0.0
    %2675 = vmatprep.subr.mxu0 0.0
    %2676 = vmatpush1.msra.mxu0 0.0
    %2677 = vmatprep.subr.mxu0 0.0
    %2678 = vmatpush1.msra.mxu0 %v2645
    %2679 = vmatprep.subr.mxu0 0.0
    %2680 = vmatpush2.msra.mxu0 0.0
    %2681 = vmatprep.subr.mxu0 0.0
    %2682 = vmatpush2.msra.mxu0 0.0
    %2683 = vmatprep.subr.mxu0 0.0
    %2684 = vmatpush2.msra.mxu0 0.0
    %2685 = vmatprep.subr.mxu0 0.0
    %2686 = vmatpush2.msra.mxu0 0.0
    %2687 = vmatprep.subr.mxu0 0.0
    %2688 = vmatpush2.msra.mxu0 0.0
    %2689 = vmatprep.subr.mxu0 0.0
    %2690 = vmatpush2.msra.mxu0 0.0
    %2691 = vmatprep.subr.mxu0 0.0
    %2692 = vmatpush2.msra.mxu0 0.0
    %2693 = vmatprep.subr.mxu0 0.0
    %2694 = vmatpush2.msra.mxu0 0.0
    %2695 = vmatprep.subr.mxu0 0.0
    %2696 = vmatpush2.msra.mxu0 0.0
    %2697 = vmatprep.subr.mxu0 0.0
    %2698 = vmatpush2.msra.mxu0 0.0
    %2699 = vmatprep.subr.mxu0 0.0
    %2700 = vmatpush2.msra.mxu0 0.0
    %2701 = vmatprep.subr.mxu0 0.0
    %2702 = vmatpush2.msra.mxu0 0.0
    %2703 = vmatprep.subr.mxu0 0.0
    %2704 = vmatpush2.msra.mxu0 0.0
    %2705 = vmatprep.subr.mxu0 0.0
    %2706 = vmatpush2.msra.mxu0 0.0
    %2707 = vmatprep.subr.mxu0 0.0
    %2708 = vmatpush2.msra.mxu0 0.0
    %2709 = vmatprep.subr.mxu0 0.0
    %2710 = vmatpush2.msra.mxu0 0.0
    %2711 = vmatprep.mubr.f32.mxu0 0.0
    %2712 = vmatmul.mubr.f32.gmra.mxu0 %v2208
    %v2713 = vpop.f32.mrf.mxu0
    %v2714 = vadd.f32 0.0, %v2713
    %v2715 = vpop.f32.mrf.mxu0
    %2716 = vdwg.mxu0
    %v2717 = vlaneseq
    %v2718 = vshrl.u32 %v2717, 7
    %v2719 = vsub.s32 0, %v2718
    %v2720 = vrot.slane %v2643, %v2719
    %v2722 = vsel %vm82, %v2714, 0
    %2724 = vmatprep.subr.mxu0 0.0
    %2725 = vmatpush1.msra.mxu0 0.0
    %2726 = vmatprep.subr.mxu0 0.0
    %2727 = vmatpush1.msra.mxu0 0.0
    %2728 = vmatprep.subr.mxu0 0.0
    %2729 = vmatpush1.msra.mxu0 0.0
    %2730 = vmatprep.subr.mxu0 0.0
    %2731 = vmatpush1.msra.mxu0 0.0
    %2732 = vmatprep.subr.mxu0 0.0
    %2733 = vmatpush1.msra.mxu0 0.0
    %2734 = vmatprep.subr.mxu0 0.0
    %2735 = vmatpush1.msra.mxu0 0.0
    %2736 = vmatprep.subr.mxu0 0.0
    %2737 = vmatpush1.msra.mxu0 0.0
    %2738 = vmatprep.subr.mxu0 0.0
    %2739 = vmatpush1.msra.mxu0 0.0
    %2740 = vmatprep.subr.mxu0 0.0
    %2741 = vmatpush1.msra.mxu0 0.0
    %2742 = vmatprep.subr.mxu0 0.0
    %2743 = vmatpush1.msra.mxu0 0.0
    %2744 = vmatprep.subr.mxu0 0.0
    %2745 = vmatpush1.msra.mxu0 0.0
    %2746 = vmatprep.subr.mxu0 0.0
    %2747 = vmatpush1.msra.mxu0 0.0
    %2748 = vmatprep.subr.mxu0 0.0
    %2749 = vmatpush1.msra.mxu0 0.0
    %2750 = vmatprep.subr.mxu0 0.0
    %2751 = vmatpush1.msra.mxu0 0.0
    %2752 = vmatprep.subr.mxu0 0.0
    %2753 = vmatpush1.msra.mxu0 %v2642
    %2754 = vmatprep.subr.mxu0 0.0
    %2755 = vmatpush1.msra.mxu0 %v2641
    %2756 = vmatprep.subr.mxu0 0.0
    %2757 = vmatpush2.msra.mxu0 0.0
    %2758 = vmatprep.subr.mxu0 0.0
    %2759 = vmatpush2.msra.mxu0 0.0
    %2760 = vmatprep.subr.mxu0 0.0
    %2761 = vmatpush2.msra.mxu0 0.0
    %2762 = vmatprep.subr.mxu0 0.0
    %2763 = vmatpush2.msra.mxu0 0.0
    %2764 = vmatprep.subr.mxu0 0.0
    %2765 = vmatpush2.msra.mxu0 0.0
    %2766 = vmatprep.subr.mxu0 0.0
    %2767 = vmatpush2.msra.mxu0 0.0
    %2768 = vmatprep.subr.mxu0 0.0
    %2769 = vmatpush2.msra.mxu0 0.0
    %2770 = vmatprep.subr.mxu0 0.0
    %2771 = vmatpush2.msra.mxu0 0.0
    %2772 = vmatprep.subr.mxu0 0.0
    %2773 = vmatpush2.msra.mxu0 0.0
    %2774 = vmatprep.subr.mxu0 0.0
    %2775 = vmatpush2.msra.mxu0 0.0
    %2776 = vmatprep.subr.mxu0 0.0
    %2777 = vmatpush2.msra.mxu0 0.0
    %2778 = vmatprep.subr.mxu0 0.0
    %2779 = vmatpush2.msra.mxu0 0.0
    %2780 = vmatprep.subr.mxu0 0.0
    %2781 = vmatpush2.msra.mxu0 0.0
    %2782 = vmatprep.subr.mxu0 0.0
    %2783 = vmatpush2.msra.mxu0 0.0
    %2784 = vmatprep.subr.mxu0 0.0
    %2785 = vmatpush2.msra.mxu0 0.0
    %2786 = vmatprep.subr.mxu0 0.0
    %2787 = vmatpush2.msra.mxu0 0.0
    %2788 = vmatprep.mubr.f32.mxu0 0.0
    %2789 = vmatmul.mubr.f32.gmra.mxu0 %v2722
    %v2790 = vpop.f32.mrf.mxu0
    %v2791 = vadd.f32 %v2720, %v2790
    %v2792 = vpop.f32.mrf.mxu0
    %2793 = vdwg.mxu0
    %v2794 = vmul.f32 %v2791, %v2791
    %v2795 = vsel %vm2285, %v2794, 0.0
    %2796 = vadd.xlane.f32.xlu0 %v2795
    %v2797 = vpop.xlane.xlu0 %2796
    %v2798 = vmax.f32 %v2797, 1e-24
    %v2799 = vrsqrt.pop %v2798
    %v2800 = vmul.f32 %v2791, %v2799
    %v2801 = vmax.f32 %v2800, 0.0
    %v2803 = vsel %vm2210, %v2623, 0
    %2805 = vmatprep.subr.mxu0 0.0
    %2806 = vmatpush1.msra.mxu0 0.0
    %2807 = vmatprep.subr.mxu0 0.0
    %2808 = vmatpush1.msra.mxu0 0.0
    %2809 = vmatprep.subr.mxu0 0.0
    %2810 = vmatpush1.msra.mxu0 0.0
    %2811 = vmatprep.subr.mxu0 0.0
    %2812 = vmatpush1.msra.mxu0 0.0
    %2813 = vmatprep.subr.mxu0 0.0
    %2814 = vmatpush1.msra.mxu0 0.0
    %2815 = vmatprep.subr.mxu0 0.0
    %2816 = vmatpush1.msra.mxu0 0.0
    %2817 = vmatprep.subr.mxu0 0.0
    %2818 = vmatpush1.msra.mxu0 0.0
    %2819 = vmatprep.subr.mxu0 0.0
    %2820 = vmatpush1.msra.mxu0 0.0
    %2821 = vmatprep.subr.mxu0 0.0
    %2822 = vmatpush1.msra.mxu0 0.0
    %2823 = vmatprep.subr.mxu0 0.0
    %2824 = vmatpush1.msra.mxu0 0.0
    %2825 = vmatprep.subr.mxu0 0.0
    %2826 = vmatpush1.msra.mxu0 0.0
    %2827 = vmatprep.subr.mxu0 0.0
    %2828 = vmatpush1.msra.mxu0 0.0
    %2829 = vmatprep.subr.mxu0 0.0
    %2830 = vmatpush1.msra.mxu0 0.0
    %2831 = vmatprep.subr.mxu0 0.0
    %2832 = vmatpush1.msra.mxu0 0.0
    %2833 = vmatprep.subr.mxu0 0.0
    %2834 = vmatpush1.msra.mxu0 0.0
    %2835 = vmatprep.subr.mxu0 0.0
    %2836 = vmatpush1.msra.mxu0 %v2803
    %2837 = vmatprep.subr.mxu0 0.0
    %2838 = vmatpush2.msra.mxu0 0.0
    %2839 = vmatprep.subr.mxu0 0.0
    %2840 = vmatpush2.msra.mxu0 0.0
    %2841 = vmatprep.subr.mxu0 0.0
    %2842 = vmatpush2.msra.mxu0 0.0
    %2843 = vmatprep.subr.mxu0 0.0
    %2844 = vmatpush2.msra.mxu0 0.0
    %2845 = vmatprep.subr.mxu0 0.0
    %2846 = vmatpush2.msra.mxu0 0.0
    %2847 = vmatprep.subr.mxu0 0.0
    %2848 = vmatpush2.msra.mxu0 0.0
    %2849 = vmatprep.subr.mxu0 0.0
    %2850 = vmatpush2.msra.mxu0 0.0
    %2851 = vmatprep.subr.mxu0 0.0
    %2852 = vmatpush2.msra.mxu0 0.0
    %2853 = vmatprep.subr.mxu0 0.0
    %2854 = vmatpush2.msra.mxu0 0.0
    %2855 = vmatprep.subr.mxu0 0.0
    %2856 = vmatpush2.msra.mxu0 0.0
    %2857 = vmatprep.subr.mxu0 0.0
    %2858 = vmatpush2.msra.mxu0 0.0
    %2859 = vmatprep.subr.mxu0 0.0
    %2860 = vmatpush2.msra.mxu0 0.0
    %2861 = vmatprep.subr.mxu0 0.0
    %2862 = vmatpush2.msra.mxu0 0.0
    %2863 = vmatprep.subr.mxu0 0.0
    %2864 = vmatpush2.msra.mxu0 0.0
    %2865 = vmatprep.subr.mxu0 0.0
    %2866 = vmatpush2.msra.mxu0 0.0
    %2867 = vmatprep.subr.mxu0 0.0
    %2868 = vmatpush2.msra.mxu0 0.0
    %2869 = vmatprep.mubr.f32.mxu0 0.0
    %2870 = vmatmul.mubr.f32.gmra.mxu0 %v2514
    %v2871 = vpop.f32.mrf.mxu0
    %v2872 = vadd.f32 0.0, %v2871
    %v2873 = vpop.f32.mrf.mxu0
    %2874 = vdwg.mxu0
    %v2876 = vsel %vm82, %v2872, 0
    %2878 = vmatprep.subr.mxu0 0.0
    %2879 = vmatpush1.msra.mxu0 0.0
    %2880 = vmatprep.subr.mxu0 0.0
    %2881 = vmatpush1.msra.mxu0 0.0
    %2882 = vmatprep.subr.mxu0 0.0
    %2883 = vmatpush1.msra.mxu0 0.0
    %2884 = vmatprep.subr.mxu0 0.0
    %2885 = vmatpush1.msra.mxu0 0.0
    %2886 = vmatprep.subr.mxu0 0.0
    %2887 = vmatpush1.msra.mxu0 0.0
    %2888 = vmatprep.subr.mxu0 0.0
    %2889 = vmatpush1.msra.mxu0 0.0
    %2890 = vmatprep.subr.mxu0 0.0
    %2891 = vmatpush1.msra.mxu0 0.0
    %2892 = vmatprep.subr.mxu0 0.0
    %2893 = vmatpush1.msra.mxu0 0.0
    %2894 = vmatprep.subr.mxu0 0.0
    %2895 = vmatpush1.msra.mxu0 0.0
    %2896 = vmatprep.subr.mxu0 0.0
    %2897 = vmatpush1.msra.mxu0 0.0
    %2898 = vmatprep.subr.mxu0 0.0
    %2899 = vmatpush1.msra.mxu0 0.0
    %2900 = vmatprep.subr.mxu0 0.0
    %2901 = vmatpush1.msra.mxu0 0.0
    %2902 = vmatprep.subr.mxu0 0.0
    %2903 = vmatpush1.msra.mxu0 0.0
    %2904 = vmatprep.subr.mxu0 0.0
    %2905 = vmatpush1.msra.mxu0 0.0
    %2906 = vmatprep.subr.mxu0 0.0
    %2907 = vmatpush1.msra.mxu0 %v2642
    %2908 = vmatprep.subr.mxu0 0.0
    %2909 = vmatpush1.msra.mxu0 %v2641
    %2910 = vmatprep.subr.mxu0 0.0
    %2911 = vmatpush2.msra.mxu0 0.0
    %2912 = vmatprep.subr.mxu0 0.0
    %2913 = vmatpush2.msra.mxu0 0.0
    %2914 = vmatprep.subr.mxu0 0.0
    %2915 = vmatpush2.msra.mxu0 0.0
    %2916 = vmatprep.subr.mxu0 0.0
    %2917 = vmatpush2.msra.mxu0 0.0
    %2918 = vmatprep.subr.mxu0 0.0
    %2919 = vmatpush2.msra.mxu0 0.0
    %2920 = vmatprep.subr.mxu0 0.0
    %2921 = vmatpush2.msra.mxu0 0.0
    %2922 = vmatprep.subr.mxu0 0.0
    %2923 = vmatpush2.msra.mxu0 0.0
    %2924 = vmatprep.subr.mxu0 0.0
    %2925 = vmatpush2.msra.mxu0 0.0
    %2926 = vmatprep.subr.mxu0 0.0
    %2927 = vmatpush2.msra.mxu0 0.0
    %2928 = vmatprep.subr.mxu0 0.0
    %2929 = vmatpush2.msra.mxu0 0.0
    %2930 = vmatprep.subr.mxu0 0.0
    %2931 = vmatpush2.msra.mxu0 0.0
    %2932 = vmatprep.subr.mxu0 0.0
    %2933 = vmatpush2.msra.mxu0 0.0
    %2934 = vmatprep.subr.mxu0 0.0
    %2935 = vmatpush2.msra.mxu0 0.0
    %2936 = vmatprep.subr.mxu0 0.0
    %2937 = vmatpush2.msra.mxu0 0.0
    %2938 = vmatprep.subr.mxu0 0.0
    %2939 = vmatpush2.msra.mxu0 0.0
    %2940 = vmatprep.subr.mxu0 0.0
    %2941 = vmatpush2.msra.mxu0 0.0
    %2942 = vmatprep.mubr.f32.mxu0 0.0
    %2943 = vmatmul.mubr.f32.gmra.mxu0 %v2876
    %v2944 = vpop.f32.mrf.mxu0
    %v2945 = vadd.f32 %v2720, %v2944
    %v2946 = vpop.f32.mrf.mxu0
    %2947 = vdwg.mxu0
    %v2948 = vmul.f32 %v2945, %v2945
    %v2949 = vsel %vm2285, %v2948, 0.0
    %2950 = vadd.xlane.f32.xlu0 %v2949
    %v2951 = vpop.xlane.xlu0 %2950
    %v2952 = vmax.f32 %v2951, 1e-24
    %v2953 = vrsqrt.pop %v2952
    %v2954 = vmul.f32 %v2945, %v2953
    %v2955 = vmax.f32 %v2954, 0.0
    %v2956 = vsel %vm2285, %v2801, 0.0
    %2957 = vadd.xlane.f32.xlu0 %v2956
    %v2958 = vpop.xlane.xlu0 %2957
    %v2959 = vmul.f32 %v2801, %v2801
    %v2960 = vsel %vm2285, %v2959, 0.0
    %2961 = vadd.xlane.f32.xlu0 %v2960
    %v2962 = vpop.xlane.xlu0 %2961
    %v2963 = vsel %vm2285, %v2955, 0.0
    %2964 = vadd.xlane.f32.xlu0 %v2963
    %v2965 = vpop.xlane.xlu0 %2964
    %v2966 = vmul.f32 %v2955, %v2955
    %v2967 = vsel %vm2285, %v2966, 0.0
    %2968 = vadd.xlane.f32.xlu0 %v2967
    %v2969 = vpop.xlane.xlu0 %2968
    %v2970 = vadd.f32 %v2958, %v2965
    %v2971 = vadd.f32 %v2962, %v2969
    %v2972 = vmul.f32 %v2970, %v414
    %v2973 = vmul.f32 %v2971, %v414
    %v2974 = vmul.f32 %v2972, %v2972
    %v2975 = vsub.f32 %v2973, %v2974
    %v2976 = vmax.f32 %v2975, 0.0
    %v2977 = vadd.f32 %v2976, 1e-05
    %v2978 = vrsqrt.pop %v2977
    %v2979 = vsub.f32 %v2801, %v2972
    %v2980 = vmul.f32 %v2979, %v2978
    %v2981 = vsub.f32 %v2955, %v2972
    %v2982 = vmul.f32 %v2981, %v2978
    %v2983 = vsel %vm2285, %v2980, -inf
    %v2984 = vrot.slane %v2983, 4
    %v2985 = vmax.f32 %v2983, %v2984
    %v2986 = vrot.slane %v2985, 2
    %v2987 = vmax.f32 %v2985, %v2986
    %v2988 = vrot.slane %v2987, 1
    %v2989 = vmax.f32 %v2987, %v2988
    %v2990 = vsel %vm2285, %v2982, -inf
    %v2991 = vrot.slane %v2990, 4
    %v2992 = vmax.f32 %v2990, %v2991
    %v2993 = vrot.slane %v2992, 2
    %v2994 = vmax.f32 %v2992, %v2993
    %v2995 = vrot.slane %v2994, 1
    %v2996 = vmax.f32 %v2994, %v2995
    %v2997 = vmul.f32 %v69, %v2989
    %v2998 = vmul.f32 %v72, %v2996
    %v2999 = vadd.f32 %v2997, %v2998
    %v3000 = vld [vmem:[#allocation6 + $0x90] sm:$0xff]
    %v3001 = vld [vmem:[#allocation6 + $0x98] sm:$0xff]
    %v3002 = vld [vmem:[#allocation6 + $0xa0] sm:$0x1]
    %v3004 = vsel %vm2210, %v2980, 0
    %3006 = vmatprep.subr.mxu0 0.0
    %3007 = vmatpush1.msra.mxu0 0.0
    %3008 = vmatprep.subr.mxu0 0.0
    %3009 = vmatpush1.msra.mxu0 0.0
    %3010 = vmatprep.subr.mxu0 0.0
    %3011 = vmatpush1.msra.mxu0 0.0
    %3012 = vmatprep.subr.mxu0 0.0
    %3013 = vmatpush1.msra.mxu0 0.0
    %3014 = vmatprep.subr.mxu0 0.0
    %3015 = vmatpush1.msra.mxu0 0.0
    %3016 = vmatprep.subr.mxu0 0.0
    %3017 = vmatpush1.msra.mxu0 0.0
    %3018 = vmatprep.subr.mxu0 0.0
    %3019 = vmatpush1.msra.mxu0 0.0
    %3020 = vmatprep.subr.mxu0 0.0
    %3021 = vmatpush1.msra.mxu0 0.0
    %3022 = vmatprep.subr.mxu0 0.0
    %3023 = vmatpush1.msra.mxu0 0.0
    %3024 = vmatprep.subr.mxu0 0.0
    %3025 = vmatpush1.msra.mxu0 0.0
    %3026 = vmatprep.subr.mxu0 0.0
    %3027 = vmatpush1.msra.mxu0 0.0
    %3028 = vmatprep.subr.mxu0 0.0
    %3029 = vmatpush1.msra.mxu0 0.0
    %3030 = vmatprep.subr.mxu0 0.0
    %3031 = vmatpush1.msra.mxu0 0.0
    %3032 = vmatprep.subr.mxu0 0.0
    %3033 = vmatpush1.msra.mxu0 0.0
    %3034 = vmatprep.subr.mxu0 0.0
    %3035 = vmatpush1.msra.mxu0 0.0
    %3036 = vmatprep.subr.mxu0 0.0
    %3037 = vmatpush1.msra.mxu0 %v3004
    %3038 = vmatprep.subr.mxu0 0.0
    %3039 = vmatpush2.msra.mxu0 0.0
    %3040 = vmatprep.subr.mxu0 0.0
    %3041 = vmatpush2.msra.mxu0 0.0
    %3042 = vmatprep.subr.mxu0 0.0
    %3043 = vmatpush2.msra.mxu0 0.0
    %3044 = vmatprep.subr.mxu0 0.0
    %3045 = vmatpush2.msra.mxu0 0.0
    %3046 = vmatprep.subr.mxu0 0.0
    %3047 = vmatpush2.msra.mxu0 0.0
    %3048 = vmatprep.subr.mxu0 0.0
    %3049 = vmatpush2.msra.mxu0 0.0
    %3050 = vmatprep.subr.mxu0 0.0
    %3051 = vmatpush2.msra.mxu0 0.0
    %3052 = vmatprep.subr.mxu0 0.0
    %3053 = vmatpush2.msra.mxu0 0.0
    %3054 = vmatprep.subr.mxu0 0.0
    %3055 = vmatpush2.msra.mxu0 0.0
    %3056 = vmatprep.subr.mxu0 0.0
    %3057 = vmatpush2.msra.mxu0 0.0
    %3058 = vmatprep.subr.mxu0 0.0
    %3059 = vmatpush2.msra.mxu0 0.0
    %3060 = vmatprep.subr.mxu0 0.0
    %3061 = vmatpush2.msra.mxu0 0.0
    %3062 = vmatprep.subr.mxu0 0.0
    %3063 = vmatpush2.msra.mxu0 0.0
    %3064 = vmatprep.subr.mxu0 0.0
    %3065 = vmatpush2.msra.mxu0 0.0
    %3066 = vmatprep.subr.mxu0 0.0
    %3067 = vmatpush2.msra.mxu0 0.0
    %3068 = vmatprep.subr.mxu0 0.0
    %3069 = vmatpush2.msra.mxu0 0.0
    %3070 = vmatprep.mubr.f32.mxu0 0.0
    %3071 = vmatmul.mubr.f32.gmra.mxu0 %v2208
    %v3072 = vpop.f32.mrf.mxu0
    %v3073 = vadd.f32 0.0, %v3072
    %v3074 = vpop.f32.mrf.mxu0
    %3075 = vdwg.mxu0
    %v3076 = vlaneseq
    %v3077 = vshrl.u32 %v3076, 7
    %v3078 = vsub.s32 0, %v3077
    %v3079 = vrot.slane %v3002, %v3078
    %v3081 = vsel %vm82, %v3073, 0
    %3083 = vmatprep.subr.mxu0 0.0
    %3084 = vmatpush1.msra.mxu0 0.0
    %3085 = vmatprep.subr.mxu0 0.0
    %3086 = vmatpush1.msra.mxu0 0.0
    %3087 = vmatprep.subr.mxu0 0.0
    %3088 = vmatpush1.msra.mxu0 0.0
    %3089 = vmatprep.subr.mxu0 0.0
    %3090 = vmatpush1.msra.mxu0 0.0
    %3091 = vmatprep.subr.mxu0 0.0
    %3092 = vmatpush1.msra.mxu0 0.0
    %3093 = vmatprep.subr.mxu0 0.0
    %3094 = vmatpush1.msra.mxu0 0.0
    %3095 = vmatprep.subr.mxu0 0.0
    %3096 = vmatpush1.msra.mxu0 0.0
    %3097 = vmatprep.subr.mxu0 0.0
    %3098 = vmatpush1.msra.mxu0 0.0
    %3099 = vmatprep.subr.mxu0 0.0
    %3100 = vmatpush1.msra.mxu0 0.0
    %3101 = vmatprep.subr.mxu0 0.0
    %3102 = vmatpush1.msra.mxu0 0.0
    %3103 = vmatprep.subr.mxu0 0.0
    %3104 = vmatpush1.msra.mxu0 0.0
    %3105 = vmatprep.subr.mxu0 0.0
    %3106 = vmatpush1.msra.mxu0 0.0
    %3107 = vmatprep.subr.mxu0 0.0
    %3108 = vmatpush1.msra.mxu0 0.0
    %3109 = vmatprep.subr.mxu0 0.0
    %3110 = vmatpush1.msra.mxu0 0.0
    %3111 = vmatprep.subr.mxu0 0.0
    %3112 = vmatpush1.msra.mxu0 %v3001
    %3113 = vmatprep.subr.mxu0 0.0
    %3114 = vmatpush1.msra.mxu0 %v3000
    %3115 = vmatprep.subr.mxu0 0.0
    %3116 = vmatpush2.msra.mxu0 0.0
    %3117 = vmatprep.subr.mxu0 0.0
    %3118 = vmatpush2.msra.mxu0 0.0
    %3119 = vmatprep.subr.mxu0 0.0
    %3120 = vmatpush2.msra.mxu0 0.0
    %3121 = vmatprep.subr.mxu0 0.0
    %3122 = vmatpush2.msra.mxu0 0.0
    %3123 = vmatprep.subr.mxu0 0.0
    %3124 = vmatpush2.msra.mxu0 0.0
    %3125 = vmatprep.subr.mxu0 0.0
    %3126 = vmatpush2.msra.mxu0 0.0
    %3127 = vmatprep.subr.mxu0 0.0
    %3128 = vmatpush2.msra.mxu0 0.0
    %3129 = vmatprep.subr.mxu0 0.0
    %3130 = vmatpush2.msra.mxu0 0.0
    %3131 = vmatprep.subr.mxu0 0.0
    %3132 = vmatpush2.msra.mxu0 0.0
    %3133 = vmatprep.subr.mxu0 0.0
    %3134 = vmatpush2.msra.mxu0 0.0
    %3135 = vmatprep.subr.mxu0 0.0
    %3136 = vmatpush2.msra.mxu0 0.0
    %3137 = vmatprep.subr.mxu0 0.0
    %3138 = vmatpush2.msra.mxu0 0.0
    %3139 = vmatprep.subr.mxu0 0.0
    %3140 = vmatpush2.msra.mxu0 0.0
    %3141 = vmatprep.subr.mxu0 0.0
    %3142 = vmatpush2.msra.mxu0 0.0
    %3143 = vmatprep.subr.mxu0 0.0
    %3144 = vmatpush2.msra.mxu0 0.0
    %3145 = vmatprep.subr.mxu0 0.0
    %3146 = vmatpush2.msra.mxu0 0.0
    %3147 = vmatprep.mubr.f32.mxu0 0.0
    %3148 = vmatmul.mubr.f32.gmra.mxu0 %v3081
    %v3149 = vpop.f32.mrf.mxu0
    %v3150 = vadd.f32 %v3079, %v3149
    %v3151 = vpop.f32.mrf.mxu0
    %3152 = vdwg.mxu0
    %v3153 = vmul.f32 %v3150, %v3150
    %v3154 = vsel %vm2285, %v3153, 0.0
    %3155 = vadd.xlane.f32.xlu0 %v3154
    %v3156 = vpop.xlane.xlu0 %3155
    %v3157 = vmax.f32 %v3156, 1e-24
    %v3158 = vrsqrt.pop %v3157
    %v3159 = vmul.f32 %v3150, %v3158
    %v3161 = vsel %vm2210, %v2982, 0
    %3163 = vmatprep.subr.mxu0 0.0
    %3164 = vmatpush1.msra.mxu0 0.0
    %3165 = vmatprep.subr.mxu0 0.0
    %3166 = vmatpush1.msra.mxu0 0.0
    %3167 = vmatprep.subr.mxu0 0.0
    %3168 = vmatpush1.msra.mxu0 0.0
    %3169 = vmatprep.subr.mxu0 0.0
    %3170 = vmatpush1.msra.mxu0 0.0
    %3171 = vmatprep.subr.mxu0 0.0
    %3172 = vmatpush1.msra.mxu0 0.0
    %3173 = vmatprep.subr.mxu0 0.0
    %3174 = vmatpush1.msra.mxu0 0.0
    %3175 = vmatprep.subr.mxu0 0.0
    %3176 = vmatpush1.msra.mxu0 0.0
    %3177 = vmatprep.subr.mxu0 0.0
    %3178 = vmatpush1.msra.mxu0 0.0
    %3179 = vmatprep.subr.mxu0 0.0
    %3180 = vmatpush1.msra.mxu0 0.0
    %3181 = vmatprep.subr.mxu0 0.0
    %3182 = vmatpush1.msra.mxu0 0.0
    %3183 = vmatprep.subr.mxu0 0.0
    %3184 = vmatpush1.msra.mxu0 0.0
    %3185 = vmatprep.subr.mxu0 0.0
    %3186 = vmatpush1.msra.mxu0 0.0
    %3187 = vmatprep.subr.mxu0 0.0
    %3188 = vmatpush1.msra.mxu0 0.0
    %3189 = vmatprep.subr.mxu0 0.0
    %3190 = vmatpush1.msra.mxu0 0.0
    %3191 = vmatprep.subr.mxu0 0.0
    %3192 = vmatpush1.msra.mxu0 0.0
    %3193 = vmatprep.subr.mxu0 0.0
    %3194 = vmatpush1.msra.mxu0 %v3161
    %3195 = vmatprep.subr.mxu0 0.0
    %3196 = vmatpush2.msra.mxu0 0.0
    %3197 = vmatprep.subr.mxu0 0.0
    %3198 = vmatpush2.msra.mxu0 0.0
    %3199 = vmatprep.subr.mxu0 0.0
    %3200 = vmatpush2.msra.mxu0 0.0
    %3201 = vmatprep.subr.mxu0 0.0
    %3202 = vmatpush2.msra.mxu0 0.0
    %3203 = vmatprep.subr.mxu0 0.0
    %3204 = vmatpush2.msra.mxu0 0.0
    %3205 = vmatprep.subr.mxu0 0.0
    %3206 = vmatpush2.msra.mxu0 0.0
    %3207 = vmatprep.subr.mxu0 0.0
    %3208 = vmatpush2.msra.mxu0 0.0
    %3209 = vmatprep.subr.mxu0 0.0
    %3210 = vmatpush2.msra.mxu0 0.0
    %3211 = vmatprep.subr.mxu0 0.0
    %3212 = vmatpush2.msra.mxu0 0.0
    %3213 = vmatprep.subr.mxu0 0.0
    %3214 = vmatpush2.msra.mxu0 0.0
    %3215 = vmatprep.subr.mxu0 0.0
    %3216 = vmatpush2.msra.mxu0 0.0
    %3217 = vmatprep.subr.mxu0 0.0
    %3218 = vmatpush2.msra.mxu0 0.0
    %3219 = vmatprep.subr.mxu0 0.0
    %3220 = vmatpush2.msra.mxu0 0.0
    %3221 = vmatprep.subr.mxu0 0.0
    %3222 = vmatpush2.msra.mxu0 0.0
    %3223 = vmatprep.subr.mxu0 0.0
    %3224 = vmatpush2.msra.mxu0 0.0
    %3225 = vmatprep.subr.mxu0 0.0
    %3226 = vmatpush2.msra.mxu0 0.0
    %3227 = vmatprep.mubr.f32.mxu0 0.0
    %3228 = vmatmul.mubr.f32.gmra.mxu0 %v2514
    %v3229 = vpop.f32.mrf.mxu0
    %v3230 = vadd.f32 0.0, %v3229
    %v3231 = vpop.f32.mrf.mxu0
    %3232 = vdwg.mxu0
    %v3234 = vsel %vm82, %v3230, 0
    %3236 = vmatprep.subr.mxu0 0.0
    %3237 = vmatpush1.msra.mxu0 0.0
    %3238 = vmatprep.subr.mxu0 0.0
    %3239 = vmatpush1.msra.mxu0 0.0
    %3240 = vmatprep.subr.mxu0 0.0
    %3241 = vmatpush1.msra.mxu0 0.0
    %3242 = vmatprep.subr.mxu0 0.0
    %3243 = vmatpush1.msra.mxu0 0.0
    %3244 = vmatprep.subr.mxu0 0.0
    %3245 = vmatpush1.msra.mxu0 0.0
    %3246 = vmatprep.subr.mxu0 0.0
    %3247 = vmatpush1.msra.mxu0 0.0
    %3248 = vmatprep.subr.mxu0 0.0
    %3249 = vmatpush1.msra.mxu0 0.0
    %3250 = vmatprep.subr.mxu0 0.0
    %3251 = vmatpush1.msra.mxu0 0.0
    %3252 = vmatprep.subr.mxu0 0.0
    %3253 = vmatpush1.msra.mxu0 0.0
    %3254 = vmatprep.subr.mxu0 0.0
    %3255 = vmatpush1.msra.mxu0 0.0
    %3256 = vmatprep.subr.mxu0 0.0
    %3257 = vmatpush1.msra.mxu0 0.0
    %3258 = vmatprep.subr.mxu0 0.0
    %3259 = vmatpush1.msra.mxu0 0.0
    %3260 = vmatprep.subr.mxu0 0.0
    %3261 = vmatpush1.msra.mxu0 0.0
    %3262 = vmatprep.subr.mxu0 0.0
    %3263 = vmatpush1.msra.mxu0 0.0
    %3264 = vmatprep.subr.mxu0 0.0
    %3265 = vmatpush1.msra.mxu0 %v3001
    %3266 = vmatprep.subr.mxu0 0.0
    %3267 = vmatpush1.msra.mxu0 %v3000
    %3268 = vmatprep.subr.mxu0 0.0
    %3269 = vmatpush2.msra.mxu0 0.0
    %3270 = vmatprep.subr.mxu0 0.0
    %3271 = vmatpush2.msra.mxu0 0.0
    %3272 = vmatprep.subr.mxu0 0.0
    %3273 = vmatpush2.msra.mxu0 0.0
    %3274 = vmatprep.subr.mxu0 0.0
    %3275 = vmatpush2.msra.mxu0 0.0
    %3276 = vmatprep.subr.mxu0 0.0
    %3277 = vmatpush2.msra.mxu0 0.0
    %3278 = vmatprep.subr.mxu0 0.0
    %3279 = vmatpush2.msra.mxu0 0.0
    %3280 = vmatprep.subr.mxu0 0.0
    %3281 = vmatpush2.msra.mxu0 0.0
    %3282 = vmatprep.subr.mxu0 0.0
    %3283 = vmatpush2.msra.mxu0 0.0
    %3284 = vmatprep.subr.mxu0 0.0
    %3285 = vmatpush2.msra.mxu0 0.0
    %3286 = vmatprep.subr.mxu0 0.0
    %3287 = vmatpush2.msra.mxu0 0.0
    %3288 = vmatprep.subr.mxu0 0.0
    %3289 = vmatpush2.msra.mxu0 0.0
    %3290 = vmatprep.subr.mxu0 0.0
    %3291 = vmatpush2.msra.mxu0 0.0
    %3292 = vmatprep.subr.mxu0 0.0
    %3293 = vmatpush2.msra.mxu0 0.0
    %3294 = vmatprep.subr.mxu0 0.0
    %3295 = vmatpush2.msra.mxu0 0.0
    %3296 = vmatprep.subr.mxu0 0.0
    %3297 = vmatpush2.msra.mxu0 0.0
    %3298 = vmatprep.subr.mxu0 0.0
    %3299 = vmatpush2.msra.mxu0 0.0
    %3300 = vmatprep.mubr.f32.mxu0 0.0
    %3301 = vmatmul.mubr.f32.gmra.mxu0 %v3234
    %v3302 = vpop.f32.mrf.mxu0
    %v3303 = vadd.f32 %v3079, %v3302
    %v3304 = vpop.f32.mrf.mxu0
    %3305 = vdwg.mxu0
    %v3306 = vmul.f32 %v3303, %v3303
    %v3307 = vsel %vm2285, %v3306, 0.0
    %3308 = vadd.xlane.f32.xlu0 %v3307
    %v3309 = vpop.xlane.xlu0 %3308
    %v3310 = vmax.f32 %v3309, 1e-24
    %v3311 = vrsqrt.pop %v3310
    %v3312 = vmul.f32 %v3303, %v3311
    %v3313 = vsel %vm2285, %v3159, -inf
    %v3314 = vrot.slane %v3313, 4
    %v3315 = vmax.f32 %v3313, %v3314
    %v3316 = vrot.slane %v3315, 2
    %v3317 = vmax.f32 %v3315, %v3316
    %v3318 = vrot.slane %v3317, 1
    %v3319 = vmax.f32 %v3317, %v3318
    %v3320 = vsel %vm2285, %v3312, -inf
    %v3321 = vrot.slane %v3320, 4
    %v3322 = vmax.f32 %v3320, %v3321
    %v3323 = vrot.slane %v3322, 2
    %v3324 = vmax.f32 %v3322, %v3323
    %v3325 = vrot.slane %v3324, 1
    %v3326 = vmax.f32 %v3324, %v3325
    %v3327 = vmul.f32 %v69, %v3319
    %v3328 = vmul.f32 %v72, %v3326
    %v3329 = vadd.f32 %v3327, %v3328
    %v3330 = vld [vmem:[#allocation6 + $0xa8] sm:$0xff]
    %v3331 = vld [vmem:[#allocation6 + $0xb0] sm:$0xff]
    %v3332 = vld [vmem:[#allocation6 + $0xb8] sm:$0xff]
    %v3333 = vld [vmem:[#allocation6 + $0xc0] sm:$0xff]
    %v3335 = vsel %vm82, %v1241, 0
    %3337 = vmatprep.subr.mxu0 0.0
    %3338 = vmatpush1.msra.mxu0 0.0
    %3339 = vmatprep.subr.mxu0 0.0
    %3340 = vmatpush1.msra.mxu0 0.0
    %3341 = vmatprep.subr.mxu0 0.0
    %3342 = vmatpush1.msra.mxu0 0.0
    %3343 = vmatprep.subr.mxu0 0.0
    %3344 = vmatpush1.msra.mxu0 0.0
    %3345 = vmatprep.subr.mxu0 0.0
    %3346 = vmatpush1.msra.mxu0 0.0
    %3347 = vmatprep.subr.mxu0 0.0
    %3348 = vmatpush1.msra.mxu0 0.0
    %3349 = vmatprep.subr.mxu0 0.0
    %3350 = vmatpush1.msra.mxu0 0.0
    %3351 = vmatprep.subr.mxu0 0.0
    %3352 = vmatpush1.msra.mxu0 0.0
    %3353 = vmatprep.subr.mxu0 0.0
    %3354 = vmatpush1.msra.mxu0 0.0
    %3355 = vmatprep.subr.mxu0 0.0
    %3356 = vmatpush1.msra.mxu0 0.0
    %3357 = vmatprep.subr.mxu0 0.0
    %3358 = vmatpush1.msra.mxu0 0.0
    %3359 = vmatprep.subr.mxu0 0.0
    %3360 = vmatpush1.msra.mxu0 0.0
    %3361 = vmatprep.subr.mxu0 0.0
    %3362 = vmatpush1.msra.mxu0 0.0
    %3363 = vmatprep.subr.mxu0 0.0
    %3364 = vmatpush1.msra.mxu0 0.0
    %3365 = vmatprep.subr.mxu0 0.0
    %3366 = vmatpush1.msra.mxu0 %v3333
    %3367 = vmatprep.subr.mxu0 0.0
    %3368 = vmatpush1.msra.mxu0 %v3332
    %3369 = vmatprep.subr.mxu0 0.0
    %3370 = vmatpush2.msra.mxu0 0.0
    %3371 = vmatprep.subr.mxu0 0.0
    %3372 = vmatpush2.msra.mxu0 0.0
    %3373 = vmatprep.subr.mxu0 0.0
    %3374 = vmatpush2.msra.mxu0 0.0
    %3375 = vmatprep.subr.mxu0 0.0
    %3376 = vmatpush2.msra.mxu0 0.0
    %3377 = vmatprep.subr.mxu0 0.0
    %3378 = vmatpush2.msra.mxu0 0.0
    %3379 = vmatprep.subr.mxu0 0.0
    %3380 = vmatpush2.msra.mxu0 0.0
    %3381 = vmatprep.subr.mxu0 0.0
    %3382 = vmatpush2.msra.mxu0 0.0
    %3383 = vmatprep.subr.mxu0 0.0
    %3384 = vmatpush2.msra.mxu0 0.0
    %3385 = vmatprep.subr.mxu0 0.0
    %3386 = vmatpush2.msra.mxu0 0.0
    %3387 = vmatprep.subr.mxu0 0.0
    %3388 = vmatpush2.msra.mxu0 0.0
    %3389 = vmatprep.subr.mxu0 0.0
    %3390 = vmatpush2.msra.mxu0 0.0
    %3391 = vmatprep.subr.mxu0 0.0
    %3392 = vmatpush2.msra.mxu0 0.0
    %3393 = vmatprep.subr.mxu0 0.0
    %3394 = vmatpush2.msra.mxu0 0.0
    %3395 = vmatprep.subr.mxu0 0.0
    %3396 = vmatpush2.msra.mxu0 0.0
    %3397 = vmatprep.subr.mxu0 0.0
    %3398 = vmatpush2.msra.mxu0 0.0
    %3399 = vmatprep.subr.mxu0 0.0
    %3400 = vmatpush2.msra.mxu0 0.0
    %3401 = vmatprep.mubr.f32.mxu0 0.0
    %3402 = vmatmul.mubr.f32.gmra.mxu0 %v3335
    %v3403 = vpop.f32.mrf.mxu0
    %v3404 = vadd.f32 0.0, %v3403
    %v3405 = vpop.f32.mrf.mxu0
    %3406 = vdwg.mxu0
    %v3408 = vsel %vm82, %v716, 0
    %3410 = vmatprep.subr.mxu0 0.0
    %3411 = vmatpush1.msra.mxu0 0.0
    %3412 = vmatprep.subr.mxu0 0.0
    %3413 = vmatpush1.msra.mxu0 0.0
    %3414 = vmatprep.subr.mxu0 0.0
    %3415 = vmatpush1.msra.mxu0 0.0
    %3416 = vmatprep.subr.mxu0 0.0
    %3417 = vmatpush1.msra.mxu0 0.0
    %3418 = vmatprep.subr.mxu0 0.0
    %3419 = vmatpush1.msra.mxu0 0.0
    %3420 = vmatprep.subr.mxu0 0.0
    %3421 = vmatpush1.msra.mxu0 0.0
    %3422 = vmatprep.subr.mxu0 0.0
    %3423 = vmatpush1.msra.mxu0 0.0
    %3424 = vmatprep.subr.mxu0 0.0
    %3425 = vmatpush1.msra.mxu0 0.0
    %3426 = vmatprep.subr.mxu0 0.0
    %3427 = vmatpush1.msra.mxu0 0.0
    %3428 = vmatprep.subr.mxu0 0.0
    %3429 = vmatpush1.msra.mxu0 0.0
    %3430 = vmatprep.subr.mxu0 0.0
    %3431 = vmatpush1.msra.mxu0 0.0
    %3432 = vmatprep.subr.mxu0 0.0
    %3433 = vmatpush1.msra.mxu0 0.0
    %3434 = vmatprep.subr.mxu0 0.0
    %3435 = vmatpush1.msra.mxu0 0.0
    %3436 = vmatprep.subr.mxu0 0.0
    %3437 = vmatpush1.msra.mxu0 0.0
    %3438 = vmatprep.subr.mxu0 0.0
    %3439 = vmatpush1.msra.mxu0 %v3331
    %3440 = vmatprep.subr.mxu0 0.0
    %3441 = vmatpush1.msra.mxu0 %v3330
    %3442 = vmatprep.subr.mxu0 0.0
    %3443 = vmatpush2.msra.mxu0 0.0
    %3444 = vmatprep.subr.mxu0 0.0
    %3445 = vmatpush2.msra.mxu0 0.0
    %3446 = vmatprep.subr.mxu0 0.0
    %3447 = vmatpush2.msra.mxu0 0.0
    %3448 = vmatprep.subr.mxu0 0.0
    %3449 = vmatpush2.msra.mxu0 0.0
    %3450 = vmatprep.subr.mxu0 0.0
    %3451 = vmatpush2.msra.mxu0 0.0
    %3452 = vmatprep.subr.mxu0 0.0
    %3453 = vmatpush2.msra.mxu0 0.0
    %3454 = vmatprep.subr.mxu0 0.0
    %3455 = vmatpush2.msra.mxu0 0.0
    %3456 = vmatprep.subr.mxu0 0.0
    %3457 = vmatpush2.msra.mxu0 0.0
    %3458 = vmatprep.subr.mxu0 0.0
    %3459 = vmatpush2.msra.mxu0 0.0
    %3460 = vmatprep.subr.mxu0 0.0
    %3461 = vmatpush2.msra.mxu0 0.0
    %3462 = vmatprep.subr.mxu0 0.0
    %3463 = vmatpush2.msra.mxu0 0.0
    %3464 = vmatprep.subr.mxu0 0.0
    %3465 = vmatpush2.msra.mxu0 0.0
    %3466 = vmatprep.subr.mxu0 0.0
    %3467 = vmatpush2.msra.mxu0 0.0
    %3468 = vmatprep.subr.mxu0 0.0
    %3469 = vmatpush2.msra.mxu0 0.0
    %3470 = vmatprep.subr.mxu0 0.0
    %3471 = vmatpush2.msra.mxu0 0.0
    %3472 = vmatprep.subr.mxu0 0.0
    %3473 = vmatpush2.msra.mxu0 0.0
    %3474 = vmatprep.mubr.f32.mxu0 0.0
    %3475 = vmatmul.mubr.f32.gmra.mxu0 %v3408
    %v3476 = vpop.f32.mrf.mxu0
    %v3477 = vadd.f32 %v3404, %v3476
    %v3478 = vpop.f32.mrf.mxu0
    %3479 = vdwg.mxu0
    %v3480 = vld [vmem:[#allocation6 + $0xc8] sm:$0xff]
    %v3481 = vld [vmem:[#allocation6 + $0xd0] sm:$0xff]
    %v3483 = vsel %vm82, %v1688, 0
    %3485 = vmatprep.subr.mxu0 0.0
    %3486 = vmatpush1.msra.mxu0 0.0
    %3487 = vmatprep.subr.mxu0 0.0
    %3488 = vmatpush1.msra.mxu0 0.0
    %3489 = vmatprep.subr.mxu0 0.0
    %3490 = vmatpush1.msra.mxu0 0.0
    %3491 = vmatprep.subr.mxu0 0.0
    %3492 = vmatpush1.msra.mxu0 0.0
    %3493 = vmatprep.subr.mxu0 0.0
    %3494 = vmatpush1.msra.mxu0 0.0
    %3495 = vmatprep.subr.mxu0 0.0
    %3496 = vmatpush1.msra.mxu0 0.0
    %3497 = vmatprep.subr.mxu0 0.0
    %3498 = vmatpush1.msra.mxu0 0.0
    %3499 = vmatprep.subr.mxu0 0.0
    %3500 = vmatpush1.msra.mxu0 0.0
    %3501 = vmatprep.subr.mxu0 0.0
    %3502 = vmatpush1.msra.mxu0 0.0
    %3503 = vmatprep.subr.mxu0 0.0
    %3504 = vmatpush1.msra.mxu0 0.0
    %3505 = vmatprep.subr.mxu0 0.0
    %3506 = vmatpush1.msra.mxu0 0.0
    %3507 = vmatprep.subr.mxu0 0.0
    %3508 = vmatpush1.msra.mxu0 0.0
    %3509 = vmatprep.subr.mxu0 0.0
    %3510 = vmatpush1.msra.mxu0 0.0
    %3511 = vmatprep.subr.mxu0 0.0
    %3512 = vmatpush1.msra.mxu0 0.0
    %3513 = vmatprep.subr.mxu0 0.0
    %3514 = vmatpush1.msra.mxu0 %v3481
    %3515 = vmatprep.subr.mxu0 0.0
    %3516 = vmatpush1.msra.mxu0 %v3480
    %3517 = vmatprep.subr.mxu0 0.0
    %3518 = vmatpush2.msra.mxu0 0.0
    %3519 = vmatprep.subr.mxu0 0.0
    %3520 = vmatpush2.msra.mxu0 0.0
    %3521 = vmatprep.subr.mxu0 0.0
    %3522 = vmatpush2.msra.mxu0 0.0
    %3523 = vmatprep.subr.mxu0 0.0
    %3524 = vmatpush2.msra.mxu0 0.0
    %3525 = vmatprep.subr.mxu0 0.0
    %3526 = vmatpush2.msra.mxu0 0.0
    %3527 = vmatprep.subr.mxu0 0.0
    %3528 = vmatpush2.msra.mxu0 0.0
    %3529 = vmatprep.subr.mxu0 0.0
    %3530 = vmatpush2.msra.mxu0 0.0
    %3531 = vmatprep.subr.mxu0 0.0
    %3532 = vmatpush2.msra.mxu0 0.0
    %3533 = vmatprep.subr.mxu0 0.0
    %3534 = vmatpush2.msra.mxu0 0.0
    %3535 = vmatprep.subr.mxu0 0.0
    %3536 = vmatpush2.msra.mxu0 0.0
    %3537 = vmatprep.subr.mxu0 0.0
    %3538 = vmatpush2.msra.mxu0 0.0
    %3539 = vmatprep.subr.mxu0 0.0
    %3540 = vmatpush2.msra.mxu0 0.0
    %3541 = vmatprep.subr.mxu0 0.0
    %3542 = vmatpush2.msra.mxu0 0.0
    %3543 = vmatprep.subr.mxu0 0.0
    %3544 = vmatpush2.msra.mxu0 0.0
    %3545 = vmatprep.subr.mxu0 0.0
    %3546 = vmatpush2.msra.mxu0 0.0
    %3547 = vmatprep.subr.mxu0 0.0
    %3548 = vmatpush2.msra.mxu0 0.0
    %3549 = vmatprep.mubr.f32.mxu0 0.0
    %3550 = vmatmul.mubr.f32.gmra.mxu0 %v3483
    %v3551 = vpop.f32.mrf.mxu0
    %v3552 = vadd.f32 0.0, %v3551
    %v3553 = vpop.f32.mrf.mxu0
    %3554 = vdwg.mxu0
    %v3555 = vadd.f32 %v3477, %v3552
    %v3556 = vld [vmem:[#allocation6 + $0xd8] sm:$0xff]
    %v3557 = vld [vmem:[#allocation6 + $0xe0] sm:$0xff]
    %v3559 = vsel %vm82, %v2640, 0
    %3561 = vmatprep.subr.mxu0 0.0
    %3562 = vmatpush1.msra.mxu0 0.0
    %3563 = vmatprep.subr.mxu0 0.0
    %3564 = vmatpush1.msra.mxu0 0.0
    %3565 = vmatprep.subr.mxu0 0.0
    %3566 = vmatpush1.msra.mxu0 0.0
    %3567 = vmatprep.subr.mxu0 0.0
    %3568 = vmatpush1.msra.mxu0 0.0
    %3569 = vmatprep.subr.mxu0 0.0
    %3570 = vmatpush1.msra.mxu0 0.0
    %3571 = vmatprep.subr.mxu0 0.0
    %3572 = vmatpush1.msra.mxu0 0.0
    %3573 = vmatprep.subr.mxu0 0.0
    %3574 = vmatpush1.msra.mxu0 0.0
    %3575 = vmatprep.subr.mxu0 0.0
    %3576 = vmatpush1.msra.mxu0 0.0
    %3577 = vmatprep.subr.mxu0 0.0
    %3578 = vmatpush1.msra.mxu0 0.0
    %3579 = vmatprep.subr.mxu0 0.0
    %3580 = vmatpush1.msra.mxu0 0.0
    %3581 = vmatprep.subr.mxu0 0.0
    %3582 = vmatpush1.msra.mxu0 0.0
    %3583 = vmatprep.subr.mxu0 0.0
    %3584 = vmatpush1.msra.mxu0 0.0
    %3585 = vmatprep.subr.mxu0 0.0
    %3586 = vmatpush1.msra.mxu0 0.0
    %3587 = vmatprep.subr.mxu0 0.0
    %3588 = vmatpush1.msra.mxu0 0.0
    %3589 = vmatprep.subr.mxu0 0.0
    %3590 = vmatpush1.msra.mxu0 %v3557
    %3591 = vmatprep.subr.mxu0 0.0
    %3592 = vmatpush1.msra.mxu0 %v3556
    %3593 = vmatprep.subr.mxu0 0.0
    %3594 = vmatpush2.msra.mxu0 0.0
    %3595 = vmatprep.subr.mxu0 0.0
    %3596 = vmatpush2.msra.mxu0 0.0
    %3597 = vmatprep.subr.mxu0 0.0
    %3598 = vmatpush2.msra.mxu0 0.0
    %3599 = vmatprep.subr.mxu0 0.0
    %3600 = vmatpush2.msra.mxu0 0.0
    %3601 = vmatprep.subr.mxu0 0.0
    %3602 = vmatpush2.msra.mxu0 0.0
    %3603 = vmatprep.subr.mxu0 0.0
    %3604 = vmatpush2.msra.mxu0 0.0
    %3605 = vmatprep.subr.mxu0 0.0
    %3606 = vmatpush2.msra.mxu0 0.0
    %3607 = vmatprep.subr.mxu0 0.0
    %3608 = vmatpush2.msra.mxu0 0.0
    %3609 = vmatprep.subr.mxu0 0.0
    %3610 = vmatpush2.msra.mxu0 0.0
    %3611 = vmatprep.subr.mxu0 0.0
    %3612 = vmatpush2.msra.mxu0 0.0
    %3613 = vmatprep.subr.mxu0 0.0
    %3614 = vmatpush2.msra.mxu0 0.0
    %3615 = vmatprep.subr.mxu0 0.0
    %3616 = vmatpush2.msra.mxu0 0.0
    %3617 = vmatprep.subr.mxu0 0.0
    %3618 = vmatpush2.msra.mxu0 0.0
    %3619 = vmatprep.subr.mxu0 0.0
    %3620 = vmatpush2.msra.mxu0 0.0
    %3621 = vmatprep.subr.mxu0 0.0
    %3622 = vmatpush2.msra.mxu0 0.0
    %3623 = vmatprep.subr.mxu0 0.0
    %3624 = vmatpush2.msra.mxu0 0.0
    %3625 = vmatprep.mubr.f32.mxu0 0.0
    %3626 = vmatmul.mubr.f32.gmra.mxu0 %v3559
    %v3627 = vpop.f32.mrf.mxu0
    %v3628 = vadd.f32 0.0, %v3627
    %v3629 = vpop.f32.mrf.mxu0
    %3630 = vdwg.mxu0
    %v3631 = vadd.f32 %v3555, %v3628
    %v3632 = vld [vmem:[#allocation6 + $0xe8] sm:$0xff]
    %v3633 = vld [vmem:[#allocation6 + $0xf0] sm:$0xff]
    %v3635 = vsel %vm82, %v2999, 0
    %3637 = vmatprep.subr.mxu0 0.0
    %3638 = vmatpush1.msra.mxu0 0.0
    %3639 = vmatprep.subr.mxu0 0.0
    %3640 = vmatpush1.msra.mxu0 0.0
    %3641 = vmatprep.subr.mxu0 0.0
    %3642 = vmatpush1.msra.mxu0 0.0
    %3643 = vmatprep.subr.mxu0 0.0
    %3644 = vmatpush1.msra.mxu0 0.0
    %3645 = vmatprep.subr.mxu0 0.0
    %3646 = vmatpush1.msra.mxu0 0.0
    %3647 = vmatprep.subr.mxu0 0.0
    %3648 = vmatpush1.msra.mxu0 0.0
    %3649 = vmatprep.subr.mxu0 0.0
    %3650 = vmatpush1.msra.mxu0 0.0
    %3651 = vmatprep.subr.mxu0 0.0
    %3652 = vmatpush1.msra.mxu0 0.0
    %3653 = vmatprep.subr.mxu0 0.0
    %3654 = vmatpush1.msra.mxu0 0.0
    %3655 = vmatprep.subr.mxu0 0.0
    %3656 = vmatpush1.msra.mxu0 0.0
    %3657 = vmatprep.subr.mxu0 0.0
    %3658 = vmatpush1.msra.mxu0 0.0
    %3659 = vmatprep.subr.mxu0 0.0
    %3660 = vmatpush1.msra.mxu0 0.0
    %3661 = vmatprep.subr.mxu0 0.0
    %3662 = vmatpush1.msra.mxu0 0.0
    %3663 = vmatprep.subr.mxu0 0.0
    %3664 = vmatpush1.msra.mxu0 0.0
    %3665 = vmatprep.subr.mxu0 0.0
    %3666 = vmatpush1.msra.mxu0 %v3633
    %3667 = vmatprep.subr.mxu0 0.0
    %3668 = vmatpush1.msra.mxu0 %v3632
    %3669 = vmatprep.subr.mxu0 0.0
    %3670 = vmatpush2.msra.mxu0 0.0
    %3671 = vmatprep.subr.mxu0 0.0
    %3672 = vmatpush2.msra.mxu0 0.0
    %3673 = vmatprep.subr.mxu0 0.0
    %3674 = vmatpush2.msra.mxu0 0.0
    %3675 = vmatprep.subr.mxu0 0.0
    %3676 = vmatpush2.msra.mxu0 0.0
    %3677 = vmatprep.subr.mxu0 0.0
    %3678 = vmatpush2.msra.mxu0 0.0
    %3679 = vmatprep.subr.mxu0 0.0
    %3680 = vmatpush2.msra.mxu0 0.0
    %3681 = vmatprep.subr.mxu0 0.0
    %3682 = vmatpush2.msra.mxu0 0.0
    %3683 = vmatprep.subr.mxu0 0.0
    %3684 = vmatpush2.msra.mxu0 0.0
    %3685 = vmatprep.subr.mxu0 0.0
    %3686 = vmatpush2.msra.mxu0 0.0
    %3687 = vmatprep.subr.mxu0 0.0
    %3688 = vmatpush2.msra.mxu0 0.0
    %3689 = vmatprep.subr.mxu0 0.0
    %3690 = vmatpush2.msra.mxu0 0.0
    %3691 = vmatprep.subr.mxu0 0.0
    %3692 = vmatpush2.msra.mxu0 0.0
    %3693 = vmatprep.subr.mxu0 0.0
    %3694 = vmatpush2.msra.mxu0 0.0
    %3695 = vmatprep.subr.mxu0 0.0
    %3696 = vmatpush2.msra.mxu0 0.0
    %3697 = vmatprep.subr.mxu0 0.0
    %3698 = vmatpush2.msra.mxu0 0.0
    %3699 = vmatprep.subr.mxu0 0.0
    %3700 = vmatpush2.msra.mxu0 0.0
    %3701 = vmatprep.mubr.f32.mxu0 0.0
    %3702 = vmatmul.mubr.f32.gmra.mxu0 %v3635
    %v3703 = vpop.f32.mrf.mxu0
    %v3704 = vadd.f32 0.0, %v3703
    %v3705 = vpop.f32.mrf.mxu0
    %3706 = vdwg.mxu0
    %v3707 = vadd.f32 %v3631, %v3704
    %v3708 = vld [vmem:[#allocation6 + $0xf8] sm:$0xff]
    %v3709 = vld [vmem:[#allocation6 + $0x100] sm:$0xff]
    %v3711 = vsel %vm82, %v3329, 0
    %3713 = vmatprep.subr.mxu0 0.0
    %3714 = vmatpush1.msra.mxu0 0.0
    %3715 = vmatprep.subr.mxu0 0.0
    %3716 = vmatpush1.msra.mxu0 0.0
    %3717 = vmatprep.subr.mxu0 0.0
    %3718 = vmatpush1.msra.mxu0 0.0
    %3719 = vmatprep.subr.mxu0 0.0
    %3720 = vmatpush1.msra.mxu0 0.0
    %3721 = vmatprep.subr.mxu0 0.0
    %3722 = vmatpush1.msra.mxu0 0.0
    %3723 = vmatprep.subr.mxu0 0.0
    %3724 = vmatpush1.msra.mxu0 0.0
    %3725 = vmatprep.subr.mxu0 0.0
    %3726 = vmatpush1.msra.mxu0 0.0
    %3727 = vmatprep.subr.mxu0 0.0
    %3728 = vmatpush1.msra.mxu0 0.0
    %3729 = vmatprep.subr.mxu0 0.0
    %3730 = vmatpush1.msra.mxu0 0.0
    %3731 = vmatprep.subr.mxu0 0.0
    %3732 = vmatpush1.msra.mxu0 0.0
    %3733 = vmatprep.subr.mxu0 0.0
    %3734 = vmatpush1.msra.mxu0 0.0
    %3735 = vmatprep.subr.mxu0 0.0
    %3736 = vmatpush1.msra.mxu0 0.0
    %3737 = vmatprep.subr.mxu0 0.0
    %3738 = vmatpush1.msra.mxu0 0.0
    %3739 = vmatprep.subr.mxu0 0.0
    %3740 = vmatpush1.msra.mxu0 0.0
    %3741 = vmatprep.subr.mxu0 0.0
    %3742 = vmatpush1.msra.mxu0 %v3709
    %3743 = vmatprep.subr.mxu0 0.0
    %3744 = vmatpush1.msra.mxu0 %v3708
    %3745 = vmatprep.subr.mxu0 0.0
    %3746 = vmatpush2.msra.mxu0 0.0
    %3747 = vmatprep.subr.mxu0 0.0
    %3748 = vmatpush2.msra.mxu0 0.0
    %3749 = vmatprep.subr.mxu0 0.0
    %3750 = vmatpush2.msra.mxu0 0.0
    %3751 = vmatprep.subr.mxu0 0.0
    %3752 = vmatpush2.msra.mxu0 0.0
    %3753 = vmatprep.subr.mxu0 0.0
    %3754 = vmatpush2.msra.mxu0 0.0
    %3755 = vmatprep.subr.mxu0 0.0
    %3756 = vmatpush2.msra.mxu0 0.0
    %3757 = vmatprep.subr.mxu0 0.0
    %3758 = vmatpush2.msra.mxu0 0.0
    %3759 = vmatprep.subr.mxu0 0.0
    %3760 = vmatpush2.msra.mxu0 0.0
    %3761 = vmatprep.subr.mxu0 0.0
    %3762 = vmatpush2.msra.mxu0 0.0
    %3763 = vmatprep.subr.mxu0 0.0
    %3764 = vmatpush2.msra.mxu0 0.0
    %3765 = vmatprep.subr.mxu0 0.0
    %3766 = vmatpush2.msra.mxu0 0.0
    %3767 = vmatprep.subr.mxu0 0.0
    %3768 = vmatpush2.msra.mxu0 0.0
    %3769 = vmatprep.subr.mxu0 0.0
    %3770 = vmatpush2.msra.mxu0 0.0
    %3771 = vmatprep.subr.mxu0 0.0
    %3772 = vmatpush2.msra.mxu0 0.0
    %3773 = vmatprep.subr.mxu0 0.0
    %3774 = vmatpush2.msra.mxu0 0.0
    %3775 = vmatprep.subr.mxu0 0.0
    %3776 = vmatpush2.msra.mxu0 0.0
    %3777 = vmatprep.mubr.f32.mxu0 0.0
    %3778 = vmatmul.mubr.f32.gmra.mxu0 %v3711
    %v3779 = vpop.f32.mrf.mxu0
    %v3780 = vadd.f32 0.0, %v3779
    %v3781 = vpop.f32.mrf.mxu0
    %3782 = vdwg.mxu0
    %v3783 = vadd.f32 %v3707, %v3780
    %v3784 = vld [vmem:[#allocation6 + $0x108] sm:$0x1]
    %v3785 = vlaneseq
    %v3786 = vshrl.u32 %v3785, 7
    %v3787 = vsub.s32 0, %v3786
    %v3788 = vrot.slane %v3784, %v3787
    %v3789 = vadd.f32 %v3783, %v3788
    %v3790 = vmax.f32 %v3789, 0.0
    %v3791 = vld [vmem:[#allocation6 + $0x110] sm:$0xff]
    %v3792 = vld [vmem:[#allocation6 + $0x118] sm:$0xff]
    %v3793 = vld [vmem:[#allocation6 + $0x120] sm:$0xff]
    %v3794 = vld [vmem:[#allocation6 + $0x128] sm:$0xff]
    %v3795 = vld [vmem:[#allocation6 + $0x130] sm:$0xff]
    %v3796 = vld [vmem:[#allocation6 + $0x138] sm:$0xff]
    %v3797 = vld [vmem:[#allocation6 + $0x140] sm:$0x3]
    %v3798 = vld [vmem:[#allocation6 + $0x148] sm:$0x1]
    %v3799 = vlaneseq
    %v3800 = vshrl.u32 %v3799, 7
    %v3801 = vsub.s32 0, %v3800
    %v3802 = vrot.slane %v3798, %v3801
    %vm3803 = vcmask 408576
    %v3805 = vsel %vm3803, %v3790, 0
    %vm3807 = vcmask 1041408
    %v3809 = vsel %vm3807, %v3797, 0
    %3811 = vmatprep.subr.mxu0 0.0
    %3812 = vmatpush1.msra.mxu0 0.0
    %3813 = vmatprep.subr.mxu0 0.0
    %3814 = vmatpush1.msra.mxu0 0.0
    %3815 = vmatprep.subr.mxu0 0.0
    %3816 = vmatpush1.msra.mxu0 0.0
    %3817 = vmatprep.subr.mxu0 0.0
    %3818 = vmatpush1.msra.mxu0 0.0
    %3819 = vmatprep.subr.mxu0 0.0
    %3820 = vmatpush1.msra.mxu0 0.0
    %3821 = vmatprep.subr.mxu0 0.0
    %3822 = vmatpush1.msra.mxu0 0.0
    %3823 = vmatprep.subr.mxu0 0.0
    %3824 = vmatpush1.msra.mxu0 0.0
    %3825 = vmatprep.subr.mxu0 0.0
    %3826 = vmatpush1.msra.mxu0 0.0
    %3827 = vmatprep.subr.mxu0 0.0
    %3828 = vmatpush1.msra.mxu0 0.0
    %3829 = vmatprep.subr.mxu0 0.0
    %3830 = vmatpush1.msra.mxu0 %v3809
    %3831 = vmatprep.subr.mxu0 0.0
    %3832 = vmatpush1.msra.mxu0 %v3796
    %3833 = vmatprep.subr.mxu0 0.0
    %3834 = vmatpush1.msra.mxu0 %v3795
    %3835 = vmatprep.subr.mxu0 0.0
    %3836 = vmatpush1.msra.mxu0 %v3794
    %3837 = vmatprep.subr.mxu0 0.0
    %3838 = vmatpush1.msra.mxu0 %v3793
    %3839 = vmatprep.subr.mxu0 0.0
    %3840 = vmatpush1.msra.mxu0 %v3792
    %3841 = vmatprep.subr.mxu0 0.0
    %3842 = vmatpush1.msra.mxu0 %v3791
    %3843 = vmatprep.subr.mxu0 0.0
    %3844 = vmatpush2.msra.mxu0 0.0
    %3845 = vmatprep.subr.mxu0 0.0
    %3846 = vmatpush2.msra.mxu0 0.0
    %3847 = vmatprep.subr.mxu0 0.0
    %3848 = vmatpush2.msra.mxu0 0.0
    %3849 = vmatprep.subr.mxu0 0.0
    %3850 = vmatpush2.msra.mxu0 0.0
    %3851 = vmatprep.subr.mxu0 0.0
    %3852 = vmatpush2.msra.mxu0 0.0
    %3853 = vmatprep.subr.mxu0 0.0
    %3854 = vmatpush2.msra.mxu0 0.0
    %3855 = vmatprep.subr.mxu0 0.0
    %3856 = vmatpush2.msra.mxu0 0.0
    %3857 = vmatprep.subr.mxu0 0.0
    %3858 = vmatpush2.msra.mxu0 0.0
    %3859 = vmatprep.subr.mxu0 0.0
    %3860 = vmatpush2.msra.mxu0 0.0
    %3861 = vmatprep.subr.mxu0 0.0
    %3862 = vmatpush2.msra.mxu0 0.0
    %3863 = vmatprep.subr.mxu0 0.0
    %3864 = vmatpush2.msra.mxu0 0.0
    %3865 = vmatprep.subr.mxu0 0.0
    %3866 = vmatpush2.msra.mxu0 0.0
    %3867 = vmatprep.subr.mxu0 0.0
    %3868 = vmatpush2.msra.mxu0 0.0
    %3869 = vmatprep.subr.mxu0 0.0
    %3870 = vmatpush2.msra.mxu0 0.0
    %3871 = vmatprep.subr.mxu0 0.0
    %3872 = vmatpush2.msra.mxu0 0.0
    %3873 = vmatprep.subr.mxu0 0.0
    %3874 = vmatpush2.msra.mxu0 0.0
    %3875 = vmatprep.mubr.f32.mxu0 0.0
    %3876 = vmatmul.mubr.f32.gmra.mxu0 %v3805
    %v3877 = vpop.f32.mrf.mxu0
    %v3878 = vadd.f32 %v3802, %v3877
    %v3879 = vpop.f32.mrf.mxu0
    %3880 = vdwg.mxu0
    %vm3881 = vcmask 25600
    %3882 = vst.msk [vmem:[#allocation7] sm:$0x3] %vm3881, %v3878
    // Predicated region
    $region30: #{tpu_custom_call.1} parent=1 // pred_check
      _
    $region31: #{tpu_custom_call.1} parent=1 // pred_check_branch
      %3884 = sbr.rel (0) target = $region33
    $region32: #{tpu_custom_call.1} parent=1 // pred_region
      %s3886 = ssub.s32 32, 32
      %3887 = vsyncadd [#allocation4], %s3886
      %s3889 = sshll.u32 [#allocation7], 4
      %s3890 = int_to_ptr.vmem [resolvable:$true] %s3889
      %3892 = dma.vmem_to_hbm [thread:$0]  %s3890, 32, %s5, [#allocation4]
    $region33: #{tpu_custom_call.1} parent=1 // pred_fallthru
      _
    // Predicated region
    $region34: #{tpu_custom_call.1} parent=1 // pred_check
      _
    $region35: #{tpu_custom_call.1} parent=1 // pred_check_branch
      %3894 = sbr.rel (0) target = $region37
    $region36: #{tpu_custom_call.1} parent=1 // pred_region
      %3895 = dma.done [#allocation4], 32
    $region37: #{tpu_custom_call.1} parent=1 // pred_fallthru
      _
    %3896 = vsyncpa [#allocation3], 1
    %3897 = vsyncpa [#allocation4], 1
    %3898 = vsyncpa [#allocation5], 1

</llo_original>
